<compile_context>
chip_gen: v7x
topology: tpu7x:2x2x1
jax: 0.10.0
libtpu: 0.0.40
codegen_flags: <defaults>
</compile_context>

<pallas_src>
import functools
import math

import jax
import jax.numpy as jnp
from jax.experimental import pallas as pl
from jax.experimental.pallas import tpu as pltpu


# ----------------------------------------------------------------------------
# small helpers
# ----------------------------------------------------------------------------
def _round_up(x, m):
    return ((x + m - 1) // m) * m


def _tile(dim, target):
    """Pick (tile, padded_dim). Full-extent block if dim <= target, else `target`
    (targets are multiples of 8 and 128) with the dim padded up to a multiple."""
    if dim <= target:
        return dim, dim
    return target, _round_up(dim, target)


_VMEM_LIMIT = 48 * 1024 * 1024   # safe on v5e/v6e (128 MiB) and v7x (64 MiB)


# ----------------------------------------------------------------------------
# tiled linear:  y = act(x @ w + b)
# ----------------------------------------------------------------------------
def _linear_kernel(x_ref, w_ref, b_ref, o_ref, acc_ref, *, activation, n_k):
    k = pl.program_id(2)

    @pl.when(k == 0)
    def _():
        acc_ref[...] = jnp.zeros_like(acc_ref)

    acc_ref[...] += jnp.dot(x_ref[...].astype(jnp.bfloat16), w_ref[...],
                            preferred_element_type=jnp.float32)

    @pl.when(k == n_k - 1)
    def _():
        y = acc_ref[...] + b_ref[...]
        if activation == "relu":
            y = jnp.maximum(y, 0.0)
        o_ref[...] = y.astype(o_ref.dtype)


def linear(x, w, b, activation=None, *, tm=256, tk=512, tn=256):
    """x: (..., K) @ w: (K, N) + b: (N,) -> (..., N). w may be bf16."""
    shape = x.shape
    K = shape[-1]
    M = int(math.prod(shape[:-1]))
    N = w.shape[1]
    x2 = x.reshape(M, K)

    tm, Mp = _tile(M, tm)
    tk, Kp = _tile(K, tk)
    tn, Np = _tile(N, tn)

    if Mp != M or Kp != K:
        x2 = jnp.pad(x2, ((0, Mp - M), (0, Kp - K)))
    wp = w if (Kp == K and Np == N) else jnp.pad(w, ((0, Kp - K), (0, Np - N)))
    bp = b if Np == N else jnp.pad(b, ((0, Np - N),))
    n_k = Kp // tk

    out = pl.pallas_call(
        functools.partial(_linear_kernel, activation=activation, n_k=n_k),
        out_shape=jax.ShapeDtypeStruct((Mp, Np), jnp.float32),
        grid=(Mp // tm, Np // tn, n_k),
        in_specs=[
            pl.BlockSpec((tm, tk), lambda i, j, k: (i, k)),
            pl.BlockSpec((tk, tn), lambda i, j, k: (k, j)),
            pl.BlockSpec((1, tn), lambda i, j, k: (0, j)),
        ],
        out_specs=pl.BlockSpec((tm, tn), lambda i, j, k: (i, j)),
        scratch_shapes=[pltpu.VMEM((tm, tn), jnp.float32)],
        compiler_params=pltpu.CompilerParams(
            dimension_semantics=("parallel", "parallel", "arbitrary"),
            vmem_limit_bytes=_VMEM_LIMIT),
    )(x2, wp, bp.reshape(1, Np))

    if Mp != M or Np != N:
        out = out[:M, :N]
    return out.reshape(*shape[:-1], N)


# ----------------------------------------------------------------------------
# fused FFN:  y = relu(x @ w1 + b1) @ w2 + b2, tiled over d_ff (hidden stays in VMEM)
# ----------------------------------------------------------------------------
def _ffn_kernel(x_ref, w1_ref, b1_ref, w2_ref, b2_ref, o_ref, acc_ref, *, n_f):
    f = pl.program_id(1)

    @pl.when(f == 0)
    def _():
        acc_ref[...] = jnp.zeros_like(acc_ref)

    x = x_ref[...].astype(jnp.bfloat16)
    h = jnp.dot(x, w1_ref[...], preferred_element_type=jnp.float32) + b1_ref[...]
    h = jnp.maximum(h, 0.0)
    acc_ref[...] += jnp.dot(h.astype(jnp.bfloat16), w2_ref[...],
                            preferred_element_type=jnp.float32)

    @pl.when(f == n_f - 1)
    def _():
        o_ref[...] = (acc_ref[...] + b2_ref[...]).astype(o_ref.dtype)


def ffn(x, w1, b1, w2, b2):
    shape = x.shape
    D = shape[-1]
    M = int(math.prod(shape[:-1]))
    F = w1.shape[1]
    x2 = x.reshape(M, D)

    tm, Mp = _tile(M, 256)
    tf, Fp = _tile(F, 512)

    if Mp != M:
        x2 = jnp.pad(x2, ((0, Mp - M), (0, 0)))
    w1p = w1 if Fp == F else jnp.pad(w1, ((0, 0), (0, Fp - F)))
    b1p = b1 if Fp == F else jnp.pad(b1, ((0, Fp - F),))
    w2p = w2 if Fp == F else jnp.pad(w2, ((0, Fp - F), (0, 0)))
    n_f = Fp // tf

    out = pl.pallas_call(
        functools.partial(_ffn_kernel, n_f=n_f),
        out_shape=jax.ShapeDtypeStruct((Mp, D), jnp.float32),
        grid=(Mp // tm, n_f),
        in_specs=[
            pl.BlockSpec((tm, D), lambda i, f: (i, 0)),
            pl.BlockSpec((D, tf), lambda i, f: (0, f)),
            pl.BlockSpec((1, tf), lambda i, f: (0, f)),
            pl.BlockSpec((tf, D), lambda i, f: (f, 0)),
            pl.BlockSpec((1, D), lambda i, f: (0, 0)),
        ],
        out_specs=pl.BlockSpec((tm, D), lambda i, f: (i, 0)),
        scratch_shapes=[pltpu.VMEM((tm, D), jnp.float32)],
        compiler_params=pltpu.CompilerParams(
            dimension_semantics=("parallel", "arbitrary"),
            vmem_limit_bytes=_VMEM_LIMIT),
    )(x2, w1p, b1p.reshape(1, Fp), w2p, b2.reshape(1, D))

    if Mp != M:
        out = out[:M]
    return out.reshape(shape)


# ----------------------------------------------------------------------------
# fused residual-add + LayerNorm, row-tiled
# ----------------------------------------------------------------------------
def _add_ln_kernel(x_ref, r_ref, g_ref, b_ref, o_ref, *, eps):
    x = x_ref[...] + r_ref[...]
    mean = jnp.mean(x, axis=-1, keepdims=True)
    var = jnp.mean(jnp.square(x - mean), axis=-1, keepdims=True)
    y = (x - mean) * jax.lax.rsqrt(var + eps)
    o_ref[...] = (y * g_ref[...] + b_ref[...]).astype(o_ref.dtype)


def add_layer_norm(x, r, gamma, beta, eps=1e-5):
    shape = x.shape
    D = shape[-1]
    M = int(math.prod(shape[:-1]))
    x2 = x.reshape(M, D)
    r2 = r.reshape(M, D)
    tm, Mp = _tile(M, 1024)
    if Mp != M:
        x2 = jnp.pad(x2, ((0, Mp - M), (0, 0)))
        r2 = jnp.pad(r2, ((0, Mp - M), (0, 0)))

    out = pl.pallas_call(
        functools.partial(_add_ln_kernel, eps=eps),
        out_shape=jax.ShapeDtypeStruct((Mp, D), jnp.float32),
        grid=(Mp // tm,),
        in_specs=[
            pl.BlockSpec((tm, D), lambda i: (i, 0)),
            pl.BlockSpec((tm, D), lambda i: (i, 0)),
            pl.BlockSpec((1, D), lambda i: (0, 0)),
            pl.BlockSpec((1, D), lambda i: (0, 0)),
        ],
        out_specs=pl.BlockSpec((tm, D), lambda i: (i, 0)),
        compiler_params=pltpu.CompilerParams(dimension_semantics=("parallel",)),
    )(x2, r2, gamma.reshape(1, D), beta.reshape(1, D))

    if Mp != M:
        out = out[:M]
    return out.reshape(shape)


# ----------------------------------------------------------------------------
# flash-style multi-head attention
#   q_proj : (B, Lq, D)      heads packed along D
#   kv_proj: (B, Lk, 2D)     columns [0:D] = K, [D:2D] = V (fused projection)
#   key padding bias: (B, 1, Lk_p) additive (0 / -1e9); causal mask built in-kernel
# ----------------------------------------------------------------------------
def _attn_kernel(q_ref, kv_ref, kb_ref, o_ref, m_sc, l_sc, acc_sc, *,
                 scale, causal, dk, n_head, tq, tkv, n_kv, d_model):
    kb = pl.program_id(2)

    @pl.when(kb == 0)
    def _():
        m_sc[...] = jnp.full_like(m_sc, -1e30)
        l_sc[...] = jnp.zeros_like(l_sc)
        acc_sc[...] = jnp.zeros_like(acc_sc)

    bias = kb_ref[0]                                          # (1, tkv) f32
    if causal:
        qb = pl.program_id(1)
        q_pos = qb * tq + jax.lax.broadcasted_iota(jnp.int32, (tq, tkv), 0)
        k_pos = kb * tkv + jax.lax.broadcasted_iota(jnp.int32, (tq, tkv), 1)
        bias = bias + jnp.where(k_pos > q_pos,
                                jnp.float32(-1e9), jnp.float32(0.0))

    for h in range(n_head):                                   # static unroll
        q = q_ref[0, :, h * dk:(h + 1) * dk].astype(jnp.bfloat16)          # (tq, dk)
        k = kv_ref[0, :, h * dk:(h + 1) * dk].astype(jnp.bfloat16)         # (tkv, dk)
        v = kv_ref[0, :, d_model + h * dk:d_model + (h + 1) * dk].astype(jnp.bfloat16)

        s = jax.lax.dot_general(q, k, (((1,), (1,)), ((), ())),
                                preferred_element_type=jnp.float32)        # (tq, tkv)
        s = s * scale + bias

        m_prev = m_sc[h]                                                   # (tq, 1)
        m_new = jnp.maximum(m_prev, jnp.max(s, axis=-1, keepdims=True))
        alpha = jnp.exp(m_prev - m_new)
        p = jnp.exp(s - m_new)
        l_sc[h] = alpha * l_sc[h] + jnp.sum(p, axis=-1, keepdims=True)
        acc_sc[h] = alpha * acc_sc[h] + jnp.dot(p.astype(jnp.bfloat16), v,
                                                preferred_element_type=jnp.float32)
        m_sc[h] = m_new

    @pl.when(kb == n_kv - 1)
    def _():
        for h in range(n_head):
            inv = pl.reciprocal(l_sc[h], approx=True)
            o_ref[0, :, h * dk:(h + 1) * dk] = (acc_sc[h] * inv).astype(o_ref.dtype)


def fused_attention(q_proj, kv_proj, pad_mask, n_head, causal):
    B, Lq, D = q_proj.shape
    Lk = kv_proj.shape[1]
    Dkv = kv_proj.shape[2]
    dk = D // n_head
    scale = 1.0 / math.sqrt(dk)

    tq, Lq_p = _tile(Lq, 512)
    tkv, Lk_p = _tile(Lk, 512)

    if Lq_p != Lq:
        q_proj = jnp.pad(q_proj, ((0, 0), (0, Lq_p - Lq), (0, 0)))
    if Lk_p != Lk:
        kv_proj = jnp.pad(kv_proj, ((0, 0), (0, Lk_p - Lk), (0, 0)))

    key_bias = jnp.where(pad_mask, jnp.float32(-1e9), jnp.float32(0.0))
    if Lk_p != Lk:
        key_bias = jnp.pad(key_bias, ((0, 0), (0, Lk_p - Lk)), constant_values=-1e9)
    key_bias = key_bias[:, None, :]                       # (B, 1, Lk_p)

    n_q = Lq_p // tq
    n_kv = Lk_p // tkv

    out = pl.pallas_call(
        functools.partial(_attn_kernel, scale=scale, causal=causal, dk=dk,
                          n_head=n_head, tq=tq, tkv=tkv, n_kv=n_kv, d_model=D),
        out_shape=jax.ShapeDtypeStruct((B, Lq_p, D), jnp.float32),
        grid=(B, n_q, n_kv),
        in_specs=[
            pl.BlockSpec((1, tq, D), lambda b, qb, kb: (b, qb, 0)),
            pl.BlockSpec((1, tkv, Dkv), lambda b, qb, kb: (b, kb, 0)),
            pl.BlockSpec((1, 1, tkv), lambda b, qb, kb: (b, 0, kb)),
        ],
        out_specs=pl.BlockSpec((1, tq, D), lambda b, qb, kb: (b, qb, 0)),
        scratch_shapes=[
            pltpu.VMEM((n_head, tq, 1), jnp.float32),   # running max
            pltpu.VMEM((n_head, tq, 1), jnp.float32),   # running denom
            pltpu.VMEM((n_head, tq, dk), jnp.float32),  # running numerator
        ],
        compiler_params=pltpu.CompilerParams(
            dimension_semantics=("parallel", "parallel", "arbitrary"),
            vmem_limit_bytes=_VMEM_LIMIT),
    )(q_proj, kv_proj, key_bias)

    if Lq_p != Lq:
        out = out[:, :Lq, :]
    return out


# ----------------------------------------------------------------------------
# model glue
# ----------------------------------------------------------------------------
def mha_block(x_q, x_kv, key_pad_mask, p, n_head, causal):
    q = linear(x_q, p["wq"], p["bq"])           # (B, Lq, D)
    kv = linear(x_kv, p["wkv"], p["bkv"])       # (B, Lk, 2D)  fused K|V projection
    o = fused_attention(q, kv, key_pad_mask, n_head, causal)
    return linear(o, p["wo"], p["bo"])


def encoder_layer_fwd(x, src_pad, p, n_head):
    a = mha_block(x, x, src_pad, p["self_attn"], n_head, causal=False)
    x = add_layer_norm(x, a, p["ln1_g"], p["ln1_b"])
    f = ffn(x, p["w1"], p["b1"], p["w2"], p["b2"])
    x = add_layer_norm(x, f, p["ln2_g"], p["ln2_b"])
    return x


def decoder_layer_fwd(x, memory, tgt_pad, src_pad, p, n_head):
    a = mha_block(x, x, tgt_pad, p["self_attn"], n_head, causal=True)
    x = add_layer_norm(x, a, p["ln1_g"], p["ln1_b"])
    c = mha_block(x, memory, src_pad, p["cross_attn"], n_head, causal=False)
    x = add_layer_norm(x, c, p["ln2_g"], p["ln2_b"])
    f = ffn(x, p["w1"], p["b1"], p["w2"], p["b2"])
    x = add_layer_norm(x, f, p["ln3_g"], p["ln3_b"])
    return x


def positional_encoding(max_len, D):
    pos = jnp.arange(max_len, dtype=jnp.float32)[:, None]
    div = jnp.exp(jnp.arange(0, D, 2, dtype=jnp.float32) * (-math.log(10000.0) / D))
    pe = jnp.zeros((max_len, D), dtype=jnp.float32)
    pe = pe.at[:, 0::2].set(jnp.sin(pos * div))
    pe = pe.at[:, 1::2].set(jnp.cos(pos * div))
    return pe


def transformer_forward(params, src, tgt, *, d_model, n_head, src_pad_id, tgt_pad_id):
    B, Ls = src.shape
    Lt = tgt.shape[1]

    src_pad = src == src_pad_id          # (B, Ls) bool — key padding for enc self & cross
    tgt_pad = tgt == tgt_pad_id          # (B, Lt) bool — key padding for dec self

    pe = params["pe"]
    x = params["src_embed"][src] * math.sqrt(d_model) + pe[:Ls]
    y = params["tgt_embed"][tgt] * math.sqrt(d_model) + pe[:Lt]

    memory = x
    for lp in params["enc_layers"]:
        memory = encoder_layer_fwd(memory, src_pad, lp, n_head)

    out = y
    for lp in params["dec_layers"]:
        out = decoder_layer_fwd(out, memory, tgt_pad, src_pad, lp, n_head)

    logits = linear(out, params["fc_w"], params["fc_b"], tn=512)   # (B, Lt, V)
    return logits.transpose(1, 0, 2)                               # (Lt, B, V) like PyTorch


# ----------------------------------------------------------------------------
# deterministic parameter init (xavier_normal for dim>1, zero biases);
# matmul weights stored bf16 for MXU / HBM efficiency, accumulation stays f32.
# ----------------------------------------------------------------------------
def _xavier_normal(key, shape):
    std = math.sqrt(2.0 / (shape[0] + shape[1]))
    return std * jax.random.normal(key, shape, dtype=jnp.float32)


def init_params(key, *, d_model, n_head, n_enc, n_dec, d_ff, src_vocab, tgt_vocab,
                max_len=512):
    keys = iter(jax.random.split(key, 512))
    D, F = d_model, d_ff
    wdt = jnp.bfloat16

    def attn_params():
        wk = _xavier_normal(next(keys), (D, D))
        wv = _xavier_normal(next(keys), (D, D))
        return {
            "wq": _xavier_normal(next(keys), (D, D)).astype(wdt),
            "bq": jnp.zeros((D,), jnp.float32),
            "wkv": jnp.concatenate([wk, wv], axis=1).astype(wdt),   # (D, 2D)
            "bkv": jnp.zeros((2 * D,), jnp.float32),
            "wo": _xavier_normal(next(keys), (D, D)).astype(wdt),
            "bo": jnp.zeros((D,), jnp.float32),
        }

    def enc_layer():
        return {
            "self_attn": attn_params(),
            "ln1_g": jnp.ones((D,), jnp.float32), "ln1_b": jnp.zeros((D,), jnp.float32),
            "w1": _xavier_normal(next(keys), (D, F)).astype(wdt),
            "b1": jnp.zeros((F,), jnp.float32),
            "w2": _xavier_normal(next(keys), (F, D)).astype(wdt),
            "b2": jnp.zeros((D,), jnp.float32),
            "ln2_g": jnp.ones((D,), jnp.float32), "ln2_b": jnp.zeros((D,), jnp.float32),
        }

    def dec_layer():
        p = enc_layer()
        p["cross_attn"] = attn_params()
        p["ln3_g"] = jnp.ones((D,), jnp.float32)
        p["ln3_b"] = jnp.zeros((D,), jnp.float32)
        return p

    return {
        "src_embed": _xavier_normal(next(keys), (src_vocab, D)),
        "tgt_embed": _xavier_normal(next(keys), (tgt_vocab, D)),
        "pe": positional_encoding(max_len, D),
        "enc_layers": [enc_layer() for _ in range(n_enc)],
        "dec_layers": [dec_layer() for _ in range(n_dec)],
        "fc_w": _xavier_normal(next(keys), (D, tgt_vocab)).astype(wdt),
        "fc_b": jnp.zeros((tgt_vocab,), jnp.float32),
    }


# ----------------------------------------------------------------------------
# demo
# ----------------------------------------------------------------------------
if __name__ == "__main__":
    D_MODEL, N_HEAD = 256, 2          # dk = 128 -> lane-aligned head slices
    N_ENC, N_DEC, D_FF = 2, 2, 512
    SRC_VOCAB, TGT_VOCAB = 16, 16
    SRC_PAD, TGT_PAD = 1, 1
    B, LS, LT = 2, 8, 8

    key = jax.random.PRNGKey(0)
    k_par, k_src, k_tgt = jax.random.split(key, 3)

    params = init_params(k_par, d_model=D_MODEL, n_head=N_HEAD, n_enc=N_ENC,
                         n_dec=N_DEC, d_ff=D_FF, src_vocab=SRC_VOCAB,
                         tgt_vocab=TGT_VOCAB)

    src = jax.random.randint(k_src, (B, LS), 3, SRC_VOCAB, dtype=jnp.int32)
    tgt = jax.random.randint(k_tgt, (B, LT), 3, TGT_VOCAB, dtype=jnp.int32)
    # add some padding so the masks are exercised
    src = src.at[0, -2:].set(SRC_PAD)
    tgt = tgt.at[1, -3:].set(TGT_PAD)

    fwd = jax.jit(functools.partial(transformer_forward,
                                    d_model=D_MODEL, n_head=N_HEAD,
                                    src_pad_id=SRC_PAD, tgt_pad_id=TGT_PAD))
    out = fwd(params, src, tgt)
    out = jax.block_until_ready(out)

    assert out.shape == (LT, B, TGT_VOCAB), out.shape
    assert bool(jnp.all(jnp.isfinite(out)))
    print("KERNEL_OK")
</pallas_src>

<mosaic_0001>
module attributes {stable_mosaic.version = 11 : i64} {
  func.func @_linear_kernel(%arg0: i32, %arg1: i32, %arg2: i32, %arg3: memref<16x256xf32, #tpu.memory_space<vmem>>, %arg4: memref<256x256xbf16, #tpu.memory_space<vmem>>, %arg5: memref<1x256xf32, #tpu.memory_space<vmem>>, %arg6: memref<16x256xf32, #tpu.memory_space<vmem>>, %arg7: memref<16x256xf32, #tpu.memory_space<vmem>>) attributes {dimension_semantics = [#tpu.dimension_semantics<parallel>, #tpu.dimension_semantics<parallel>, #tpu.dimension_semantics<arbitrary>], iteration_bounds = array<i64: 1, 2, 1>, scalar_prefetch = 0 : i64, scratch_operands = 1 : i64, tpu.core_type = #tpu.core_type<tc>, window_params = [{transform_indices = @transform_0, window_bounds = array<i64: 16, 256>}, {transform_indices = @transform_1, window_bounds = array<i64: 256, 256>}, {transform_indices = @transform_2, window_bounds = array<i64: 1, 256>}, {transform_indices = @transform_3, window_bounds = array<i64: 16, 256>}]} {
    %c0_i32 = arith.constant 0 : i32
    %0 = arith.cmpi eq, %arg2, %c0_i32 : i32
    %1 = arith.extui %0 : i1 to i32
    %c0_i32_0 = arith.constant 0 : i32
    %2 = arith.cmpi ne, %1, %c0_i32_0 : i32
    scf.if %2 {
      %cst_10 = arith.constant 0.000000e+00 : f32
      %13 = vector.broadcast %cst_10 : f32 to vector<16x256xf32>
      %c0_11 = arith.constant 0 : index
      %c0_12 = arith.constant 0 : index
      %14 = vector.load %arg7[%c0_11, %c0_12] : memref<16x256xf32, #tpu.memory_space<vmem>>, vector<16x256xf32>
      tpu.vector_store %arg7[%c0_11, %c0_12], %13 {strides = array<i32>} : memref<16x256xf32, #tpu.memory_space<vmem>>, vector<16x256xf32>,
    } else {
    }
    %c0 = arith.constant 0 : index
    %c0_1 = arith.constant 0 : index
    %3 = vector.load %arg7[%c0, %c0_1] : memref<16x256xf32, #tpu.memory_space<vmem>>, vector<16x256xf32>
    %c0_2 = arith.constant 0 : index
    %c0_3 = arith.constant 0 : index
    %4 = vector.load %arg3[%c0_2, %c0_3] : memref<16x256xf32, #tpu.memory_space<vmem>>, vector<16x256xf32>
    %5 = arith.truncf %4 : vector<16x256xf32> to vector<16x256xbf16>
    %c0_4 = arith.constant 0 : index
    %c0_5 = arith.constant 0 : index
    %6 = vector.load %arg4[%c0_4, %c0_5] : memref<256x256xbf16, #tpu.memory_space<vmem>>, vector<256x256xbf16>
    %cst = arith.constant dense<0.000000e+00> : vector<16x256xf32>
    %7 = tpu.matmul %5, %6, %cst {dimension_numbers = #tpu.dot_dimension_numbers<[1], [0], [0], [1], [0, 0, 1, 1], [], []>} : vector<16x256xbf16>, vector<256x256xbf16>, vector<16x256xf32> -> vector<16x256xf32>
    %8 = arith.addf %3, %7 : vector<16x256xf32>
    %c0_6 = arith.constant 0 : index
    %c0_7 = arith.constant 0 : index
    %9 = vector.load %arg7[%c0_6, %c0_7] : memref<16x256xf32, #tpu.memory_space<vmem>>, vector<16x256xf32>
    tpu.vector_store %arg7[%c0_6, %c0_7], %8 {strides = array<i32>} : memref<16x256xf32, #tpu.memory_space<vmem>>, vector<16x256xf32>,
    %c0_i32_8 = arith.constant 0 : i32
    %10 = arith.cmpi eq, %arg2, %c0_i32_8 : i32
    %11 = arith.extui %10 : i1 to i32
    %c0_i32_9 = arith.constant 0 : i32
    %12 = arith.cmpi ne, %11, %c0_i32_9 : i32
    scf.if %12 {
      %c0_10 = arith.constant 0 : index
      %c0_11 = arith.constant 0 : index
      %13 = vector.load %arg7[%c0_10, %c0_11] : memref<16x256xf32, #tpu.memory_space<vmem>>, vector<16x256xf32>
      %c0_12 = arith.constant 0 : index
      %c0_13 = arith.constant 0 : index
      %14 = vector.load %arg5[%c0_12, %c0_13] : memref<1x256xf32, #tpu.memory_space<vmem>>, vector<1x256xf32>
      %15 = vector.broadcast %14 : vector<1x256xf32> to vector<16x256xf32>
      %16 = arith.addf %13, %15 : vector<16x256xf32>
      %c0_14 = arith.constant 0 : index
      %c0_15 = arith.constant 0 : index
      %17 = vector.load %arg6[%c0_14, %c0_15] : memref<16x256xf32, #tpu.memory_space<vmem>>, vector<16x256xf32>
      tpu.vector_store %arg6[%c0_14, %c0_15], %16 {strides = array<i32>} : memref<16x256xf32, #tpu.memory_space<vmem>>, vector<16x256xf32>,
    } else {
    }
    return
  }
  func.func @transform_0(%arg0: i32, %arg1: i32, %arg2: i32) -> (i32, i32) {
    %c0_i32 = arith.constant 0 : i32
    return %arg0, %arg2 : i32, i32
  }
  func.func @transform_1(%arg0: i32, %arg1: i32, %arg2: i32) -> (i32, i32) {
    %c0_i32 = arith.constant 0 : i32
    return %arg2, %arg1 : i32, i32
  }
  func.func @transform_2(%arg0: i32, %arg1: i32, %arg2: i32) -> (i32, i32) {
    %c0_i32 = arith.constant 0 : i32
    %c0_i32_0 = arith.constant 0 : i32
    return %c0_i32, %arg1 : i32, i32
  }
  func.func @transform_3(%arg0: i32, %arg1: i32, %arg2: i32) -> (i32, i32) {
    %c0_i32 = arith.constant 0 : i32
    return %arg0, %arg1 : i32, i32
  }
}

module attributes {stable_mosaic.version = 11 : i64} {
  func.func @_attn_kernel(%arg0: i32, %arg1: i32, %arg2: i32, %arg3: memref<1x8x256xf32, #tpu.memory_space<vmem>>, %arg4: memref<1x8x512xf32, #tpu.memory_space<vmem>>, %arg5: memref<1x1x8xf32, #tpu.memory_space<vmem>>, %arg6: memref<1x8x256xf32, #tpu.memory_space<vmem>>, %arg7: memref<2x8x1xf32, #tpu.memory_space<vmem>>, %arg8: memref<2x8x1xf32, #tpu.memory_space<vmem>>, %arg9: memref<2x8x128xf32, #tpu.memory_space<vmem>>) attributes {dimension_semantics = [#tpu.dimension_semantics<parallel>, #tpu.dimension_semantics<parallel>, #tpu.dimension_semantics<arbitrary>], iteration_bounds = array<i64: 2, 1, 1>, scalar_prefetch = 0 : i64, scratch_operands = 3 : i64, tpu.core_type = #tpu.core_type<tc>, window_params = [{transform_indices = @transform_0, window_bounds = array<i64: 1, 8, 256>}, {transform_indices = @transform_1, window_bounds = array<i64: 1, 8, 512>}, {transform_indices = @transform_2, window_bounds = array<i64: 1, 1, 8>}, {transform_indices = @transform_3, window_bounds = array<i64: 1, 8, 256>}]} {
    %c0_i32 = arith.constant 0 : i32
    %0 = arith.cmpi eq, %arg2, %c0_i32 : i32
    %1 = arith.extui %0 : i1 to i32
    %c0_i32_0 = arith.constant 0 : i32
    %2 = arith.cmpi ne, %1, %c0_i32_0 : i32
    scf.if %2 {
      %cst_67 = arith.constant -1.000000e+30 : f32
      %112 = vector.broadcast %cst_67 : f32 to vector<2x8x1xf32>
      %c0_68 = arith.constant 0 : index
      %c0_69 = arith.constant 0 : index
      %c0_70 = arith.constant 0 : index
      %113 = vector.load %arg7[%c0_68, %c0_69, %c0_70] : memref<2x8x1xf32, #tpu.memory_space<vmem>>, vector<2x8x1xf32>
      tpu.vector_store %arg7[%c0_68, %c0_69, %c0_70], %112 {strides = array<i32>} : memref<2x8x1xf32, #tpu.memory_space<vmem>>, vector<2x8x1xf32>,
      %cst_71 = arith.constant 0.000000e+00 : f32
      %114 = vector.broadcast %cst_71 : f32 to vector<2x8x1xf32>
      %c0_72 = arith.constant 0 : index
      %c0_73 = arith.constant 0 : index
      %c0_74 = arith.constant 0 : index
      %115 = vector.load %arg8[%c0_72, %c0_73, %c0_74] : memref<2x8x1xf32, #tpu.memory_space<vmem>>, vector<2x8x1xf32>
      tpu.vector_store %arg8[%c0_72, %c0_73, %c0_74], %114 {strides = array<i32>} : memref<2x8x1xf32, #tpu.memory_space<vmem>>, vector<2x8x1xf32>,
      %cst_75 = arith.constant 0.000000e+00 : f32
      %116 = vector.broadcast %cst_75 : f32 to vector<2x8x128xf32>
      %c0_76 = arith.constant 0 : index
      %c0_77 = arith.constant 0 : index
      %c0_78 = arith.constant 0 : index
      %117 = vector.load %arg9[%c0_76, %c0_77, %c0_78] : memref<2x8x128xf32, #tpu.memory_space<vmem>>, vector<2x8x128xf32>
      tpu.vector_store %arg9[%c0_76, %c0_77, %c0_78], %116 {strides = array<i32>} : memref<2x8x128xf32, #tpu.memory_space<vmem>>, vector<2x8x128xf32>,
    } else {
    }
    %c0 = arith.constant 0 : index
    %c0_1 = arith.constant 0 : index
    %c0_2 = arith.constant 0 : index
    %3 = vector.load %arg5[%c0, %c0_1, %c0_2] : memref<1x1x8xf32, #tpu.memory_space<vmem>>, vector<1x1x8xf32>
    %4 = vector.shape_cast %3 : vector<1x1x8xf32> to vector<1x8xf32>
    %c8_i32 = arith.constant 8 : i32
    %5 = arith.muli %arg1, %c8_i32 : i32
    %6 = tpu.iota {dimensions = array<i32: 0>} : vector<8x8xi32>
    %7 = vector.broadcast %5 : i32 to vector<8x8xi32>
    %8 = arith.addi %7, %6 : vector<8x8xi32>
    %c8_i32_3 = arith.constant 8 : i32
    %9 = arith.muli %arg2, %c8_i32_3 : i32
    %10 = tpu.iota {dimensions = array<i32: 1>} : vector<8x8xi32>
    %11 = vector.broadcast %9 : i32 to vector<8x8xi32>
    %12 = arith.addi %11, %10 : vector<8x8xi32>
    %13 = arith.cmpi sgt, %12, %8 : vector<8x8xi32>
    %cst = arith.constant -1.000000e+09 : f32
    %cst_4 = arith.constant 0.000000e+00 : f32
    %14 = vector.broadcast %cst : f32 to vector<8x8xf32>
    %15 = vector.broadcast %cst_4 : f32 to vector<8x8xf32>
    %16 = arith.select %13, %14, %15 : vector<8x8xi1>, vector<8x8xf32>
    %17 = vector.broadcast %4 : vector<1x8xf32> to vector<8x8xf32>
    %18 = arith.addf %17, %16 : vector<8x8xf32>
    %c0_5 = arith.constant 0 : index
    %c0_6 = arith.constant 0 : index
    %c0_7 = arith.constant 0 : index
    %19 = vector.load %arg3[%c0_5, %c0_6, %c0_7] : memref<1x8x256xf32, #tpu.memory_space<vmem>>, vector<1x8x128xf32>
    %20 = vector.shape_cast %19 : vector<1x8x128xf32> to vector<8x128xf32>
    %21 = arith.truncf %20 : vector<8x128xf32> to vector<8x128xbf16>
    %c0_8 = arith.constant 0 : index
    %c0_9 = arith.constant 0 : index
    %c0_10 = arith.constant 0 : index
    %22 = vector.load %arg4[%c0_8, %c0_9, %c0_10] : memref<1x8x512xf32, #tpu.memory_space<vmem>>, vector<1x8x128xf32>
    %23 = vector.shape_cast %22 : vector<1x8x128xf32> to vector<8x128xf32>
    %24 = arith.truncf %23 : vector<8x128xf32> to vector<8x128xbf16>
    %c0_11 = arith.constant 0 : index
    %c0_12 = arith.constant 0 : index
    %c256 = arith.constant 256 : index
    %25 = vector.load %arg4[%c0_11, %c0_12, %c256] : memref<1x8x512xf32, #tpu.memory_space<vmem>>, vector<1x8x128xf32>
    %26 = vector.shape_cast %25 : vector<1x8x128xf32> to vector<8x128xf32>
    %27 = arith.truncf %26 : vector<8x128xf32> to vector<8x128xbf16>
    %cst_13 = arith.constant dense<0.000000e+00> : vector<8x8xf32>
    %28 = tpu.matmul %21, %24, %cst_13 {dimension_numbers = #tpu.dot_dimension_numbers<[1], [1], [0], [0], [0, 0, 1, 0], [], []>} : vector<8x128xbf16>, vector<8x128xbf16>, vector<8x8xf32> -> vector<8x8xf32>
    %cst_14 = arith.constant 0.0883883461 : f32
    %29 = vector.broadcast %cst_14 : f32 to vector<8x8xf32>
    %30 = arith.mulf %28, %29 : vector<8x8xf32>
    %31 = arith.addf %30, %18 : vector<8x8xf32>
    %c0_15 = arith.constant 0 : index
    %c0_16 = arith.constant 0 : index
    %c0_17 = arith.constant 0 : index
    %32 = vector.load %arg7[%c0_15, %c0_16, %c0_17] : memref<2x8x1xf32, #tpu.memory_space<vmem>>, vector<1x8x1xf32>
    %33 = vector.shape_cast %32 : vector<1x8x1xf32> to vector<8x1xf32>
    %cst_18 = arith.constant dense<0xFF800000> : vector<8xf32>
    %34 = vector.multi_reduction <maximumf>, %31, %cst_18 [1] : vector<8x8xf32> to vector<8xf32>
    %35 = vector.shape_cast %34 : vector<8xf32> to vector<8x1xf32>
    %36 = arith.maximumf %33, %35 : vector<8x1xf32>
    %37 = arith.subf %33, %36 : vector<8x1xf32>
    %38 = math.exp %37 : vector<8x1xf32>
    %39 = vector.broadcast %36 : vector<8x1xf32> to vector<8x8xf32>
    %40 = arith.subf %31, %39 : vector<8x8xf32>
    %41 = math.exp %40 : vector<8x8xf32>
    %c0_19 = arith.constant 0 : index
    %c0_20 = arith.constant 0 : index
    %c0_21 = arith.constant 0 : index
    %42 = vector.load %arg8[%c0_19, %c0_20, %c0_21] : memref<2x8x1xf32, #tpu.memory_space<vmem>>, vector<1x8x1xf32>
    %43 = vector.shape_cast %42 : vector<1x8x1xf32> to vector<8x1xf32>
    %44 = arith.mulf %38, %43 : vector<8x1xf32>
    %cst_22 = arith.constant dense<0.000000e+00> : vector<8xf32>
    %45 = vector.multi_reduction <add>, %41, %cst_22 [1] : vector<8x8xf32> to vector<8xf32>
    %46 = vector.shape_cast %45 : vector<8xf32> to vector<8x1xf32>
    %47 = arith.addf %44, %46 : vector<8x1xf32>
    %c0_23 = arith.constant 0 : index
    %c0_24 = arith.constant 0 : index
    %c0_25 = arith.constant 0 : index
    %48 = vector.load %arg8[%c0_23, %c0_24, %c0_25] : memref<2x8x1xf32, #tpu.memory_space<vmem>>, vector<1x8x1xf32>
    %49 = vector.shape_cast %48 : vector<1x8x1xf32> to vector<8x1xf32>
    %50 = vector.shape_cast %47 : vector<8x1xf32> to vector<1x8x1xf32>
    tpu.vector_store %arg8[%c0_23, %c0_24, %c0_25], %50 {strides = array<i32>} : memref<2x8x1xf32, #tpu.memory_space<vmem>>, vector<1x8x1xf32>,
    %c0_26 = arith.constant 0 : index
    %c0_27 = arith.constant 0 : index
    %c0_28 = arith.constant 0 : index
    %51 = vector.load %arg9[%c0_26, %c0_27, %c0_28] : memref<2x8x128xf32, #tpu.memory_space<vmem>>, vector<1x8x128xf32>
    %52 = vector.shape_cast %51 : vector<1x8x128xf32> to vector<8x128xf32>
    %53 = vector.broadcast %38 : vector<8x1xf32> to vector<8x128xf32>
    %54 = arith.mulf %53, %52 : vector<8x128xf32>
    %55 = arith.truncf %41 : vector<8x8xf32> to vector<8x8xbf16>
    %cst_29 = arith.constant dense<0.000000e+00> : vector<8x128xf32>
    %56 = tpu.matmul %55, %27, %cst_29 {dimension_numbers = #tpu.dot_dimension_numbers<[1], [0], [0], [1], [0, 0, 1, 1], [], []>} : vector<8x8xbf16>, vector<8x128xbf16>, vector<8x128xf32> -> vector<8x128xf32>
    %57 = arith.addf %54, %56 : vector<8x128xf32>
    %c0_30 = arith.constant 0 : index
    %c0_31 = arith.constant 0 : index
    %c0_32 = arith.constant 0 : index
    %58 = vector.load %arg9[%c0_30, %c0_31, %c0_32] : memref<2x8x128xf32, #tpu.memory_space<vmem>>, vector<1x8x128xf32>
    %59 = vector.shape_cast %58 : vector<1x8x128xf32> to vector<8x128xf32>
    %60 = vector.shape_cast %57 : vector<8x128xf32> to vector<1x8x128xf32>
    tpu.vector_store %arg9[%c0_30, %c0_31, %c0_32], %60 {strides = array<i32>} : memref<2x8x128xf32, #tpu.memory_space<vmem>>, vector<1x8x128xf32>,
    %c0_33 = arith.constant 0 : index
    %c0_34 = arith.constant 0 : index
    %c0_35 = arith.constant 0 : index
    %61 = vector.load %arg7[%c0_33, %c0_34, %c0_35] : memref<2x8x1xf32, #tpu.memory_space<vmem>>, vector<1x8x1xf32>
    %62 = vector.shape_cast %61 : vector<1x8x1xf32> to vector<8x1xf32>
    %63 = vector.shape_cast %36 : vector<8x1xf32> to vector<1x8x1xf32>
    tpu.vector_store %arg7[%c0_33, %c0_34, %c0_35], %63 {strides = array<i32>} : memref<2x8x1xf32, #tpu.memory_space<vmem>>, vector<1x8x1xf32>,
    %c0_36 = arith.constant 0 : index
    %c0_37 = arith.constant 0 : index
    %c128 = arith.constant 128 : index
    %64 = vector.load %arg3[%c0_36, %c0_37, %c128] : memref<1x8x256xf32, #tpu.memory_space<vmem>>, vector<1x8x128xf32>
    %65 = vector.shape_cast %64 : vector<1x8x128xf32> to vector<8x128xf32>
    %66 = arith.truncf %65 : vector<8x128xf32> to vector<8x128xbf16>
    %c0_38 = arith.constant 0 : index
    %c0_39 = arith.constant 0 : index
    %c128_40 = arith.constant 128 : index
    %67 = vector.load %arg4[%c0_38, %c0_39, %c128_40] : memref<1x8x512xf32, #tpu.memory_space<vmem>>, vector<1x8x128xf32>
    %68 = vector.shape_cast %67 : vector<1x8x128xf32> to vector<8x128xf32>
    %69 = arith.truncf %68 : vector<8x128xf32> to vector<8x128xbf16>
    %c0_41 = arith.constant 0 : index
    %c0_42 = arith.constant 0 : index
    %c384 = arith.constant 384 : index
    %70 = vector.load %arg4[%c0_41, %c0_42, %c384] : memref<1x8x512xf32, #tpu.memory_space<vmem>>, vector<1x8x128xf32>
    %71 = vector.shape_cast %70 : vector<1x8x128xf32> to vector<8x128xf32>
    %72 = arith.truncf %71 : vector<8x128xf32> to vector<8x128xbf16>
    %cst_43 = arith.constant dense<0.000000e+00> : vector<8x8xf32>
    %73 = tpu.matmul %66, %69, %cst_43 {dimension_numbers = #tpu.dot_dimension_numbers<[1], [1], [0], [0], [0, 0, 1, 0], [], []>} : vector<8x128xbf16>, vector<8x128xbf16>, vector<8x8xf32> -> vector<8x8xf32>
    %cst_44 = arith.constant 0.0883883461 : f32
    %74 = vector.broadcast %cst_44 : f32 to vector<8x8xf32>
    %75 = arith.mulf %73, %74 : vector<8x8xf32>
    %76 = arith.addf %75, %18 : vector<8x8xf32>
    %c1 = arith.constant 1 : index
    %c0_45 = arith.constant 0 : index
    %c0_46 = arith.constant 0 : index
    %77 = vector.load %arg7[%c1, %c0_45, %c0_46] : memref<2x8x1xf32, #tpu.memory_space<vmem>>, vector<1x8x1xf32>
    %78 = vector.shape_cast %77 : vector<1x8x1xf32> to vector<8x1xf32>
    %cst_47 = arith.constant dense<0xFF800000> : vector<8xf32>
    %79 = vector.multi_reduction <maximumf>, %76, %cst_47 [1] : vector<8x8xf32> to vector<8xf32>
    %80 = vector.shape_cast %79 : vector<8xf32> to vector<8x1xf32>
    %81 = arith.maximumf %78, %80 : vector<8x1xf32>
    %82 = arith.subf %78, %81 : vector<8x1xf32>
    %83 = math.exp %82 : vector<8x1xf32>
    %84 = vector.broadcast %81 : vector<8x1xf32> to vector<8x8xf32>
    %85 = arith.subf %76, %84 : vector<8x8xf32>
    %86 = math.exp %85 : vector<8x8xf32>
    %c1_48 = arith.constant 1 : index
    %c0_49 = arith.constant 0 : index
    %c0_50 = arith.constant 0 : index
    %87 = vector.load %arg8[%c1_48, %c0_49, %c0_50] : memref<2x8x1xf32, #tpu.memory_space<vmem>>, vector<1x8x1xf32>
    %88 = vector.shape_cast %87 : vector<1x8x1xf32> to vector<8x1xf32>
    %89 = arith.mulf %83, %88 : vector<8x1xf32>
    %cst_51 = arith.constant dense<0.000000e+00> : vector<8xf32>
    %90 = vector.multi_reduction <add>, %86, %cst_51 [1] : vector<8x8xf32> to vector<8xf32>
    %91 = vector.shape_cast %90 : vector<8xf32> to vector<8x1xf32>
    %92 = arith.addf %89, %91 : vector<8x1xf32>
    %c1_52 = arith.constant 1 : index
    %c0_53 = arith.constant 0 : index
    %c0_54 = arith.constant 0 : index
    %93 = vector.load %arg8[%c1_52, %c0_53, %c0_54] : memref<2x8x1xf32, #tpu.memory_space<vmem>>, vector<1x8x1xf32>
    %94 = vector.shape_cast %93 : vector<1x8x1xf32> to vector<8x1xf32>
    %95 = vector.shape_cast %92 : vector<8x1xf32> to vector<1x8x1xf32>
    tpu.vector_store %arg8[%c1_52, %c0_53, %c0_54], %95 {strides = array<i32>} : memref<2x8x1xf32, #tpu.memory_space<vmem>>, vector<1x8x1xf32>,
    %c1_55 = arith.constant 1 : index
    %c0_56 = arith.constant 0 : index
    %c0_57 = arith.constant 0 : index
    %96 = vector.load %arg9[%c1_55, %c0_56, %c0_57] : memref<2x8x128xf32, #tpu.memory_space<vmem>>, vector<1x8x128xf32>
    %97 = vector.shape_cast %96 : vector<1x8x128xf32> to vector<8x128xf32>
    %98 = vector.broadcast %83 : vector<8x1xf32> to vector<8x128xf32>
    %99 = arith.mulf %98, %97 : vector<8x128xf32>
    %100 = arith.truncf %86 : vector<8x8xf32> to vector<8x8xbf16>
    %cst_58 = arith.constant dense<0.000000e+00> : vector<8x128xf32>
    %101 = tpu.matmul %100, %72, %cst_58 {dimension_numbers = #tpu.dot_dimension_numbers<[1], [0], [0], [1], [0, 0, 1, 1], [], []>} : vector<8x8xbf16>, vector<8x128xbf16>, vector<8x128xf32> -> vector<8x128xf32>
    %102 = arith.addf %99, %101 : vector<8x128xf32>
    %c1_59 = arith.constant 1 : index
    %c0_60 = arith.constant 0 : index
    %c0_61 = arith.constant 0 : index
    %103 = vector.load %arg9[%c1_59, %c0_60, %c0_61] : memref<2x8x128xf32, #tpu.memory_space<vmem>>, vector<1x8x128xf32>
    %104 = vector.shape_cast %103 : vector<1x8x128xf32> to vector<8x128xf32>
    %105 = vector.shape_cast %102 : vector<8x128xf32> to vector<1x8x128xf32>
    tpu.vector_store %arg9[%c1_59, %c0_60, %c0_61], %105 {strides = array<i32>} : memref<2x8x128xf32, #tpu.memory_space<vmem>>, vector<1x8x128xf32>,
    %c1_62 = arith.constant 1 : index
    %c0_63 = arith.constant 0 : index
    %c0_64 = arith.constant 0 : index
    %106 = vector.load %arg7[%c1_62, %c0_63, %c0_64] : memref<2x8x1xf32, #tpu.memory_space<vmem>>, vector<1x8x1xf32>
    %107 = vector.shape_cast %106 : vector<1x8x1xf32> to vector<8x1xf32>
    %108 = vector.shape_cast %81 : vector<8x1xf32> to vector<1x8x1xf32>
    tpu.vector_store %arg7[%c1_62, %c0_63, %c0_64], %108 {strides = array<i32>} : memref<2x8x1xf32, #tpu.memory_space<vmem>>, vector<1x8x1xf32>,
    %c0_i32_65 = arith.constant 0 : i32
    %109 = arith.cmpi eq, %arg2, %c0_i32_65 : i32
    %110 = arith.extui %109 : i1 to i32
    %c0_i32_66 = arith.constant 0 : i32
    %111 = arith.cmpi ne, %110, %c0_i32_66 : i32
    scf.if %111 {
      %c0_67 = arith.constant 0 : index
      %c0_68 = arith.constant 0 : index
      %c0_69 = arith.constant 0 : index
      %112 = vector.load %arg8[%c0_67, %c0_68, %c0_69] : memref<2x8x1xf32, #tpu.memory_space<vmem>>, vector<1x8x1xf32>
      %113 = vector.shape_cast %112 : vector<1x8x1xf32> to vector<8x1xf32>
      %114 = tpu.reciprocal %113 {approx = true} : vector<8x1xf32> -> vector<8x1xf32>
      %c0_70 = arith.constant 0 : index
      %c0_71 = arith.constant 0 : index
      %c0_72 = arith.constant 0 : index
      %115 = vector.load %arg9[%c0_70, %c0_71, %c0_72] : memref<2x8x128xf32, #tpu.memory_space<vmem>>, vector<1x8x128xf32>
      %116 = vector.shape_cast %115 : vector<1x8x128xf32> to vector<8x128xf32>
      %117 = vector.broadcast %114 : vector<8x1xf32> to vector<8x128xf32>
      %118 = arith.mulf %116, %117 : vector<8x128xf32>
      %c0_73 = arith.constant 0 : index
      %c0_74 = arith.constant 0 : index
      %c0_75 = arith.constant 0 : index
      %119 = vector.load %arg6[%c0_73, %c0_74, %c0_75] : memref<1x8x256xf32, #tpu.memory_space<vmem>>, vector<1x8x128xf32>
      %120 = vector.shape_cast %119 : vector<1x8x128xf32> to vector<8x128xf32>
      %121 = vector.shape_cast %118 : vector<8x128xf32> to vector<1x8x128xf32>
      tpu.vector_store %arg6[%c0_73, %c0_74, %c0_75], %121 {strides = array<i32>} : memref<1x8x256xf32, #tpu.memory_space<vmem>>, vector<1x8x128xf32>,
      %c1_76 = arith.constant 1 : index
      %c0_77 = arith.constant 0 : index
      %c0_78 = arith.constant 0 : index
      %122 = vector.load %arg8[%c1_76, %c0_77, %c0_78] : memref<2x8x1xf32, #tpu.memory_space<vmem>>, vector<1x8x1xf32>
      %123 = vector.shape_cast %122 : vector<1x8x1xf32> to vector<8x1xf32>
      %124 = tpu.reciprocal %123 {approx = true} : vector<8x1xf32> -> vector<8x1xf32>
      %c1_79 = arith.constant 1 : index
      %c0_80 = arith.constant 0 : index
      %c0_81 = arith.constant 0 : index
      %125 = vector.load %arg9[%c1_79, %c0_80, %c0_81] : memref<2x8x128xf32, #tpu.memory_space<vmem>>, vector<1x8x128xf32>
      %126 = vector.shape_cast %125 : vector<1x8x128xf32> to vector<8x128xf32>
      %127 = vector.broadcast %124 : vector<8x1xf32> to vector<8x128xf32>
      %128 = arith.mulf %126, %127 : vector<8x128xf32>
      %c0_82 = arith.constant 0 : index
      %c0_83 = arith.constant 0 : index
      %c128_84 = arith.constant 128 : index
      %129 = vector.load %arg6[%c0_82, %c0_83, %c128_84] : memref<1x8x256xf32, #tpu.memory_space<vmem>>, vector<1x8x128xf32>
      %130 = vector.shape_cast %129 : vector<1x8x128xf32> to vector<8x128xf32>
      %131 = vector.shape_cast %128 : vector<8x128xf32> to vector<1x8x128xf32>
      tpu.vector_store %arg6[%c0_82, %c0_83, %c128_84], %131 {strides = array<i32>} : memref<1x8x256xf32, #tpu.memory_space<vmem>>, vector<1x8x128xf32>,
    } else {
    }
    return
  }
  func.func @transform_0(%arg0: i32, %arg1: i32, %arg2: i32) -> (i32, i32, i32) {
    %c0_i32 = arith.constant 0 : i32
    %c0_i32_0 = arith.constant 0 : i32
    return %arg0, %arg1, %c0_i32 : i32, i32, i32
  }
  func.func @transform_1(%arg0: i32, %arg1: i32, %arg2: i32) -> (i32, i32, i32) {
    %c0_i32 = arith.constant 0 : i32
    %c0_i32_0 = arith.constant 0 : i32
    return %arg0, %arg2, %c0_i32 : i32, i32, i32
  }
  func.func @transform_2(%arg0: i32, %arg1: i32, %arg2: i32) -> (i32, i32, i32) {
    %c0_i32 = arith.constant 0 : i32
    %c0_i32_0 = arith.constant 0 : i32
    return %arg0, %c0_i32, %arg2 : i32, i32, i32
  }
  func.func @transform_3(%arg0: i32, %arg1: i32, %arg2: i32) -> (i32, i32, i32) {
    %c0_i32 = arith.constant 0 : i32
    %c0_i32_0 = arith.constant 0 : i32
    return %arg0, %arg1, %c0_i32 : i32, i32, i32
  }
}

module attributes {stable_mosaic.version = 11 : i64} {
  func.func @_linear_kernel(%arg0: i32, %arg1: i32, %arg2: i32, %arg3: memref<16x256xf32, #tpu.memory_space<vmem>>, %arg4: memref<256x256xbf16, #tpu.memory_space<vmem>>, %arg5: memref<1x256xf32, #tpu.memory_space<vmem>>, %arg6: memref<16x256xf32, #tpu.memory_space<vmem>>, %arg7: memref<16x256xf32, #tpu.memory_space<vmem>>) attributes {dimension_semantics = [#tpu.dimension_semantics<parallel>, #tpu.dimension_semantics<parallel>, #tpu.dimension_semantics<arbitrary>], iteration_bounds = array<i64: 1, 1, 1>, scalar_prefetch = 0 : i64, scratch_operands = 1 : i64, tpu.core_type = #tpu.core_type<tc>, window_params = [{transform_indices = @transform_0, window_bounds = array<i64: 16, 256>}, {transform_indices = @transform_1, window_bounds = array<i64: 256, 256>}, {transform_indices = @transform_2, window_bounds = array<i64: 1, 256>}, {transform_indices = @transform_3, window_bounds = array<i64: 16, 256>}]} {
    %c0_i32 = arith.constant 0 : i32
    %0 = arith.cmpi eq, %arg2, %c0_i32 : i32
    %1 = arith.extui %0 : i1 to i32
    %c0_i32_0 = arith.constant 0 : i32
    %2 = arith.cmpi ne, %1, %c0_i32_0 : i32
    scf.if %2 {
      %cst_10 = arith.constant 0.000000e+00 : f32
      %13 = vector.broadcast %cst_10 : f32 to vector<16x256xf32>
      %c0_11 = arith.constant 0 : index
      %c0_12 = arith.constant 0 : index
      %14 = vector.load %arg7[%c0_11, %c0_12] : memref<16x256xf32, #tpu.memory_space<vmem>>, vector<16x256xf32>
      tpu.vector_store %arg7[%c0_11, %c0_12], %13 {strides = array<i32>} : memref<16x256xf32, #tpu.memory_space<vmem>>, vector<16x256xf32>,
    } else {
    }
    %c0 = arith.constant 0 : index
    %c0_1 = arith.constant 0 : index
    %3 = vector.load %arg7[%c0, %c0_1] : memref<16x256xf32, #tpu.memory_space<vmem>>, vector<16x256xf32>
    %c0_2 = arith.constant 0 : index
    %c0_3 = arith.constant 0 : index
    %4 = vector.load %arg3[%c0_2, %c0_3] : memref<16x256xf32, #tpu.memory_space<vmem>>, vector<16x256xf32>
    %5 = arith.truncf %4 : vector<16x256xf32> to vector<16x256xbf16>
    %c0_4 = arith.constant 0 : index
    %c0_5 = arith.constant 0 : index
    %6 = vector.load %arg4[%c0_4, %c0_5] : memref<256x256xbf16, #tpu.memory_space<vmem>>, vector<256x256xbf16>
    %cst = arith.constant dense<0.000000e+00> : vector<16x256xf32>
    %7 = tpu.matmul %5, %6, %cst {dimension_numbers = #tpu.dot_dimension_numbers<[1], [0], [0], [1], [0, 0, 1, 1], [], []>} : vector<16x256xbf16>, vector<256x256xbf16>, vector<16x256xf32> -> vector<16x256xf32>
    %8 = arith.addf %3, %7 : vector<16x256xf32>
    %c0_6 = arith.constant 0 : index
    %c0_7 = arith.constant 0 : index
    %9 = vector.load %arg7[%c0_6, %c0_7] : memref<16x256xf32, #tpu.memory_space<vmem>>, vector<16x256xf32>
    tpu.vector_store %arg7[%c0_6, %c0_7], %8 {strides = array<i32>} : memref<16x256xf32, #tpu.memory_space<vmem>>, vector<16x256xf32>,
    %c0_i32_8 = arith.constant 0 : i32
    %10 = arith.cmpi eq, %arg2, %c0_i32_8 : i32
    %11 = arith.extui %10 : i1 to i32
    %c0_i32_9 = arith.constant 0 : i32
    %12 = arith.cmpi ne, %11, %c0_i32_9 : i32
    scf.if %12 {
      %c0_10 = arith.constant 0 : index
      %c0_11 = arith.constant 0 : index
      %13 = vector.load %arg7[%c0_10, %c0_11] : memref<16x256xf32, #tpu.memory_space<vmem>>, vector<16x256xf32>
      %c0_12 = arith.constant 0 : index
      %c0_13 = arith.constant 0 : index
      %14 = vector.load %arg5[%c0_12, %c0_13] : memref<1x256xf32, #tpu.memory_space<vmem>>, vector<1x256xf32>
      %15 = vector.broadcast %14 : vector<1x256xf32> to vector<16x256xf32>
      %16 = arith.addf %13, %15 : vector<16x256xf32>
      %c0_14 = arith.constant 0 : index
      %c0_15 = arith.constant 0 : index
      %17 = vector.load %arg6[%c0_14, %c0_15] : memref<16x256xf32, #tpu.memory_space<vmem>>, vector<16x256xf32>
      tpu.vector_store %arg6[%c0_14, %c0_15], %16 {strides = array<i32>} : memref<16x256xf32, #tpu.memory_space<vmem>>, vector<16x256xf32>,
    } else {
    }
    return
  }
  func.func @transform_0(%arg0: i32, %arg1: i32, %arg2: i32) -> (i32, i32) {
    %c0_i32 = arith.constant 0 : i32
    return %arg0, %arg2 : i32, i32
  }
  func.func @transform_1(%arg0: i32, %arg1: i32, %arg2: i32) -> (i32, i32) {
    %c0_i32 = arith.constant 0 : i32
    return %arg2, %arg1 : i32, i32
  }
  func.func @transform_2(%arg0: i32, %arg1: i32, %arg2: i32) -> (i32, i32) {
    %c0_i32 = arith.constant 0 : i32
    %c0_i32_0 = arith.constant 0 : i32
    return %c0_i32, %arg1 : i32, i32
  }
  func.func @transform_3(%arg0: i32, %arg1: i32, %arg2: i32) -> (i32, i32) {
    %c0_i32 = arith.constant 0 : i32
    return %arg0, %arg1 : i32, i32
  }
}

module attributes {stable_mosaic.version = 11 : i64} {
  func.func @_add_ln_kernel(%arg0: i32, %arg1: memref<16x256xf32, #tpu.memory_space<vmem>>, %arg2: memref<16x256xf32, #tpu.memory_space<vmem>>, %arg3: memref<1x256xf32, #tpu.memory_space<vmem>>, %arg4: memref<1x256xf32, #tpu.memory_space<vmem>>, %arg5: memref<16x256xf32, #tpu.memory_space<vmem>>) attributes {dimension_semantics = [#tpu.dimension_semantics<parallel>], iteration_bounds = array<i64: 1>, scalar_prefetch = 0 : i64, scratch_operands = 0 : i64, tpu.core_type = #tpu.core_type<tc>, window_params = [{transform_indices = @transform_0, window_bounds = array<i64: 16, 256>}, {transform_indices = @transform_1, window_bounds = array<i64: 16, 256>}, {pipeline_mode = #tpu.pipeline_mode<synchronous>, transform_indices = @transform_2, window_bounds = array<i64: 1, 256>}, {pipeline_mode = #tpu.pipeline_mode<synchronous>, transform_indices = @transform_3, window_bounds = array<i64: 1, 256>}, {transform_indices = @transform_4, window_bounds = array<i64: 16, 256>}]} {
    %c0 = arith.constant 0 : index
    %c0_0 = arith.constant 0 : index
    %0 = vector.load %arg1[%c0, %c0_0] : memref<16x256xf32, #tpu.memory_space<vmem>>, vector<16x256xf32>
    %c0_1 = arith.constant 0 : index
    %c0_2 = arith.constant 0 : index
    %1 = vector.load %arg2[%c0_1, %c0_2] : memref<16x256xf32, #tpu.memory_space<vmem>>, vector<16x256xf32>
    %2 = arith.addf %0, %1 : vector<16x256xf32>
    %cst = arith.constant dense<0.000000e+00> : vector<16xf32>
    %3 = vector.multi_reduction <add>, %2, %cst [1] : vector<16x256xf32> to vector<16xf32>
    %4 = vector.shape_cast %3 : vector<16xf32> to vector<16x1xf32>
    %cst_3 = arith.constant 2.560000e+02 : f32
    %5 = vector.broadcast %cst_3 : f32 to vector<16x1xf32>
    %6 = arith.divf %4, %5 : vector<16x1xf32>
    %7 = vector.broadcast %6 : vector<16x1xf32> to vector<16x256xf32>
    %8 = arith.subf %2, %7 : vector<16x256xf32>
    %9 = arith.mulf %8, %8 : vector<16x256xf32>
    %cst_4 = arith.constant dense<0.000000e+00> : vector<16xf32>
    %10 = vector.multi_reduction <add>, %9, %cst_4 [1] : vector<16x256xf32> to vector<16xf32>
    %11 = vector.shape_cast %10 : vector<16xf32> to vector<16x1xf32>
    %cst_5 = arith.constant 2.560000e+02 : f32
    %12 = vector.broadcast %cst_5 : f32 to vector<16x1xf32>
    %13 = arith.divf %11, %12 : vector<16x1xf32>
    %14 = vector.broadcast %6 : vector<16x1xf32> to vector<16x256xf32>
    %15 = arith.subf %2, %14 : vector<16x256xf32>
    %cst_6 = arith.constant 9.99999974E-6 : f32
    %16 = vector.broadcast %cst_6 : f32 to vector<16x1xf32>
    %17 = arith.addf %13, %16 : vector<16x1xf32>
    %18 = math.rsqrt %17 : vector<16x1xf32>
    %19 = vector.broadcast %18 : vector<16x1xf32> to vector<16x256xf32>
    %20 = arith.mulf %15, %19 : vector<16x256xf32>
    %c0_7 = arith.constant 0 : index
    %c0_8 = arith.constant 0 : index
    %21 = vector.load %arg3[%c0_7, %c0_8] : memref<1x256xf32, #tpu.memory_space<vmem>>, vector<1x256xf32>
    %22 = vector.broadcast %21 : vector<1x256xf32> to vector<16x256xf32>
    %23 = arith.mulf %20, %22 : vector<16x256xf32>
    %c0_9 = arith.constant 0 : index
    %c0_10 = arith.constant 0 : index
    %24 = vector.load %arg4[%c0_9, %c0_10] : memref<1x256xf32, #tpu.memory_space<vmem>>, vector<1x256xf32>
    %25 = vector.broadcast %24 : vector<1x256xf32> to vector<16x256xf32>
    %26 = arith.addf %23, %25 : vector<16x256xf32>
    %c0_11 = arith.constant 0 : index
    %c0_12 = arith.constant 0 : index
    %27 = vector.load %arg5[%c0_11, %c0_12] : memref<16x256xf32, #tpu.memory_space<vmem>>, vector<16x256xf32>
    tpu.vector_store %arg5[%c0_11, %c0_12], %26 {strides = array<i32>} : memref<16x256xf32, #tpu.memory_space<vmem>>, vector<16x256xf32>,
    return
  }
  func.func @transform_0(%arg0: i32) -> (i32, i32) {
    %c0_i32 = arith.constant 0 : i32
    %c0_i32_0 = arith.constant 0 : i32
    return %arg0, %c0_i32 : i32, i32
  }
  func.func @transform_1(%arg0: i32) -> (i32, i32) {
    %c0_i32 = arith.constant 0 : i32
    %c0_i32_0 = arith.constant 0 : i32
    return %arg0, %c0_i32 : i32, i32
  }
  func.func @transform_2(%arg0: i32) -> (i32, i32) {
    %c0_i32 = arith.constant 0 : i32
    %c0_i32_0 = arith.constant 0 : i32
    %c0_i32_1 = arith.constant 0 : i32
    return %c0_i32, %c0_i32_0 : i32, i32
  }
  func.func @transform_3(%arg0: i32) -> (i32, i32) {
    %c0_i32 = arith.constant 0 : i32
    %c0_i32_0 = arith.constant 0 : i32
    %c0_i32_1 = arith.constant 0 : i32
    return %c0_i32, %c0_i32_0 : i32, i32
  }
  func.func @transform_4(%arg0: i32) -> (i32, i32) {
    %c0_i32 = arith.constant 0 : i32
    %c0_i32_0 = arith.constant 0 : i32
    return %arg0, %c0_i32 : i32, i32
  }
}

module attributes {stable_mosaic.version = 11 : i64} {
  func.func @_attn_kernel(%arg0: i32, %arg1: i32, %arg2: i32, %arg3: memref<1x8x256xf32, #tpu.memory_space<vmem>>, %arg4: memref<1x8x512xf32, #tpu.memory_space<vmem>>, %arg5: memref<1x1x8xf32, #tpu.memory_space<vmem>>, %arg6: memref<1x8x256xf32, #tpu.memory_space<vmem>>, %arg7: memref<2x8x1xf32, #tpu.memory_space<vmem>>, %arg8: memref<2x8x1xf32, #tpu.memory_space<vmem>>, %arg9: memref<2x8x128xf32, #tpu.memory_space<vmem>>) attributes {dimension_semantics = [#tpu.dimension_semantics<parallel>, #tpu.dimension_semantics<parallel>, #tpu.dimension_semantics<arbitrary>], iteration_bounds = array<i64: 2, 1, 1>, scalar_prefetch = 0 : i64, scratch_operands = 3 : i64, tpu.core_type = #tpu.core_type<tc>, window_params = [{transform_indices = @transform_0, window_bounds = array<i64: 1, 8, 256>}, {transform_indices = @transform_1, window_bounds = array<i64: 1, 8, 512>}, {transform_indices = @transform_2, window_bounds = array<i64: 1, 1, 8>}, {transform_indices = @transform_3, window_bounds = array<i64: 1, 8, 256>}]} {
    %c0_i32 = arith.constant 0 : i32
    %0 = arith.cmpi eq, %arg2, %c0_i32 : i32
    %1 = arith.extui %0 : i1 to i32
    %c0_i32_0 = arith.constant 0 : i32
    %2 = arith.cmpi ne, %1, %c0_i32_0 : i32
    scf.if %2 {
      %cst_64 = arith.constant -1.000000e+30 : f32
      %100 = vector.broadcast %cst_64 : f32 to vector<2x8x1xf32>
      %c0_65 = arith.constant 0 : index
      %c0_66 = arith.constant 0 : index
      %c0_67 = arith.constant 0 : index
      %101 = vector.load %arg7[%c0_65, %c0_66, %c0_67] : memref<2x8x1xf32, #tpu.memory_space<vmem>>, vector<2x8x1xf32>
      tpu.vector_store %arg7[%c0_65, %c0_66, %c0_67], %100 {strides = array<i32>} : memref<2x8x1xf32, #tpu.memory_space<vmem>>, vector<2x8x1xf32>,
      %cst_68 = arith.constant 0.000000e+00 : f32
      %102 = vector.broadcast %cst_68 : f32 to vector<2x8x1xf32>
      %c0_69 = arith.constant 0 : index
      %c0_70 = arith.constant 0 : index
      %c0_71 = arith.constant 0 : index
      %103 = vector.load %arg8[%c0_69, %c0_70, %c0_71] : memref<2x8x1xf32, #tpu.memory_space<vmem>>, vector<2x8x1xf32>
      tpu.vector_store %arg8[%c0_69, %c0_70, %c0_71], %102 {strides = array<i32>} : memref<2x8x1xf32, #tpu.memory_space<vmem>>, vector<2x8x1xf32>,
      %cst_72 = arith.constant 0.000000e+00 : f32
      %104 = vector.broadcast %cst_72 : f32 to vector<2x8x128xf32>
      %c0_73 = arith.constant 0 : index
      %c0_74 = arith.constant 0 : index
      %c0_75 = arith.constant 0 : index
      %105 = vector.load %arg9[%c0_73, %c0_74, %c0_75] : memref<2x8x128xf32, #tpu.memory_space<vmem>>, vector<2x8x128xf32>
      tpu.vector_store %arg9[%c0_73, %c0_74, %c0_75], %104 {strides = array<i32>} : memref<2x8x128xf32, #tpu.memory_space<vmem>>, vector<2x8x128xf32>,
    } else {
    }
    %c0 = arith.constant 0 : index
    %c0_1 = arith.constant 0 : index
    %c0_2 = arith.constant 0 : index
    %3 = vector.load %arg5[%c0, %c0_1, %c0_2] : memref<1x1x8xf32, #tpu.memory_space<vmem>>, vector<1x1x8xf32>
    %4 = vector.shape_cast %3 : vector<1x1x8xf32> to vector<1x8xf32>
    %c0_3 = arith.constant 0 : index
    %c0_4 = arith.constant 0 : index
    %c0_5 = arith.constant 0 : index
    %5 = vector.load %arg3[%c0_3, %c0_4, %c0_5] : memref<1x8x256xf32, #tpu.memory_space<vmem>>, vector<1x8x128xf32>
    %6 = vector.shape_cast %5 : vector<1x8x128xf32> to vector<8x128xf32>
    %7 = arith.truncf %6 : vector<8x128xf32> to vector<8x128xbf16>
    %c0_6 = arith.constant 0 : index
    %c0_7 = arith.constant 0 : index
    %c0_8 = arith.constant 0 : index
    %8 = vector.load %arg4[%c0_6, %c0_7, %c0_8] : memref<1x8x512xf32, #tpu.memory_space<vmem>>, vector<1x8x128xf32>
    %9 = vector.shape_cast %8 : vector<1x8x128xf32> to vector<8x128xf32>
    %10 = arith.truncf %9 : vector<8x128xf32> to vector<8x128xbf16>
    %c0_9 = arith.constant 0 : index
    %c0_10 = arith.constant 0 : index
    %c256 = arith.constant 256 : index
    %11 = vector.load %arg4[%c0_9, %c0_10, %c256] : memref<1x8x512xf32, #tpu.memory_space<vmem>>, vector<1x8x128xf32>
    %12 = vector.shape_cast %11 : vector<1x8x128xf32> to vector<8x128xf32>
    %13 = arith.truncf %12 : vector<8x128xf32> to vector<8x128xbf16>
    %cst = arith.constant dense<0.000000e+00> : vector<8x8xf32>
    %14 = tpu.matmul %7, %10, %cst {dimension_numbers = #tpu.dot_dimension_numbers<[1], [1], [0], [0], [0, 0, 1, 0], [], []>} : vector<8x128xbf16>, vector<8x128xbf16>, vector<8x8xf32> -> vector<8x8xf32>
    %cst_11 = arith.constant 0.0883883461 : f32
    %15 = vector.broadcast %cst_11 : f32 to vector<8x8xf32>
    %16 = arith.mulf %14, %15 : vector<8x8xf32>
    %17 = vector.broadcast %4 : vector<1x8xf32> to vector<8x8xf32>
    %18 = arith.addf %16, %17 : vector<8x8xf32>
    %c0_12 = arith.constant 0 : index
    %c0_13 = arith.constant 0 : index
    %c0_14 = arith.constant 0 : index
    %19 = vector.load %arg7[%c0_12, %c0_13, %c0_14] : memref<2x8x1xf32, #tpu.memory_space<vmem>>, vector<1x8x1xf32>
    %20 = vector.shape_cast %19 : vector<1x8x1xf32> to vector<8x1xf32>
    %cst_15 = arith.constant dense<0xFF800000> : vector<8xf32>
    %21 = vector.multi_reduction <maximumf>, %18, %cst_15 [1] : vector<8x8xf32> to vector<8xf32>
    %22 = vector.shape_cast %21 : vector<8xf32> to vector<8x1xf32>
    %23 = arith.maximumf %20, %22 : vector<8x1xf32>
    %24 = arith.subf %20, %23 : vector<8x1xf32>
    %25 = math.exp %24 : vector<8x1xf32>
    %26 = vector.broadcast %23 : vector<8x1xf32> to vector<8x8xf32>
    %27 = arith.subf %18, %26 : vector<8x8xf32>
    %28 = math.exp %27 : vector<8x8xf32>
    %c0_16 = arith.constant 0 : index
    %c0_17 = arith.constant 0 : index
    %c0_18 = arith.constant 0 : index
    %29 = vector.load %arg8[%c0_16, %c0_17, %c0_18] : memref<2x8x1xf32, #tpu.memory_space<vmem>>, vector<1x8x1xf32>
    %30 = vector.shape_cast %29 : vector<1x8x1xf32> to vector<8x1xf32>
    %31 = arith.mulf %25, %30 : vector<8x1xf32>
    %cst_19 = arith.constant dense<0.000000e+00> : vector<8xf32>
    %32 = vector.multi_reduction <add>, %28, %cst_19 [1] : vector<8x8xf32> to vector<8xf32>
    %33 = vector.shape_cast %32 : vector<8xf32> to vector<8x1xf32>
    %34 = arith.addf %31, %33 : vector<8x1xf32>
    %c0_20 = arith.constant 0 : index
    %c0_21 = arith.constant 0 : index
    %c0_22 = arith.constant 0 : index
    %35 = vector.load %arg8[%c0_20, %c0_21, %c0_22] : memref<2x8x1xf32, #tpu.memory_space<vmem>>, vector<1x8x1xf32>
    %36 = vector.shape_cast %35 : vector<1x8x1xf32> to vector<8x1xf32>
    %37 = vector.shape_cast %34 : vector<8x1xf32> to vector<1x8x1xf32>
    tpu.vector_store %arg8[%c0_20, %c0_21, %c0_22], %37 {strides = array<i32>} : memref<2x8x1xf32, #tpu.memory_space<vmem>>, vector<1x8x1xf32>,
    %c0_23 = arith.constant 0 : index
    %c0_24 = arith.constant 0 : index
    %c0_25 = arith.constant 0 : index
    %38 = vector.load %arg9[%c0_23, %c0_24, %c0_25] : memref<2x8x128xf32, #tpu.memory_space<vmem>>, vector<1x8x128xf32>
    %39 = vector.shape_cast %38 : vector<1x8x128xf32> to vector<8x128xf32>
    %40 = vector.broadcast %25 : vector<8x1xf32> to vector<8x128xf32>
    %41 = arith.mulf %40, %39 : vector<8x128xf32>
    %42 = arith.truncf %28 : vector<8x8xf32> to vector<8x8xbf16>
    %cst_26 = arith.constant dense<0.000000e+00> : vector<8x128xf32>
    %43 = tpu.matmul %42, %13, %cst_26 {dimension_numbers = #tpu.dot_dimension_numbers<[1], [0], [0], [1], [0, 0, 1, 1], [], []>} : vector<8x8xbf16>, vector<8x128xbf16>, vector<8x128xf32> -> vector<8x128xf32>
    %44 = arith.addf %41, %43 : vector<8x128xf32>
    %c0_27 = arith.constant 0 : index
    %c0_28 = arith.constant 0 : index
    %c0_29 = arith.constant 0 : index
    %45 = vector.load %arg9[%c0_27, %c0_28, %c0_29] : memref<2x8x128xf32, #tpu.memory_space<vmem>>, vector<1x8x128xf32>
    %46 = vector.shape_cast %45 : vector<1x8x128xf32> to vector<8x128xf32>
    %47 = vector.shape_cast %44 : vector<8x128xf32> to vector<1x8x128xf32>
    tpu.vector_store %arg9[%c0_27, %c0_28, %c0_29], %47 {strides = array<i32>} : memref<2x8x128xf32, #tpu.memory_space<vmem>>, vector<1x8x128xf32>,
    %c0_30 = arith.constant 0 : index
    %c0_31 = arith.constant 0 : index
    %c0_32 = arith.constant 0 : index
    %48 = vector.load %arg7[%c0_30, %c0_31, %c0_32] : memref<2x8x1xf32, #tpu.memory_space<vmem>>, vector<1x8x1xf32>
    %49 = vector.shape_cast %48 : vector<1x8x1xf32> to vector<8x1xf32>
    %50 = vector.shape_cast %23 : vector<8x1xf32> to vector<1x8x1xf32>
    tpu.vector_store %arg7[%c0_30, %c0_31, %c0_32], %50 {strides = array<i32>} : memref<2x8x1xf32, #tpu.memory_space<vmem>>, vector<1x8x1xf32>,
    %c0_33 = arith.constant 0 : index
    %c0_34 = arith.constant 0 : index
    %c128 = arith.constant 128 : index
    %51 = vector.load %arg3[%c0_33, %c0_34, %c128] : memref<1x8x256xf32, #tpu.memory_space<vmem>>, vector<1x8x128xf32>
    %52 = vector.shape_cast %51 : vector<1x8x128xf32> to vector<8x128xf32>
    %53 = arith.truncf %52 : vector<8x128xf32> to vector<8x128xbf16>
    %c0_35 = arith.constant 0 : index
    %c0_36 = arith.constant 0 : index
    %c128_37 = arith.constant 128 : index
    %54 = vector.load %arg4[%c0_35, %c0_36, %c128_37] : memref<1x8x512xf32, #tpu.memory_space<vmem>>, vector<1x8x128xf32>
    %55 = vector.shape_cast %54 : vector<1x8x128xf32> to vector<8x128xf32>
    %56 = arith.truncf %55 : vector<8x128xf32> to vector<8x128xbf16>
    %c0_38 = arith.constant 0 : index
    %c0_39 = arith.constant 0 : index
    %c384 = arith.constant 384 : index
    %57 = vector.load %arg4[%c0_38, %c0_39, %c384] : memref<1x8x512xf32, #tpu.memory_space<vmem>>, vector<1x8x128xf32>
    %58 = vector.shape_cast %57 : vector<1x8x128xf32> to vector<8x128xf32>
    %59 = arith.truncf %58 : vector<8x128xf32> to vector<8x128xbf16>
    %cst_40 = arith.constant dense<0.000000e+00> : vector<8x8xf32>
    %60 = tpu.matmul %53, %56, %cst_40 {dimension_numbers = #tpu.dot_dimension_numbers<[1], [1], [0], [0], [0, 0, 1, 0], [], []>} : vector<8x128xbf16>, vector<8x128xbf16>, vector<8x8xf32> -> vector<8x8xf32>
    %cst_41 = arith.constant 0.0883883461 : f32
    %61 = vector.broadcast %cst_41 : f32 to vector<8x8xf32>
    %62 = arith.mulf %60, %61 : vector<8x8xf32>
    %63 = vector.broadcast %4 : vector<1x8xf32> to vector<8x8xf32>
    %64 = arith.addf %62, %63 : vector<8x8xf32>
    %c1 = arith.constant 1 : index
    %c0_42 = arith.constant 0 : index
    %c0_43 = arith.constant 0 : index
    %65 = vector.load %arg7[%c1, %c0_42, %c0_43] : memref<2x8x1xf32, #tpu.memory_space<vmem>>, vector<1x8x1xf32>
    %66 = vector.shape_cast %65 : vector<1x8x1xf32> to vector<8x1xf32>
    %cst_44 = arith.constant dense<0xFF800000> : vector<8xf32>
    %67 = vector.multi_reduction <maximumf>, %64, %cst_44 [1] : vector<8x8xf32> to vector<8xf32>
    %68 = vector.shape_cast %67 : vector<8xf32> to vector<8x1xf32>
    %69 = arith.maximumf %66, %68 : vector<8x1xf32>
    %70 = arith.subf %66, %69 : vector<8x1xf32>
    %71 = math.exp %70 : vector<8x1xf32>
    %72 = vector.broadcast %69 : vector<8x1xf32> to vector<8x8xf32>
    %73 = arith.subf %64, %72 : vector<8x8xf32>
    %74 = math.exp %73 : vector<8x8xf32>
    %c1_45 = arith.constant 1 : index
    %c0_46 = arith.constant 0 : index
    %c0_47 = arith.constant 0 : index
    %75 = vector.load %arg8[%c1_45, %c0_46, %c0_47] : memref<2x8x1xf32, #tpu.memory_space<vmem>>, vector<1x8x1xf32>
    %76 = vector.shape_cast %75 : vector<1x8x1xf32> to vector<8x1xf32>
    %77 = arith.mulf %71, %76 : vector<8x1xf32>
    %cst_48 = arith.constant dense<0.000000e+00> : vector<8xf32>
    %78 = vector.multi_reduction <add>, %74, %cst_48 [1] : vector<8x8xf32> to vector<8xf32>
    %79 = vector.shape_cast %78 : vector<8xf32> to vector<8x1xf32>
    %80 = arith.addf %77, %79 : vector<8x1xf32>
    %c1_49 = arith.constant 1 : index
    %c0_50 = arith.constant 0 : index
    %c0_51 = arith.constant 0 : index
    %81 = vector.load %arg8[%c1_49, %c0_50, %c0_51] : memref<2x8x1xf32, #tpu.memory_space<vmem>>, vector<1x8x1xf32>
    %82 = vector.shape_cast %81 : vector<1x8x1xf32> to vector<8x1xf32>
    %83 = vector.shape_cast %80 : vector<8x1xf32> to vector<1x8x1xf32>
    tpu.vector_store %arg8[%c1_49, %c0_50, %c0_51], %83 {strides = array<i32>} : memref<2x8x1xf32, #tpu.memory_space<vmem>>, vector<1x8x1xf32>,
    %c1_52 = arith.constant 1 : index
    %c0_53 = arith.constant 0 : index
    %c0_54 = arith.constant 0 : index
    %84 = vector.load %arg9[%c1_52, %c0_53, %c0_54] : memref<2x8x128xf32, #tpu.memory_space<vmem>>, vector<1x8x128xf32>
    %85 = vector.shape_cast %84 : vector<1x8x128xf32> to vector<8x128xf32>
    %86 = vector.broadcast %71 : vector<8x1xf32> to vector<8x128xf32>
    %87 = arith.mulf %86, %85 : vector<8x128xf32>
    %88 = arith.truncf %74 : vector<8x8xf32> to vector<8x8xbf16>
    %cst_55 = arith.constant dense<0.000000e+00> : vector<8x128xf32>
    %89 = tpu.matmul %88, %59, %cst_55 {dimension_numbers = #tpu.dot_dimension_numbers<[1], [0], [0], [1], [0, 0, 1, 1], [], []>} : vector<8x8xbf16>, vector<8x128xbf16>, vector<8x128xf32> -> vector<8x128xf32>
    %90 = arith.addf %87, %89 : vector<8x128xf32>
    %c1_56 = arith.constant 1 : index
    %c0_57 = arith.constant 0 : index
    %c0_58 = arith.constant 0 : index
    %91 = vector.load %arg9[%c1_56, %c0_57, %c0_58] : memref<2x8x128xf32, #tpu.memory_space<vmem>>, vector<1x8x128xf32>
    %92 = vector.shape_cast %91 : vector<1x8x128xf32> to vector<8x128xf32>
    %93 = vector.shape_cast %90 : vector<8x128xf32> to vector<1x8x128xf32>
    tpu.vector_store %arg9[%c1_56, %c0_57, %c0_58], %93 {strides = array<i32>} : memref<2x8x128xf32, #tpu.memory_space<vmem>>, vector<1x8x128xf32>,
    %c1_59 = arith.constant 1 : index
    %c0_60 = arith.constant 0 : index
    %c0_61 = arith.constant 0 : index
    %94 = vector.load %arg7[%c1_59, %c0_60, %c0_61] : memref<2x8x1xf32, #tpu.memory_space<vmem>>, vector<1x8x1xf32>
    %95 = vector.shape_cast %94 : vector<1x8x1xf32> to vector<8x1xf32>
    %96 = vector.shape_cast %69 : vector<8x1xf32> to vector<1x8x1xf32>
    tpu.vector_store %arg7[%c1_59, %c0_60, %c0_61], %96 {strides = array<i32>} : memref<2x8x1xf32, #tpu.memory_space<vmem>>, vector<1x8x1xf32>,
    %c0_i32_62 = arith.constant 0 : i32
    %97 = arith.cmpi eq, %arg2, %c0_i32_62 : i32
    %98 = arith.extui %97 : i1 to i32
    %c0_i32_63 = arith.constant 0 : i32
    %99 = arith.cmpi ne, %98, %c0_i32_63 : i32
    scf.if %99 {
      %c0_64 = arith.constant 0 : index
      %c0_65 = arith.constant 0 : index
      %c0_66 = arith.constant 0 : index
      %100 = vector.load %arg8[%c0_64, %c0_65, %c0_66] : memref<2x8x1xf32, #tpu.memory_space<vmem>>, vector<1x8x1xf32>
      %101 = vector.shape_cast %100 : vector<1x8x1xf32> to vector<8x1xf32>
      %102 = tpu.reciprocal %101 {approx = true} : vector<8x1xf32> -> vector<8x1xf32>
      %c0_67 = arith.constant 0 : index
      %c0_68 = arith.constant 0 : index
      %c0_69 = arith.constant 0 : index
      %103 = vector.load %arg9[%c0_67, %c0_68, %c0_69] : memref<2x8x128xf32, #tpu.memory_space<vmem>>, vector<1x8x128xf32>
      %104 = vector.shape_cast %103 : vector<1x8x128xf32> to vector<8x128xf32>
      %105 = vector.broadcast %102 : vector<8x1xf32> to vector<8x128xf32>
      %106 = arith.mulf %104, %105 : vector<8x128xf32>
      %c0_70 = arith.constant 0 : index
      %c0_71 = arith.constant 0 : index
      %c0_72 = arith.constant 0 : index
      %107 = vector.load %arg6[%c0_70, %c0_71, %c0_72] : memref<1x8x256xf32, #tpu.memory_space<vmem>>, vector<1x8x128xf32>
      %108 = vector.shape_cast %107 : vector<1x8x128xf32> to vector<8x128xf32>
      %109 = vector.shape_cast %106 : vector<8x128xf32> to vector<1x8x128xf32>
      tpu.vector_store %arg6[%c0_70, %c0_71, %c0_72], %109 {strides = array<i32>} : memref<1x8x256xf32, #tpu.memory_space<vmem>>, vector<1x8x128xf32>,
      %c1_73 = arith.constant 1 : index
      %c0_74 = arith.constant 0 : index
      %c0_75 = arith.constant 0 : index
      %110 = vector.load %arg8[%c1_73, %c0_74, %c0_75] : memref<2x8x1xf32, #tpu.memory_space<vmem>>, vector<1x8x1xf32>
      %111 = vector.shape_cast %110 : vector<1x8x1xf32> to vector<8x1xf32>
      %112 = tpu.reciprocal %111 {approx = true} : vector<8x1xf32> -> vector<8x1xf32>
      %c1_76 = arith.constant 1 : index
      %c0_77 = arith.constant 0 : index
      %c0_78 = arith.constant 0 : index
      %113 = vector.load %arg9[%c1_76, %c0_77, %c0_78] : memref<2x8x128xf32, #tpu.memory_space<vmem>>, vector<1x8x128xf32>
      %114 = vector.shape_cast %113 : vector<1x8x128xf32> to vector<8x128xf32>
      %115 = vector.broadcast %112 : vector<8x1xf32> to vector<8x128xf32>
      %116 = arith.mulf %114, %115 : vector<8x128xf32>
      %c0_79 = arith.constant 0 : index
      %c0_80 = arith.constant 0 : index
      %c128_81 = arith.constant 128 : index
      %117 = vector.load %arg6[%c0_79, %c0_80, %c128_81] : memref<1x8x256xf32, #tpu.memory_space<vmem>>, vector<1x8x128xf32>
      %118 = vector.shape_cast %117 : vector<1x8x128xf32> to vector<8x128xf32>
      %119 = vector.shape_cast %116 : vector<8x128xf32> to vector<1x8x128xf32>
      tpu.vector_store %arg6[%c0_79, %c0_80, %c128_81], %119 {strides = array<i32>} : memref<1x8x256xf32, #tpu.memory_space<vmem>>, vector<1x8x128xf32>,
    } else {
    }
    return
  }
  func.func @transform_0(%arg0: i32, %arg1: i32, %arg2: i32) -> (i32, i32, i32) {
    %c0_i32 = arith.constant 0 : i32
    %c0_i32_0 = arith.constant 0 : i32
    return %arg0, %arg1, %c0_i32 : i32, i32, i32
  }
  func.func @transform_1(%arg0: i32, %arg1: i32, %arg2: i32) -> (i32, i32, i32) {
    %c0_i32 = arith.constant 0 : i32
    %c0_i32_0 = arith.constant 0 : i32
    return %arg0, %arg2, %c0_i32 : i32, i32, i32
  }
  func.func @transform_2(%arg0: i32, %arg1: i32, %arg2: i32) -> (i32, i32, i32) {
    %c0_i32 = arith.constant 0 : i32
    %c0_i32_0 = arith.constant 0 : i32
    return %arg0, %c0_i32, %arg2 : i32, i32, i32
  }
  func.func @transform_3(%arg0: i32, %arg1: i32, %arg2: i32) -> (i32, i32, i32) {
    %c0_i32 = arith.constant 0 : i32
    %c0_i32_0 = arith.constant 0 : i32
    return %arg0, %arg1, %c0_i32 : i32, i32, i32
  }
}

module attributes {stable_mosaic.version = 11 : i64} {
  func.func @_ffn_kernel(%arg0: i32, %arg1: i32, %arg2: memref<16x256xf32, #tpu.memory_space<vmem>>, %arg3: memref<256x512xbf16, #tpu.memory_space<vmem>>, %arg4: memref<1x512xf32, #tpu.memory_space<vmem>>, %arg5: memref<512x256xbf16, #tpu.memory_space<vmem>>, %arg6: memref<1x256xf32, #tpu.memory_space<vmem>>, %arg7: memref<16x256xf32, #tpu.memory_space<vmem>>, %arg8: memref<16x256xf32, #tpu.memory_space<vmem>>) attributes {dimension_semantics = [#tpu.dimension_semantics<parallel>, #tpu.dimension_semantics<arbitrary>], iteration_bounds = array<i64: 1, 1>, scalar_prefetch = 0 : i64, scratch_operands = 1 : i64, tpu.core_type = #tpu.core_type<tc>, window_params = [{transform_indices = @transform_0, window_bounds = array<i64: 16, 256>}, {transform_indices = @transform_1, window_bounds = array<i64: 256, 512>}, {transform_indices = @transform_2, window_bounds = array<i64: 1, 512>}, {transform_indices = @transform_3, window_bounds = array<i64: 512, 256>}, {pipeline_mode = #tpu.pipeline_mode<synchronous>, transform_indices = @transform_4, window_bounds = array<i64: 1, 256>}, {transform_indices = @transform_5, window_bounds = array<i64: 16, 256>}]} {
    %c0_i32 = arith.constant 0 : i32
    %0 = arith.cmpi eq, %arg1, %c0_i32 : i32
    %1 = arith.extui %0 : i1 to i32
    %c0_i32_0 = arith.constant 0 : i32
    %2 = arith.cmpi ne, %1, %c0_i32_0 : i32
    scf.if %2 {
      %cst_16 = arith.constant 0.000000e+00 : f32
      %21 = vector.broadcast %cst_16 : f32 to vector<16x256xf32>
      %c0_17 = arith.constant 0 : index
      %c0_18 = arith.constant 0 : index
      %22 = vector.load %arg8[%c0_17, %c0_18] : memref<16x256xf32, #tpu.memory_space<vmem>>, vector<16x256xf32>
      tpu.vector_store %arg8[%c0_17, %c0_18], %21 {strides = array<i32>} : memref<16x256xf32, #tpu.memory_space<vmem>>, vector<16x256xf32>,
    } else {
    }
    %c0 = arith.constant 0 : index
    %c0_1 = arith.constant 0 : index
    %3 = vector.load %arg2[%c0, %c0_1] : memref<16x256xf32, #tpu.memory_space<vmem>>, vector<16x256xf32>
    %4 = arith.truncf %3 : vector<16x256xf32> to vector<16x256xbf16>
    %c0_2 = arith.constant 0 : index
    %c0_3 = arith.constant 0 : index
    %5 = vector.load %arg3[%c0_2, %c0_3] : memref<256x512xbf16, #tpu.memory_space<vmem>>, vector<256x512xbf16>
    %cst = arith.constant dense<0.000000e+00> : vector<16x512xf32>
    %6 = tpu.matmul %4, %5, %cst {dimension_numbers = #tpu.dot_dimension_numbers<[1], [0], [0], [1], [0, 0, 1, 1], [], []>} : vector<16x256xbf16>, vector<256x512xbf16>, vector<16x512xf32> -> vector<16x512xf32>
    %c0_4 = arith.constant 0 : index
    %c0_5 = arith.constant 0 : index
    %7 = vector.load %arg4[%c0_4, %c0_5] : memref<1x512xf32, #tpu.memory_space<vmem>>, vector<1x512xf32>
    %8 = vector.broadcast %7 : vector<1x512xf32> to vector<16x512xf32>
    %9 = arith.addf %6, %8 : vector<16x512xf32>
    %cst_6 = arith.constant 0.000000e+00 : f32
    %10 = vector.broadcast %cst_6 : f32 to vector<16x512xf32>
    %11 = arith.maximumf %9, %10 : vector<16x512xf32>
    %c0_7 = arith.constant 0 : index
    %c0_8 = arith.constant 0 : index
    %12 = vector.load %arg8[%c0_7, %c0_8] : memref<16x256xf32, #tpu.memory_space<vmem>>, vector<16x256xf32>
    %13 = arith.truncf %11 : vector<16x512xf32> to vector<16x512xbf16>
    %c0_9 = arith.constant 0 : index
    %c0_10 = arith.constant 0 : index
    %14 = vector.load %arg5[%c0_9, %c0_10] : memref<512x256xbf16, #tpu.memory_space<vmem>>, vector<512x256xbf16>
    %cst_11 = arith.constant dense<0.000000e+00> : vector<16x256xf32>
    %15 = tpu.matmul %13, %14, %cst_11 {dimension_numbers = #tpu.dot_dimension_numbers<[1], [0], [0], [1], [0, 0, 1, 1], [], []>} : vector<16x512xbf16>, vector<512x256xbf16>, vector<16x256xf32> -> vector<16x256xf32>
    %16 = arith.addf %12, %15 : vector<16x256xf32>
    %c0_12 = arith.constant 0 : index
    %c0_13 = arith.constant 0 : index
    %17 = vector.load %arg8[%c0_12, %c0_13] : memref<16x256xf32, #tpu.memory_space<vmem>>, vector<16x256xf32>
    tpu.vector_store %arg8[%c0_12, %c0_13], %16 {strides = array<i32>} : memref<16x256xf32, #tpu.memory_space<vmem>>, vector<16x256xf32>,
    %c0_i32_14 = arith.constant 0 : i32
    %18 = arith.cmpi eq, %arg1, %c0_i32_14 : i32
    %19 = arith.extui %18 : i1 to i32
    %c0_i32_15 = arith.constant 0 : i32
    %20 = arith.cmpi ne, %19, %c0_i32_15 : i32
    scf.if %20 {
      %c0_16 = arith.constant 0 : index
      %c0_17 = arith.constant 0 : index
      %21 = vector.load %arg8[%c0_16, %c0_17] : memref<16x256xf32, #tpu.memory_space<vmem>>, vector<16x256xf32>
      %c0_18 = arith.constant 0 : index
      %c0_19 = arith.constant 0 : index
      %22 = vector.load %arg6[%c0_18, %c0_19] : memref<1x256xf32, #tpu.memory_space<vmem>>, vector<1x256xf32>
      %23 = vector.broadcast %22 : vector<1x256xf32> to vector<16x256xf32>
      %24 = arith.addf %21, %23 : vector<16x256xf32>
      %c0_20 = arith.constant 0 : index
      %c0_21 = arith.constant 0 : index
      %25 = vector.load %arg7[%c0_20, %c0_21] : memref<16x256xf32, #tpu.memory_space<vmem>>, vector<16x256xf32>
      tpu.vector_store %arg7[%c0_20, %c0_21], %24 {strides = array<i32>} : memref<16x256xf32, #tpu.memory_space<vmem>>, vector<16x256xf32>,
    } else {
    }
    return
  }
  func.func @transform_0(%arg0: i32, %arg1: i32) -> (i32, i32) {
    %c0_i32 = arith.constant 0 : i32
    %c0_i32_0 = arith.constant 0 : i32
    return %arg0, %c0_i32 : i32, i32
  }
  func.func @transform_1(%arg0: i32, %arg1: i32) -> (i32, i32) {
    %c0_i32 = arith.constant 0 : i32
    %c0_i32_0 = arith.constant 0 : i32
    return %c0_i32, %arg1 : i32, i32
  }
  func.func @transform_2(%arg0: i32, %arg1: i32) -> (i32, i32) {
    %c0_i32 = arith.constant 0 : i32
    %c0_i32_0 = arith.constant 0 : i32
    return %c0_i32, %arg1 : i32, i32
  }
  func.func @transform_3(%arg0: i32, %arg1: i32) -> (i32, i32) {
    %c0_i32 = arith.constant 0 : i32
    %c0_i32_0 = arith.constant 0 : i32
    return %arg1, %c0_i32 : i32, i32
  }
  func.func @transform_4(%arg0: i32, %arg1: i32) -> (i32, i32) {
    %c0_i32 = arith.constant 0 : i32
    %c0_i32_0 = arith.constant 0 : i32
    %c0_i32_1 = arith.constant 0 : i32
    return %c0_i32, %c0_i32_0 : i32, i32
  }
  func.func @transform_5(%arg0: i32, %arg1: i32) -> (i32, i32) {
    %c0_i32 = arith.constant 0 : i32
    %c0_i32_0 = arith.constant 0 : i32
    return %arg0, %c0_i32 : i32, i32
  }
}

module attributes {stable_mosaic.version = 11 : i64} {
  func.func @_linear_kernel(%arg0: i32, %arg1: i32, %arg2: i32, %arg3: memref<16x256xf32, #tpu.memory_space<vmem>>, %arg4: memref<256x16xbf16, #tpu.memory_space<vmem>>, %arg5: memref<1x16xf32, #tpu.memory_space<vmem>>, %arg6: memref<16x16xf32, #tpu.memory_space<vmem>>, %arg7: memref<16x16xf32, #tpu.memory_space<vmem>>) attributes {dimension_semantics = [#tpu.dimension_semantics<parallel>, #tpu.dimension_semantics<parallel>, #tpu.dimension_semantics<arbitrary>], iteration_bounds = array<i64: 1, 1, 1>, scalar_prefetch = 0 : i64, scratch_operands = 1 : i64, tpu.core_type = #tpu.core_type<tc>, window_params = [{transform_indices = @transform_0, window_bounds = array<i64: 16, 256>}, {transform_indices = @transform_1, window_bounds = array<i64: 256, 16>}, {transform_indices = @transform_2, window_bounds = array<i64: 1, 16>}, {transform_indices = @transform_3, window_bounds = array<i64: 16, 16>}]} {
    %c0_i32 = arith.constant 0 : i32
    %0 = arith.cmpi eq, %arg2, %c0_i32 : i32
    %1 = arith.extui %0 : i1 to i32
    %c0_i32_0 = arith.constant 0 : i32
    %2 = arith.cmpi ne, %1, %c0_i32_0 : i32
    scf.if %2 {
      %cst_10 = arith.constant 0.000000e+00 : f32
      %13 = vector.broadcast %cst_10 : f32 to vector<16x16xf32>
      %c0_11 = arith.constant 0 : index
      %c0_12 = arith.constant 0 : index
      %14 = vector.load %arg7[%c0_11, %c0_12] : memref<16x16xf32, #tpu.memory_space<vmem>>, vector<16x16xf32>
      tpu.vector_store %arg7[%c0_11, %c0_12], %13 {strides = array<i32>} : memref<16x16xf32, #tpu.memory_space<vmem>>, vector<16x16xf32>,
    } else {
    }
    %c0 = arith.constant 0 : index
    %c0_1 = arith.constant 0 : index
    %3 = vector.load %arg7[%c0, %c0_1] : memref<16x16xf32, #tpu.memory_space<vmem>>, vector<16x16xf32>
    %c0_2 = arith.constant 0 : index
    %c0_3 = arith.constant 0 : index
    %4 = vector.load %arg3[%c0_2, %c0_3] : memref<16x256xf32, #tpu.memory_space<vmem>>, vector<16x256xf32>
    %5 = arith.truncf %4 : vector<16x256xf32> to vector<16x256xbf16>
    %c0_4 = arith.constant 0 : index
    %c0_5 = arith.constant 0 : index
    %6 = vector.load %arg4[%c0_4, %c0_5] : memref<256x16xbf16, #tpu.memory_space<vmem>>, vector<256x16xbf16>
    %cst = arith.constant dense<0.000000e+00> : vector<16x16xf32>
    %7 = tpu.matmul %5, %6, %cst {dimension_numbers = #tpu.dot_dimension_numbers<[1], [0], [0], [1], [0, 0, 1, 1], [], []>} : vector<16x256xbf16>, vector<256x16xbf16>, vector<16x16xf32> -> vector<16x16xf32>
    %8 = arith.addf %3, %7 : vector<16x16xf32>
    %c0_6 = arith.constant 0 : index
    %c0_7 = arith.constant 0 : index
    %9 = vector.load %arg7[%c0_6, %c0_7] : memref<16x16xf32, #tpu.memory_space<vmem>>, vector<16x16xf32>
    tpu.vector_store %arg7[%c0_6, %c0_7], %8 {strides = array<i32>} : memref<16x16xf32, #tpu.memory_space<vmem>>, vector<16x16xf32>,
    %c0_i32_8 = arith.constant 0 : i32
    %10 = arith.cmpi eq, %arg2, %c0_i32_8 : i32
    %11 = arith.extui %10 : i1 to i32
    %c0_i32_9 = arith.constant 0 : i32
    %12 = arith.cmpi ne, %11, %c0_i32_9 : i32
    scf.if %12 {
      %c0_10 = arith.constant 0 : index
      %c0_11 = arith.constant 0 : index
      %13 = vector.load %arg7[%c0_10, %c0_11] : memref<16x16xf32, #tpu.memory_space<vmem>>, vector<16x16xf32>
      %c0_12 = arith.constant 0 : index
      %c0_13 = arith.constant 0 : index
      %14 = vector.load %arg5[%c0_12, %c0_13] : memref<1x16xf32, #tpu.memory_space<vmem>>, vector<1x16xf32>
      %15 = vector.broadcast %14 : vector<1x16xf32> to vector<16x16xf32>
      %16 = arith.addf %13, %15 : vector<16x16xf32>
      %c0_14 = arith.constant 0 : index
      %c0_15 = arith.constant 0 : index
      %17 = vector.load %arg6[%c0_14, %c0_15] : memref<16x16xf32, #tpu.memory_space<vmem>>, vector<16x16xf32>
      tpu.vector_store %arg6[%c0_14, %c0_15], %16 {strides = array<i32>} : memref<16x16xf32, #tpu.memory_space<vmem>>, vector<16x16xf32>,
    } else {
    }
    return
  }
  func.func @transform_0(%arg0: i32, %arg1: i32, %arg2: i32) -> (i32, i32) {
    %c0_i32 = arith.constant 0 : i32
    return %arg0, %arg2 : i32, i32
  }
  func.func @transform_1(%arg0: i32, %arg1: i32, %arg2: i32) -> (i32, i32) {
    %c0_i32 = arith.constant 0 : i32
    return %arg2, %arg1 : i32, i32
  }
  func.func @transform_2(%arg0: i32, %arg1: i32, %arg2: i32) -> (i32, i32) {
    %c0_i32 = arith.constant 0 : i32
    %c0_i32_0 = arith.constant 0 : i32
    return %c0_i32, %arg1 : i32, i32
  }
  func.func @transform_3(%arg0: i32, %arg1: i32, %arg2: i32) -> (i32, i32) {
    %c0_i32 = arith.constant 0 : i32
    return %arg0, %arg1 : i32, i32
  }
}

</mosaic_0001>

<llo_original>
// kernel: transformer_forward.57
$region0: #{transformer_forward.57}
  #allocation0 [shape = 'u32[]', space=smem, size = 0x4, offset = 0x4, fixed_abs, tag = 'smem constant byte address 0x4 - core index']
  #allocation1 [shape = 'u32[144,128]{1,0:T(1,128)}', space=vmem, size = 0x12000, scoped, tag = 'internal scratch']
  %s0 = inlined_call_operand.vmem [shape: f32[16,256], index: 0, kind: input, shape index: {}]
  %s1 = inlined_call_operand.vmem [shape: f32[16,256], index: 1, kind: input, shape index: {}]
  %s2 = inlined_call_operand.vmem [shape: f32[1,256], index: 2, kind: input, shape index: {}]
  %s3 = inlined_call_operand.vmem [shape: f32[1,256], index: 3, kind: input, shape index: {}]
  %s4 = inlined_call_operand.vmem [shape: f32[16,256], index: 4, kind: output, shape index: {}]
  %s5 = sld [smem:[#allocation0]]
  $region26: #{transformer_forward.57} parent=0
    _
  %s7 = ssub.s32 1, %s5
  %s8 = scalar_select 0, %s7, %s5
  // Predicated region
  $region2: #{transformer_forward.57} parent=0 // pred_check
    _
  $region3: #{transformer_forward.57} parent=0 // pred_check_branch
    %10 = sbr.rel (0) target = $region5
  $region4: #{transformer_forward.57} parent=0 // pred_region
    _
  $region5: #{transformer_forward.57} parent=0 // pred_fallthru
    _
  // Predicated region
  $region6: #{transformer_forward.57} parent=0 // pred_check
    _
  $region7: #{transformer_forward.57} parent=0 // pred_check_branch
    %12 = sbr.rel (0) target = $region9
  $region8: #{transformer_forward.57} parent=0 // pred_region
    _
  $region9: #{transformer_forward.57} parent=0 // pred_fallthru
    _
  // Predicated region
  $region10: #{transformer_forward.57} parent=0 // pred_check
    _
  $region11: #{transformer_forward.57} parent=0 // pred_check_branch
    %14 = sbr.rel (0) target = $region13
  $region12: #{transformer_forward.57} parent=0 // pred_region
    _
  $region13: #{transformer_forward.57} parent=0 // pred_fallthru
    _
  // Predicated region
  $region14: #{transformer_forward.57} parent=0 // pred_check
    _
  $region15: #{transformer_forward.57} parent=0 // pred_check_branch
    %16 = sbr.rel (0) target = $region17
  $region16: #{transformer_forward.57} parent=0 // pred_region
    _
  $region17: #{transformer_forward.57} parent=0 // pred_fallthru
    _
  %v17 = vld [vmem:[%s0] sm:$0xff]
  %v18 = vld [vmem:[%s0 + $0x8] sm:$0xff]
  %v19 = vld [vmem:[%s0 + $0x10] sm:$0xff]
  %v20 = vld [vmem:[%s0 + $0x18] sm:$0xff]
  %v21 = vld [vmem:[%s1] sm:$0xff]
  %v22 = vld [vmem:[%s1 + $0x8] sm:$0xff]
  %v23 = vld [vmem:[%s1 + $0x10] sm:$0xff]
  %v24 = vld [vmem:[%s1 + $0x18] sm:$0xff]
  %v25 = vadd.f32 %v17, %v21
  %v26 = vadd.f32 %v18, %v22
  %v27 = vadd.f32 %v19, %v23
  %v28 = vadd.f32 %v20, %v24
  %v29 = vadd.f32 %v25, %v26
  %30 = vadd.xlane.f32.xlu0 %v29
  %v31 = vpop.xlane.xlu0 %30
  %v32 = vadd.f32 %v27, %v28
  %33 = vadd.xlane.f32.xlu0 %v32
  %v34 = vpop.xlane.xlu0 %33
  %v35 = vrcp.pop 256.0
  %v36 = vmul.f32 %v31, %v35
  %v37 = vmul.f32 %v34, %v35
  %v38 = vsub.f32 %v25, %v36
  %v39 = vsub.f32 %v26, %v36
  %v40 = vsub.f32 %v27, %v37
  %v41 = vsub.f32 %v28, %v37
  %v42 = vmul.f32 %v38, %v38
  %v43 = vmul.f32 %v39, %v39
  %v44 = vmul.f32 %v40, %v40
  %v45 = vmul.f32 %v41, %v41
  %v46 = vadd.f32 %v42, %v43
  %47 = vadd.xlane.f32.xlu0 %v46
  %v48 = vpop.xlane.xlu0 %47
  %v49 = vadd.f32 %v44, %v45
  %50 = vadd.xlane.f32.xlu0 %v49
  %v51 = vpop.xlane.xlu0 %50
  %v52 = vmul.f32 %v48, %v35
  %v53 = vmul.f32 %v51, %v35
  %v54 = vadd.f32 %v52, 1e-05
  %v55 = vadd.f32 %v53, 1e-05
  %v56 = vrsqrt.pop %v54
  %v57 = vrsqrt.pop %v55
  %v58 = vmul.f32 %v38, %v56
  %v59 = vmul.f32 %v39, %v56
  %v60 = vmul.f32 %v40, %v57
  %v61 = vmul.f32 %v41, %v57
  %v62 = vld [vmem:[%s2] sm:$0x3]
  %v64 = vlaneseq
  %v65 = vshrl.u32 %v64, 7
  %v66 = vsub.s32 0, %v65
  %v67 = vrot.slane %v62, %v66
  %v68 = vlaneseq
  %v69 = vshrl.u32 %v68, 7
  %v70 = vsub.s32 1, %v69
  %v71 = vrot.slane %v62, %v70
  %v74 = vmul.f32 %v58, %v67
  %v75 = vmul.f32 %v59, %v71
  %v76 = vmul.f32 %v60, %v67
  %v77 = vmul.f32 %v61, %v71
  %v78 = vld [vmem:[%s3] sm:$0x3]
  %v80 = vlaneseq
  %v81 = vshrl.u32 %v80, 7
  %v82 = vsub.s32 0, %v81
  %v83 = vrot.slane %v78, %v82
  %v84 = vlaneseq
  %v85 = vshrl.u32 %v84, 7
  %v86 = vsub.s32 1, %v85
  %v87 = vrot.slane %v78, %v86
  %v90 = vadd.f32 %v74, %v83
  %v91 = vadd.f32 %v75, %v87
  %v92 = vadd.f32 %v76, %v83
  %v93 = vadd.f32 %v77, %v87
  %94 = vst [vmem:[%s4] sm:$0xff] %v90
  %95 = vst [vmem:[%s4 + $0x8] sm:$0xff] %v91
  %96 = vst [vmem:[%s4 + $0x10] sm:$0xff] %v92
  %97 = vst [vmem:[%s4 + $0x18] sm:$0xff] %v93
  // Predicated region
  $region18: #{transformer_forward.57} parent=0 // pred_check
    _
  $region19: #{transformer_forward.57} parent=0 // pred_check_branch
    %99 = sbr.rel (0) target = $region21
  $region20: #{transformer_forward.57} parent=0 // pred_region
    _
  $region21: #{transformer_forward.57} parent=0 // pred_fallthru
    _
  // Predicated region
  $region22: #{transformer_forward.57} parent=0 // pred_check
    _
  $region23: #{transformer_forward.57} parent=0 // pred_check_branch
    %101 = sbr.rel (0) target = $region25
  $region24: #{transformer_forward.57} parent=0 // pred_region
    _
  $region25: #{transformer_forward.57} parent=0 // pred_fallthru
    _

// kernel: transformer_forward.54
$region0: #{transformer_forward.54}
  #allocation0 [shape = 'u32[]', space=smem, size = 0x4, offset = 0x4, fixed_abs, tag = 'smem constant byte address 0x4 - core index']
  #allocation1 [shape = 'u32[144,128]{1,0:T(1,128)}', space=vmem, size = 0x12000, scoped, tag = 'internal scratch']
  #allocation2 [shape = 'f32[16,256]{1,0:T(8,128)}', space=vmem, size = 0x4000, scoped, tag = 'scratch operand']
  %s0 = inlined_call_operand.vmem [shape: f32[16,256], index: 0, kind: input, shape index: {}]
  %s1 = inlined_call_operand.vmem [shape: bf16[256,512], index: 1, kind: input, shape index: {}]
  %s2 = inlined_call_operand.vmem [shape: f32[1,512], index: 2, kind: input, shape index: {}]
  %s3 = inlined_call_operand.vmem [shape: f32[16,512], index: 3, kind: output, shape index: {}]
  %s4 = sld [smem:[#allocation0]]
  $region110: #{transformer_forward.54} parent=0
    _
  %s6 = ssub.s32 1, %s4
  %s7 = scalar_select 0, %s6, %s4
  $region1: #{transformer_forward.54} parent=0
    #allocation3 [shape = 'u8[262144]{0}', space=vmem, size = 0x40000, scoped, tag = 'input window, operand 1']
    #allocation4 [shape = 'u8[32768]{0}', space=vmem, size = 0x8000, scoped, tag = 'output window, operand 0']
    loop: start=0, step=1, limit=4
    $region2: #{transformer_forward.54} parent=1 // loop_pre_header
      _
    $region3: #{transformer_forward.54} parent=1 // loop_header
      %s9 = sphi 0, %s13
      %p10 = scmp.ge.s32.totalorder %s9, 4
      %s16 = sphi 0, %s35
      %s17 = sphi 0, %s31
      %s18 = sphi 0, %s27
      %s19 = sphi 0, %s16
      %s20 = sphi 0, %s17
      %s21 = sphi 0, %s18
      %s22 = sphi 0, %s19
      %s23 = sphi 0, %s20
      %s24 = sphi 0, %s21
      %s40 = sphi 0, %s42
      %s43 = sphi 0, %s40
      %s44 = sphi 0, %s43
      %s60 = sphi 0, %s44
      %s68 = sphi 0, %s70
      %s71 = sphi 0, %s68
      %s72 = sphi 0, %s71
      %s88 = sphi 0, %s72
      %s94 = sphi 0, %s96
      %s97 = sphi 0, %s94
      %s98 = sphi 0, %s97
      %s114 = sphi 0, %s98
      %s122 = sphi 0, %s124
      %s125 = sphi 0, %s122
      %s126 = sphi 0, %s125
      %s142 = sphi 0, %s126
    $region4: #{transformer_forward.54} parent=1 // loop_header_branch
      %12 = sbr.rel (%p10) target = $region8
    $region5: #{transformer_forward.54} parent=1 // loop_body
      %s14 = ssub.s32 %s9, 1
      %s15 = ssub.s32 %s9, 2
      %s25 = sadd.s32 1, %s18
      %p26 = scmp.ge.s32.totalorder %s25, 1
      %s27 = scalar_select %p26, 0, %s25
      %s28 = sadd.s32 1, %s17
      %s29 = scalar_select %p26, %s28, %s17
      %p30 = scmp.ge.s32.totalorder %s29, 2
      %s31 = scalar_select %p30, 0, %s29
      %s32 = sadd.s32 1, %s16
      %s33 = scalar_select %p30, %s32, %s16
      %p34 = scmp.ge.s32.totalorder %s33, 1
      %s35 = scalar_select %p34, 0, %s33
      %s36 = ssub.s32 %s16, %s35
      %s37 = ssub.s32 %s18, %s27
      %s38 = sor.u32 %s36, %s37
      %p39 = scmp.eq.s32.totalorder %s38, 0
      %s41 = sadd.s32 %s40, 1
      %s42 = scalar_select %p39, %s40, %s41
      %p45 = pneg %p39
      %p46 = scmp.eq.s32.totalorder %s9, 1
      %p47 = por %p45, %p46
      %p48 = scmp.ne.s32.totalorder %s40, %s43
      %p49 = scmp.eq.s32.totalorder %s9, 0
      %p50 = por %p48, %p49
      %p51 = scmp.ne.s32.totalorder %s40, %s43
      %p52 = scmp.eq.s32.totalorder %s14, 1
      %p53 = por %p51, %p52
      %p54 = scmp.ne.s32.totalorder %s43, %s44
      %p55 = scmp.eq.s32.totalorder %s14, 0
      %p56 = por %p54, %p55
      %p57 = scmp.ne.s32.totalorder %s43, %s44
      %p58 = scmp.eq.s32.totalorder %s15, 1
      %p59 = por %p57, %p58
      %p61 = scmp.ne.s32.totalorder %s44, %s60
      %p62 = scmp.eq.s32.totalorder %s15, 0
      %p63 = por %p61, %p62
      %s64 = ssub.s32 %s18, %s27
      %s65 = ssub.s32 %s17, %s31
      %s66 = sor.u32 %s64, %s65
      %p67 = scmp.eq.s32.totalorder %s66, 0
      %s69 = sadd.s32 %s68, 1
      %s70 = scalar_select %p67, %s68, %s69
      %p73 = pneg %p67
      %p74 = scmp.eq.s32.totalorder %s9, 1
      %p75 = por %p73, %p74
      %p76 = scmp.ne.s32.totalorder %s68, %s71
      %p77 = scmp.eq.s32.totalorder %s9, 0
      %p78 = por %p76, %p77
      %p79 = scmp.ne.s32.totalorder %s68, %s71
      %p80 = scmp.eq.s32.totalorder %s14, 1
      %p81 = por %p79, %p80
      %p82 = scmp.ne.s32.totalorder %s71, %s72
      %p83 = scmp.eq.s32.totalorder %s14, 0
      %p84 = por %p82, %p83
      %p85 = scmp.ne.s32.totalorder %s71, %s72
      %p86 = scmp.eq.s32.totalorder %s15, 1
      %p87 = por %p85, %p86
      %p89 = scmp.ne.s32.totalorder %s72, %s88
      %p90 = scmp.eq.s32.totalorder %s15, 0
      %p91 = por %p89, %p90
      %s92 = ssub.s32 %s17, %s31
      %p93 = scmp.eq.s32.totalorder %s92, 0
      %s95 = sadd.s32 %s94, 1
      %s96 = scalar_select %p93, %s94, %s95
      %p99 = pneg %p93
      %p100 = scmp.eq.s32.totalorder %s9, 1
      %p101 = por %p99, %p100
      %p102 = scmp.ne.s32.totalorder %s94, %s97
      %p103 = scmp.eq.s32.totalorder %s9, 0
      %p104 = por %p102, %p103
      %p105 = scmp.ne.s32.totalorder %s94, %s97
      %p106 = scmp.eq.s32.totalorder %s14, 1
      %p107 = por %p105, %p106
      %p108 = scmp.ne.s32.totalorder %s97, %s98
      %p109 = scmp.eq.s32.totalorder %s14, 0
      %p110 = por %p108, %p109
      %p111 = scmp.ne.s32.totalorder %s97, %s98
      %p112 = scmp.eq.s32.totalorder %s15, 1
      %p113 = por %p111, %p112
      %p115 = scmp.ne.s32.totalorder %s98, %s114
      %p116 = scmp.eq.s32.totalorder %s15, 0
      %p117 = por %p115, %p116
      %s118 = ssub.s32 %s16, %s35
      %s119 = ssub.s32 %s17, %s31
      %s120 = sor.u32 %s118, %s119
      %p121 = scmp.eq.s32.totalorder %s120, 0
      %s123 = sadd.s32 %s122, 1
      %s124 = scalar_select %p121, %s122, %s123
      %p127 = pneg %p121
      %p128 = scmp.eq.s32.totalorder %s9, 1
      %p129 = por %p127, %p128
      %p130 = scmp.ne.s32.totalorder %s122, %s125
      %p131 = scmp.eq.s32.totalorder %s9, 0
      %p132 = por %p130, %p131
      %p133 = scmp.ne.s32.totalorder %s122, %s125
      %p134 = scmp.eq.s32.totalorder %s14, 1
      %p135 = por %p133, %p134
      %p136 = scmp.ne.s32.totalorder %s125, %s126
      %p137 = scmp.eq.s32.totalorder %s14, 0
      %p138 = por %p136, %p137
      %p139 = scmp.ne.s32.totalorder %s125, %s126
      %p140 = scmp.eq.s32.totalorder %s15, 1
      %p141 = por %p139, %p140
      %p143 = scmp.ne.s32.totalorder %s126, %s142
      %p144 = scmp.eq.s32.totalorder %s15, 0
      %p145 = por %p143, %p144
      %p146 = scmp.le.s32.totalorder 1, %s9
      %p147 = scmp.lt.s32.totalorder %s9, 3
      %p148 = pnand %p146, %p147
      %p149 = pneg %p148
      // Predicated region
      $region9: #{transformer_forward.54} parent=5 // pred_check
        _
      $region10: #{transformer_forward.54} parent=5 // pred_check_branch
        %151 = sbr.rel (%p148) target = $region12
      $region11: #{transformer_forward.54} parent=5 // pred_region
        %s152 = ssub.s32 %s9, 1
        // Predicated region
        $region13: #{transformer_forward.54} parent=11 // pred_check
          %p153 = pneg %p56
        $region14: #{transformer_forward.54} parent=11 // pred_check_branch
          %155 = sbr.rel (%p153) target = $region16
        $region15: #{transformer_forward.54} parent=11 // pred_region
          %s156 = smul.u32 2, %s19
          %s157 = smul.u32 2, %s21
          %p158 = scmp.lt.s32.totalorder %s156, 1
          %s159 = scalar_select %p158, %s156, 1
          %p160 = scmp.lt.s32.totalorder %s157, 1
          %s161 = scalar_select %p160, %s157, 1
          %s162 = smul.addr %s159, 2
          %s163 = sadd.s32 %s161, %s162
          %s164 = smul.addr %s163, 8
          %s165 = scalar_lea.vmem %s0, %s164
          %s166 = smul.u32 2, %s19
          %s167 = smul.u32 2, %s21
        $region16: #{transformer_forward.54} parent=11 // pred_fallthru
          _
      $region12: #{transformer_forward.54} parent=5 // pred_fallthru
        _
      %p168 = scmp.lt.s32.totalorder %s9, 2
      // Predicated region
      $region17: #{transformer_forward.54} parent=5 // pred_check
        %p169 = pneg %p168
      $region18: #{transformer_forward.54} parent=5 // pred_check_branch
        %171 = sbr.rel (%p169) target = $region20
      $region19: #{transformer_forward.54} parent=5 // pred_region
        // Predicated region
        $region21: #{transformer_forward.54} parent=19 // pred_check
          %p172 = pneg %p78
        $region22: #{transformer_forward.54} parent=19 // pred_check_branch
          %174 = sbr.rel (%p172) target = $region24
        $region23: #{transformer_forward.54} parent=19 // pred_region
          %s175 = sand.u32 %s68, 1
          %s176 = sand.u32 %s68, 1
          %s177 = smul.addr %s176, 256
          %s178 = scalar_lea.vmem [#allocation3], %s177
          %s179 = smul.u32 32, %s18
          %s180 = smul.u32 2, %s17
          %s181 = smul.addr %s179, 4
          %s182 = sadd.s32 %s180, %s181
          %s183 = smul.addr %s182, 4
          %s184 = scalar_lea.vmem %s1, %s183
          // Predicated region
          $region25: #{transformer_forward.54} parent=23 // pred_check
            _
          $region26: #{transformer_forward.54} parent=23 // pred_check_branch
            %186 = sbr.rel (0) target = $region28
          $region27: #{transformer_forward.54} parent=23 // pred_region
            // Predicated region
            $region29: #{transformer_forward.54} parent=27 // pred_check
              _
            $region30: #{transformer_forward.54} parent=27 // pred_check_branch
              %188 = sbr.rel (0) target = $region32
            $region31: #{transformer_forward.54} parent=27 // pred_region
              // Predicated region
              $region44: #{transformer_forward.54} parent=31 // pred_check
                _
              $region45: #{transformer_forward.54} parent=31 // pred_check_branch
                %265 = sbr.rel (0) target = $region47
              $region46: #{transformer_forward.54} parent=31 // pred_region
                loop: start=0, step=1, limit=1
                $region48: #{transformer_forward.54} parent=46 // loop_pre_header
                  _
                $region49: #{transformer_forward.54} parent=46 // loop_header
                  %s267 = sphi 0, %s271
                  %p268 = scmp.ge.s32.totalorder %s267, 1
                  %s272 = sphi %s184, %s184
                  %s273 = sphi %s178, %s178
                $region50: #{transformer_forward.54} parent=46 // loop_header_branch
                  %270 = sbr.rel (%p268) target = $region54
                $region51: #{transformer_forward.54} parent=46 // loop_body
                  %v274 = vld [vmem:[%s272] sm:$0xff]
                  %275 = vst [vmem:[%s273] sm:$0xff] %v274
                  %v276 = vld [vmem:[%s272 + $0x10] sm:$0xff]
                  %277 = vst [vmem:[%s273 + $0x8] sm:$0xff] %v276
                  %v278 = vld [vmem:[%s272 + $0x20] sm:$0xff]
                  %279 = vst [vmem:[%s273 + $0x10] sm:$0xff] %v278
                  %v280 = vld [vmem:[%s272 + $0x30] sm:$0xff]
                  %281 = vst [vmem:[%s273 + $0x18] sm:$0xff] %v280
                  %v282 = vld [vmem:[%s272 + $0x40] sm:$0xff]
                  %283 = vst [vmem:[%s273 + $0x20] sm:$0xff] %v282
                  %v284 = vld [vmem:[%s272 + $0x50] sm:$0xff]
                  %285 = vst [vmem:[%s273 + $0x28] sm:$0xff] %v284
                  %v286 = vld [vmem:[%s272 + $0x60] sm:$0xff]
                  %287 = vst [vmem:[%s273 + $0x30] sm:$0xff] %v286
                  %v288 = vld [vmem:[%s272 + $0x70] sm:$0xff]
                  %289 = vst [vmem:[%s273 + $0x38] sm:$0xff] %v288
                  %v290 = vld [vmem:[%s272 + $0x80] sm:$0xff]
                  %291 = vst [vmem:[%s273 + $0x40] sm:$0xff] %v290
                  %v292 = vld [vmem:[%s272 + $0x90] sm:$0xff]
                  %293 = vst [vmem:[%s273 + $0x48] sm:$0xff] %v292
                  %v294 = vld [vmem:[%s272 + $0xa0] sm:$0xff]
                  %295 = vst [vmem:[%s273 + $0x50] sm:$0xff] %v294
                  %v296 = vld [vmem:[%s272 + $0xb0] sm:$0xff]
                  %297 = vst [vmem:[%s273 + $0x58] sm:$0xff] %v296
                  %v298 = vld [vmem:[%s272 + $0xc0] sm:$0xff]
                  %299 = vst [vmem:[%s273 + $0x60] sm:$0xff] %v298
                  %v300 = vld [vmem:[%s272 + $0xd0] sm:$0xff]
                  %301 = vst [vmem:[%s273 + $0x68] sm:$0xff] %v300
                  %v302 = vld [vmem:[%s272 + $0xe0] sm:$0xff]
                  %303 = vst [vmem:[%s273 + $0x70] sm:$0xff] %v302
                  %v304 = vld [vmem:[%s272 + $0xf0] sm:$0xff]
                  %305 = vst [vmem:[%s273 + $0x78] sm:$0xff] %v304
                  %v306 = vld [vmem:[%s272 + $0x100] sm:$0xff]
                  %307 = vst [vmem:[%s273 + $0x80] sm:$0xff] %v306
                  %v308 = vld [vmem:[%s272 + $0x110] sm:$0xff]
                  %309 = vst [vmem:[%s273 + $0x88] sm:$0xff] %v308
                  %v310 = vld [vmem:[%s272 + $0x120] sm:$0xff]
                  %311 = vst [vmem:[%s273 + $0x90] sm:$0xff] %v310
                  %v312 = vld [vmem:[%s272 + $0x130] sm:$0xff]
                  %313 = vst [vmem:[%s273 + $0x98] sm:$0xff] %v312
                  %v314 = vld [vmem:[%s272 + $0x140] sm:$0xff]
                  %315 = vst [vmem:[%s273 + $0xa0] sm:$0xff] %v314
                  %v316 = vld [vmem:[%s272 + $0x150] sm:$0xff]
                  %317 = vst [vmem:[%s273 + $0xa8] sm:$0xff] %v316
                  %v318 = vld [vmem:[%s272 + $0x160] sm:$0xff]
                  %319 = vst [vmem:[%s273 + $0xb0] sm:$0xff] %v318
                  %v320 = vld [vmem:[%s272 + $0x170] sm:$0xff]
                  %321 = vst [vmem:[%s273 + $0xb8] sm:$0xff] %v320
                  %v322 = vld [vmem:[%s272 + $0x180] sm:$0xff]
                  %323 = vst [vmem:[%s273 + $0xc0] sm:$0xff] %v322
                  %v324 = vld [vmem:[%s272 + $0x190] sm:$0xff]
                  %325 = vst [vmem:[%s273 + $0xc8] sm:$0xff] %v324
                  %v326 = vld [vmem:[%s272 + $0x1a0] sm:$0xff]
                  %327 = vst [vmem:[%s273 + $0xd0] sm:$0xff] %v326
                  %v328 = vld [vmem:[%s272 + $0x1b0] sm:$0xff]
                  %329 = vst [vmem:[%s273 + $0xd8] sm:$0xff] %v328
                  %v330 = vld [vmem:[%s272 + $0x1c0] sm:$0xff]
                  %331 = vst [vmem:[%s273 + $0xe0] sm:$0xff] %v330
                  %v332 = vld [vmem:[%s272 + $0x1d0] sm:$0xff]
                  %333 = vst [vmem:[%s273 + $0xe8] sm:$0xff] %v332
                  %v334 = vld [vmem:[%s272 + $0x1e0] sm:$0xff]
                  %335 = vst [vmem:[%s273 + $0xf0] sm:$0xff] %v334
                  %v336 = vld [vmem:[%s272 + $0x1f0] sm:$0xff]
                  %337 = vst [vmem:[%s273 + $0xf8] sm:$0xff] %v336
                $region52: #{transformer_forward.54} parent=46 // loop_footer
                  %s271 = sadd.s32 1, %s267
                $region53: #{transformer_forward.54} parent=46 // loop_footer_branch
                  %266 = sbr.rel target = $region49
                $region54: #{transformer_forward.54} parent=46 // loop_exit
                  _
              $region47: #{transformer_forward.54} parent=31 // pred_fallthru
                _
              // Predicated region
              $region55: #{transformer_forward.54} parent=31 // pred_check
                _
              $region56: #{transformer_forward.54} parent=31 // pred_check_branch
                %339 = sbr.rel target = $region58
              $region57: #{transformer_forward.54} parent=31 // pred_region
                _
              $region58: #{transformer_forward.54} parent=31 // pred_fallthru
                _
            $region32: #{transformer_forward.54} parent=27 // pred_fallthru
              _
            // Predicated region
            $region33: #{transformer_forward.54} parent=27 // pred_check
              _
            $region34: #{transformer_forward.54} parent=27 // pred_check_branch
              %190 = sbr.rel target = $region36
            $region35: #{transformer_forward.54} parent=27 // pred_region
              loop: start=0, step=1, limit=1
              $region37: #{transformer_forward.54} parent=35 // loop_pre_header
                _
              $region38: #{transformer_forward.54} parent=35 // loop_header
                %s193 = sphi 0, %s197
                %p194 = scmp.ge.s32.totalorder %s193, 1
                %s198 = sphi %s184, %s184
                %s199 = sphi %s178, %s178
              $region39: #{transformer_forward.54} parent=35 // loop_header_branch
                %196 = sbr.rel (%p194) target = $region43
              $region40: #{transformer_forward.54} parent=35 // loop_body
                %v200 = vld [vmem:[%s198] sm:$0xff]
                %201 = vst [vmem:[%s199] sm:$0xff] %v200
                %v202 = vld [vmem:[%s198 + $0x10] sm:$0xff]
                %203 = vst [vmem:[%s199 + $0x8] sm:$0xff] %v202
                %v204 = vld [vmem:[%s198 + $0x20] sm:$0xff]
                %205 = vst [vmem:[%s199 + $0x10] sm:$0xff] %v204
                %v206 = vld [vmem:[%s198 + $0x30] sm:$0xff]
                %207 = vst [vmem:[%s199 + $0x18] sm:$0xff] %v206
                %v208 = vld [vmem:[%s198 + $0x40] sm:$0xff]
                %209 = vst [vmem:[%s199 + $0x20] sm:$0xff] %v208
                %v210 = vld [vmem:[%s198 + $0x50] sm:$0xff]
                %211 = vst [vmem:[%s199 + $0x28] sm:$0xff] %v210
                %v212 = vld [vmem:[%s198 + $0x60] sm:$0xff]
                %213 = vst [vmem:[%s199 + $0x30] sm:$0xff] %v212
                %v214 = vld [vmem:[%s198 + $0x70] sm:$0xff]
                %215 = vst [vmem:[%s199 + $0x38] sm:$0xff] %v214
                %v216 = vld [vmem:[%s198 + $0x80] sm:$0xff]
                %217 = vst [vmem:[%s199 + $0x40] sm:$0xff] %v216
                %v218 = vld [vmem:[%s198 + $0x90] sm:$0xff]
                %219 = vst [vmem:[%s199 + $0x48] sm:$0xff] %v218
                %v220 = vld [vmem:[%s198 + $0xa0] sm:$0xff]
                %221 = vst [vmem:[%s199 + $0x50] sm:$0xff] %v220
                %v222 = vld [vmem:[%s198 + $0xb0] sm:$0xff]
                %223 = vst [vmem:[%s199 + $0x58] sm:$0xff] %v222
                %v224 = vld [vmem:[%s198 + $0xc0] sm:$0xff]
                %225 = vst [vmem:[%s199 + $0x60] sm:$0xff] %v224
                %v226 = vld [vmem:[%s198 + $0xd0] sm:$0xff]
                %227 = vst [vmem:[%s199 + $0x68] sm:$0xff] %v226
                %v228 = vld [vmem:[%s198 + $0xe0] sm:$0xff]
                %229 = vst [vmem:[%s199 + $0x70] sm:$0xff] %v228
                %v230 = vld [vmem:[%s198 + $0xf0] sm:$0xff]
                %231 = vst [vmem:[%s199 + $0x78] sm:$0xff] %v230
                %v232 = vld [vmem:[%s198 + $0x100] sm:$0xff]
                %233 = vst [vmem:[%s199 + $0x80] sm:$0xff] %v232
                %v234 = vld [vmem:[%s198 + $0x110] sm:$0xff]
                %235 = vst [vmem:[%s199 + $0x88] sm:$0xff] %v234
                %v236 = vld [vmem:[%s198 + $0x120] sm:$0xff]
                %237 = vst [vmem:[%s199 + $0x90] sm:$0xff] %v236
                %v238 = vld [vmem:[%s198 + $0x130] sm:$0xff]
                %239 = vst [vmem:[%s199 + $0x98] sm:$0xff] %v238
                %v240 = vld [vmem:[%s198 + $0x140] sm:$0xff]
                %241 = vst [vmem:[%s199 + $0xa0] sm:$0xff] %v240
                %v242 = vld [vmem:[%s198 + $0x150] sm:$0xff]
                %243 = vst [vmem:[%s199 + $0xa8] sm:$0xff] %v242
                %v244 = vld [vmem:[%s198 + $0x160] sm:$0xff]
                %245 = vst [vmem:[%s199 + $0xb0] sm:$0xff] %v244
                %v246 = vld [vmem:[%s198 + $0x170] sm:$0xff]
                %247 = vst [vmem:[%s199 + $0xb8] sm:$0xff] %v246
                %v248 = vld [vmem:[%s198 + $0x180] sm:$0xff]
                %249 = vst [vmem:[%s199 + $0xc0] sm:$0xff] %v248
                %v250 = vld [vmem:[%s198 + $0x190] sm:$0xff]
                %251 = vst [vmem:[%s199 + $0xc8] sm:$0xff] %v250
                %v252 = vld [vmem:[%s198 + $0x1a0] sm:$0xff]
                %253 = vst [vmem:[%s199 + $0xd0] sm:$0xff] %v252
                %v254 = vld [vmem:[%s198 + $0x1b0] sm:$0xff]
                %255 = vst [vmem:[%s199 + $0xd8] sm:$0xff] %v254
                %v256 = vld [vmem:[%s198 + $0x1c0] sm:$0xff]
                %257 = vst [vmem:[%s199 + $0xe0] sm:$0xff] %v256
                %v258 = vld [vmem:[%s198 + $0x1d0] sm:$0xff]
                %259 = vst [vmem:[%s199 + $0xe8] sm:$0xff] %v258
                %v260 = vld [vmem:[%s198 + $0x1e0] sm:$0xff]
                %261 = vst [vmem:[%s199 + $0xf0] sm:$0xff] %v260
                %v262 = vld [vmem:[%s198 + $0x1f0] sm:$0xff]
                %263 = vst [vmem:[%s199 + $0xf8] sm:$0xff] %v262
              $region41: #{transformer_forward.54} parent=35 // loop_footer
                %s197 = sadd.s32 1, %s193
              $region42: #{transformer_forward.54} parent=35 // loop_footer_branch
                %192 = sbr.rel target = $region38
              $region43: #{transformer_forward.54} parent=35 // loop_exit
                _
            $region36: #{transformer_forward.54} parent=27 // pred_fallthru
              _
          $region28: #{transformer_forward.54} parent=23 // pred_fallthru
            _
          %340 = vnop
        $region24: #{transformer_forward.54} parent=19 // pred_fallthru
          _
        // Predicated region
        $region59: #{transformer_forward.54} parent=19 // pred_check
          %p341 = pneg %p104
        $region60: #{transformer_forward.54} parent=19 // pred_check_branch
          %343 = sbr.rel (%p341) target = $region62
        $region61: #{transformer_forward.54} parent=19 // pred_region
          %s344 = smul.u32 2, %s17
          %p345 = scmp.lt.s32.totalorder %s344, 3
          %s346 = scalar_select %p345, %s344, 3
          %s347 = scalar_lea.vmem %s2, %s346
          %s348 = smul.u32 2, %s17
        $region62: #{transformer_forward.54} parent=19 // pred_fallthru
          _
      $region20: #{transformer_forward.54} parent=5 // pred_fallthru
        _
      %p349 = scmp.le.s32.totalorder 1, %s9
      %p350 = scmp.lt.s32.totalorder %s9, 3
      %p351 = pnand %p349, %p350
      %p352 = pneg %p351
      // Predicated region
      $region63: #{transformer_forward.54} parent=5 // pred_check
        _
      $region64: #{transformer_forward.54} parent=5 // pred_check_branch
        %354 = sbr.rel (%p351) target = $region66
      $region65: #{transformer_forward.54} parent=5 // pred_region
        %s355 = ssub.s32 %s9, 1
        %s356 = sand.u32 %s71, 1
        %s357 = sand.u32 %s71, 1
        %s358 = smul.addr %s357, 256
        %s359 = scalar_lea.vmem [#allocation3], %s358
        // Predicated region
        $region67: #{transformer_forward.54} parent=65 // pred_check
          %p360 = pneg %p84
        $region68: #{transformer_forward.54} parent=65 // pred_check_branch
          %362 = sbr.rel (%p360) target = $region70
        $region69: #{transformer_forward.54} parent=65 // pred_region
          _
        $region70: #{transformer_forward.54} parent=65 // pred_fallthru
          _
        %s363 = smul.u32 2, %s19
        %s364 = smul.u32 2, %s21
        %p365 = scmp.lt.s32.totalorder %s363, 1
        %s366 = scalar_select %p365, %s363, 1
        %p367 = scmp.lt.s32.totalorder %s364, 1
        %s368 = scalar_select %p367, %s364, 1
        %s369 = smul.addr %s366, 2
        %s370 = sadd.s32 %s368, %s369
        %s371 = smul.addr %s370, 8
        %s372 = scalar_lea.vmem %s0, %s371
        %p373 = pneg %p56
        %p374 = pneg %p53
        %s375 = sand.u32 %s71, 1
        %s376 = sand.u32 %s71, 1
        %s377 = smul.addr %s376, 256
        %s378 = scalar_lea.vmem [#allocation3], %s377
        %p379 = pneg %p84
        %p380 = pneg %p81
        %s381 = smul.u32 2, %s20
        %p382 = scmp.lt.s32.totalorder %s381, 3
        %s383 = scalar_select %p382, %s381, 3
        %s384 = scalar_lea.vmem %s2, %s383
        %p385 = pneg %p110
        %p386 = pneg %p107
        %p387 = pneg %p138
        %p388 = pneg %p135
        %s389 = sand.u32 %s125, 1
        %s390 = sand.u32 %s125, 1
        %s391 = smul.addr %s390, 32
        %s392 = scalar_lea.vmem [#allocation4], %s391
        %s393 = smul.u32 2, %s19
        %s394 = smul.u32 2, %s21
        %p395 = scmp.lt.s32.totalorder %s393, 1
        %s396 = scalar_select %p395, %s393, 1
        %p397 = scmp.lt.s32.totalorder %s394, 1
        %s398 = scalar_select %p397, %s394, 1
        %s399 = smul.addr %s396, 2
        %s400 = sadd.s32 %s398, %s399
        %s401 = smul.addr %s400, 8
        %s402 = scalar_lea.vmem %s0, %s401
        %s403 = smul.u32 2, %s19
        %s404 = smul.u32 2, %s21
        %s405 = smul.u32 32, %s21
        %s406 = smul.u32 2, %s20
        %s407 = smul.u32 2, %s20
        %p408 = scmp.lt.s32.totalorder %s407, 3
        %s409 = scalar_select %p408, %s407, 3
        %s410 = scalar_lea.vmem %s2, %s409
        %s411 = smul.u32 2, %s20
        %s412 = smul.u32 2, %s19
        %s413 = smul.u32 2, %s20
        %p414 = scmp.eq.s32.totalorder %s21, 0
        // Predicated region
        $region71: #{transformer_forward.54} parent=65 // pred_check
          %p415 = pneg %p414
        $region72: #{transformer_forward.54} parent=65 // pred_check_branch
          %417 = sbr.rel (%p415) target = $region74
        $region73: #{transformer_forward.54} parent=65 // pred_region
          %418 = vst [vmem:[#allocation2] sm:$0xff] 0.0
          %419 = vst [vmem:[#allocation2 + $0x8] sm:$0xff] 0.0
          %420 = vst [vmem:[#allocation2 + $0x10] sm:$0xff] 0.0
          %421 = vst [vmem:[#allocation2 + $0x18] sm:$0xff] 0.0
        $region74: #{transformer_forward.54} parent=65 // pred_fallthru
          _
        %v422 = vld [vmem:[#allocation2] sm:$0xff]
        %v423 = vld [vmem:[#allocation2 + $0x8] sm:$0xff]
        %v424 = vld [vmem:[#allocation2 + $0x10] sm:$0xff]
        %v425 = vld [vmem:[#allocation2 + $0x18] sm:$0xff]
        %v426 = vld [vmem:[%s402] sm:$0xff]
        %v427 = vld [vmem:[%s402 + $0x8] sm:$0xff]
        %v428 = vld [vmem:[%s402 + $0x10] sm:$0xff]
        %v429 = vld [vmem:[%s402 + $0x18] sm:$0xff]
        %v430 = vpack.c.bf16 %v428, %v426
        %v431 = vpack.c.bf16 %v429, %v427
        %v432 = vld [vmem:[%s359] sm:$0xff]
        %v433 = vld [vmem:[%s359 + $0x8] sm:$0xff]
        %v434 = vld [vmem:[%s359 + $0x10] sm:$0xff]
        %v435 = vld [vmem:[%s359 + $0x18] sm:$0xff]
        %v436 = vld [vmem:[%s359 + $0x20] sm:$0xff]
        %v437 = vld [vmem:[%s359 + $0x28] sm:$0xff]
        %v438 = vld [vmem:[%s359 + $0x30] sm:$0xff]
        %v439 = vld [vmem:[%s359 + $0x38] sm:$0xff]
        %v440 = vld [vmem:[%s359 + $0x40] sm:$0xff]
        %v441 = vld [vmem:[%s359 + $0x48] sm:$0xff]
        %v442 = vld [vmem:[%s359 + $0x50] sm:$0xff]
        %v443 = vld [vmem:[%s359 + $0x58] sm:$0xff]
        %v444 = vld [vmem:[%s359 + $0x60] sm:$0xff]
        %v445 = vld [vmem:[%s359 + $0x68] sm:$0xff]
        %v446 = vld [vmem:[%s359 + $0x70] sm:$0xff]
        %v447 = vld [vmem:[%s359 + $0x78] sm:$0xff]
        %v448 = vld [vmem:[%s359 + $0x80] sm:$0xff]
        %v449 = vld [vmem:[%s359 + $0x88] sm:$0xff]
        %v450 = vld [vmem:[%s359 + $0x90] sm:$0xff]
        %v451 = vld [vmem:[%s359 + $0x98] sm:$0xff]
        %v452 = vld [vmem:[%s359 + $0xa0] sm:$0xff]
        %v453 = vld [vmem:[%s359 + $0xa8] sm:$0xff]
        %v454 = vld [vmem:[%s359 + $0xb0] sm:$0xff]
        %v455 = vld [vmem:[%s359 + $0xb8] sm:$0xff]
        %v456 = vld [vmem:[%s359 + $0xc0] sm:$0xff]
        %v457 = vld [vmem:[%s359 + $0xc8] sm:$0xff]
        %v458 = vld [vmem:[%s359 + $0xd0] sm:$0xff]
        %v459 = vld [vmem:[%s359 + $0xd8] sm:$0xff]
        %v460 = vld [vmem:[%s359 + $0xe0] sm:$0xff]
        %v461 = vld [vmem:[%s359 + $0xe8] sm:$0xff]
        %v462 = vld [vmem:[%s359 + $0xf0] sm:$0xff]
        %v463 = vld [vmem:[%s359 + $0xf8] sm:$0xff]
        %v496 = vunpack.c.l.b16 %v432
        %v497 = vunpack.c.h.b16 %v432
        %v498 = vunpack.c.l.b16 %v433
        %v499 = vunpack.c.h.b16 %v433
        %v500 = vunpack.c.l.b16 %v434
        %v501 = vunpack.c.h.b16 %v434
        %v502 = vunpack.c.l.b16 %v435
        %v503 = vunpack.c.h.b16 %v435
        %v504 = vunpack.c.l.b16 %v436
        %v505 = vunpack.c.h.b16 %v436
        %v506 = vunpack.c.l.b16 %v437
        %v507 = vunpack.c.h.b16 %v437
        %v508 = vunpack.c.l.b16 %v438
        %v509 = vunpack.c.h.b16 %v438
        %v510 = vunpack.c.l.b16 %v439
        %v511 = vunpack.c.h.b16 %v439
        %v512 = vunpack.c.l.b16 %v440
        %v513 = vunpack.c.h.b16 %v440
        %v514 = vunpack.c.l.b16 %v441
        %v515 = vunpack.c.h.b16 %v441
        %v516 = vunpack.c.l.b16 %v442
        %v517 = vunpack.c.h.b16 %v442
        %v518 = vunpack.c.l.b16 %v443
        %v519 = vunpack.c.h.b16 %v443
        %v520 = vunpack.c.l.b16 %v444
        %v521 = vunpack.c.h.b16 %v444
        %v522 = vunpack.c.l.b16 %v445
        %v523 = vunpack.c.h.b16 %v445
        %v524 = vunpack.c.l.b16 %v446
        %v525 = vunpack.c.h.b16 %v446
        %v526 = vunpack.c.l.b16 %v447
        %v527 = vunpack.c.h.b16 %v447
        %v528 = vunpack.c.l.b16 %v448
        %v529 = vunpack.c.h.b16 %v448
        %v530 = vunpack.c.l.b16 %v449
        %v531 = vunpack.c.h.b16 %v449
        %v532 = vunpack.c.l.b16 %v450
        %v533 = vunpack.c.h.b16 %v450
        %v534 = vunpack.c.l.b16 %v451
        %v535 = vunpack.c.h.b16 %v451
        %v536 = vunpack.c.l.b16 %v452
        %v537 = vunpack.c.h.b16 %v452
        %v538 = vunpack.c.l.b16 %v453
        %v539 = vunpack.c.h.b16 %v453
        %v540 = vunpack.c.l.b16 %v454
        %v541 = vunpack.c.h.b16 %v454
        %v542 = vunpack.c.l.b16 %v455
        %v543 = vunpack.c.h.b16 %v455
        %v544 = vunpack.c.l.b16 %v456
        %v545 = vunpack.c.h.b16 %v456
        %v546 = vunpack.c.l.b16 %v457
        %v547 = vunpack.c.h.b16 %v457
        %v548 = vunpack.c.l.b16 %v458
        %v549 = vunpack.c.h.b16 %v458
        %v550 = vunpack.c.l.b16 %v459
        %v551 = vunpack.c.h.b16 %v459
        %v552 = vunpack.c.l.b16 %v460
        %v553 = vunpack.c.h.b16 %v460
        %v554 = vunpack.c.l.b16 %v461
        %v555 = vunpack.c.h.b16 %v461
        %v556 = vunpack.c.l.b16 %v462
        %v557 = vunpack.c.h.b16 %v462
        %v558 = vunpack.c.l.b16 %v463
        %v559 = vunpack.c.h.b16 %v463
        %v560 = vpack.c.b16 %v498, %v496
        %v561 = vpack.c.b16 %v499, %v497
        %v562 = vpack.c.b16 %v502, %v500
        %v563 = vpack.c.b16 %v503, %v501
        %v564 = vpack.c.b16 %v506, %v504
        %v565 = vpack.c.b16 %v507, %v505
        %v566 = vpack.c.b16 %v510, %v508
        %v567 = vpack.c.b16 %v511, %v509
        %v568 = vpack.c.b16 %v514, %v512
        %v569 = vpack.c.b16 %v515, %v513
        %v570 = vpack.c.b16 %v518, %v516
        %v571 = vpack.c.b16 %v519, %v517
        %v572 = vpack.c.b16 %v522, %v520
        %v573 = vpack.c.b16 %v523, %v521
        %v574 = vpack.c.b16 %v526, %v524
        %v575 = vpack.c.b16 %v527, %v525
        %v576 = vpack.c.b16 %v530, %v528
        %v577 = vpack.c.b16 %v531, %v529
        %v578 = vpack.c.b16 %v534, %v532
        %v579 = vpack.c.b16 %v535, %v533
        %v580 = vpack.c.b16 %v538, %v536
        %v581 = vpack.c.b16 %v539, %v537
        %v582 = vpack.c.b16 %v542, %v540
        %v583 = vpack.c.b16 %v543, %v541
        %v584 = vpack.c.b16 %v546, %v544
        %v585 = vpack.c.b16 %v547, %v545
        %v586 = vpack.c.b16 %v550, %v548
        %v587 = vpack.c.b16 %v551, %v549
        %v588 = vpack.c.b16 %v554, %v552
        %v589 = vpack.c.b16 %v555, %v553
        %v590 = vpack.c.b16 %v558, %v556
        %v591 = vpack.c.b16 %v559, %v557
        %624 = vmatprep.subr.bf16.mxu0 %v561
        %625 = vmatpush1.bf16.msra.mxu0 %v560
        %626 = vmatprep.subr.bf16.mxu0 %v563
        %627 = vmatpush1.bf16.msra.mxu0 %v562
        %628 = vmatprep.subr.bf16.mxu0 %v565
        %629 = vmatpush1.bf16.msra.mxu0 %v564
        %630 = vmatprep.subr.bf16.mxu0 %v567
        %631 = vmatpush1.bf16.msra.mxu0 %v566
        %632 = vmatprep.subr.bf16.mxu0 %v569
        %633 = vmatpush1.bf16.msra.mxu0 %v568
        %634 = vmatprep.subr.bf16.mxu0 %v571
        %635 = vmatpush1.bf16.msra.mxu0 %v570
        %636 = vmatprep.subr.bf16.mxu0 %v573
        %637 = vmatpush1.bf16.msra.mxu0 %v572
        %638 = vmatprep.subr.bf16.mxu0 %v575
        %639 = vmatpush1.bf16.msra.mxu0 %v574
        %640 = vmatprep.subr.bf16.mxu0 %v577
        %641 = vmatpush1.bf16.msra.mxu0 %v576
        %642 = vmatprep.subr.bf16.mxu0 %v579
        %643 = vmatpush1.bf16.msra.mxu0 %v578
        %644 = vmatprep.subr.bf16.mxu0 %v581
        %645 = vmatpush1.bf16.msra.mxu0 %v580
        %646 = vmatprep.subr.bf16.mxu0 %v583
        %647 = vmatpush1.bf16.msra.mxu0 %v582
        %648 = vmatprep.subr.bf16.mxu0 %v585
        %649 = vmatpush1.bf16.msra.mxu0 %v584
        %650 = vmatprep.subr.bf16.mxu0 %v587
        %651 = vmatpush1.bf16.msra.mxu0 %v586
        %652 = vmatprep.subr.bf16.mxu0 %v589
        %653 = vmatpush1.bf16.msra.mxu0 %v588
        %654 = vmatprep.subr.bf16.mxu0 %v591
        %655 = vmatpush1.bf16.msra.mxu0 %v590
        %656 = vmatprep.mubr.bf16.mxu0 %v431
        %657 = vmatmul.mubr.bf16.gmra.mrb[0].mxu0 %v430
        %v658 = vpop.f32.mrb[0].mxu0
        %v659 = vadd.f32 0.0, %v658
        %v660 = vpop.f32.mrb[0].mxu0
        %v661 = vadd.f32 0.0, %v660
        %v662 = vpop.f32.mrb[0].mxu0
        %v663 = vadd.f32 0.0, %v662
        %v664 = vpop.f32.mrb[0].mxu0
        %v665 = vadd.f32 0.0, %v664
        %666 = vdwg.mxu0
        %v667 = vadd.f32 %v422, %v659
        %v668 = vadd.f32 %v423, %v661
        %v669 = vadd.f32 %v424, %v663
        %v670 = vadd.f32 %v425, %v665
        %671 = vst [vmem:[#allocation2] sm:$0xff] %v667
        %672 = vst [vmem:[#allocation2 + $0x8] sm:$0xff] %v668
        %673 = vst [vmem:[#allocation2 + $0x10] sm:$0xff] %v669
        %674 = vst [vmem:[#allocation2 + $0x18] sm:$0xff] %v670
        // Predicated region
        $region75: #{transformer_forward.54} parent=65 // pred_check
          %p675 = pneg %p414
        $region76: #{transformer_forward.54} parent=65 // pred_check_branch
          %677 = sbr.rel (%p675) target = $region78
        $region77: #{transformer_forward.54} parent=65 // pred_region
          %v678 = vld [vmem:[#allocation2] sm:$0xff]
          %v679 = vld [vmem:[#allocation2 + $0x8] sm:$0xff]
          %v680 = vld [vmem:[#allocation2 + $0x10] sm:$0xff]
          %v681 = vld [vmem:[#allocation2 + $0x18] sm:$0xff]
          %v682 = vld [vmem:[%s410] sm:$0x3]
          %v684 = vlaneseq
          %v685 = vshrl.u32 %v684, 7
          %v686 = vsub.s32 0, %v685
          %v687 = vrot.slane %v682, %v686
          %v688 = vlaneseq
          %v689 = vshrl.u32 %v688, 7
          %v690 = vsub.s32 1, %v689
          %v691 = vrot.slane %v682, %v690
          %v694 = vadd.f32 %v678, %v687
          %v695 = vadd.f32 %v679, %v691
          %v696 = vadd.f32 %v680, %v687
          %v697 = vadd.f32 %v681, %v691
          %698 = vst [vmem:[%s392] sm:$0xff] %v694
          %699 = vst [vmem:[%s392 + $0x8] sm:$0xff] %v695
          %700 = vst [vmem:[%s392 + $0x10] sm:$0xff] %v696
          %701 = vst [vmem:[%s392 + $0x18] sm:$0xff] %v697
        $region78: #{transformer_forward.54} parent=65 // pred_fallthru
          _
        %s702 = sand.u32 %s125, 1
        %s703 = sand.u32 %s125, 1
        %s704 = smul.addr %s703, 32
        %s705 = scalar_lea.vmem [#allocation4], %s704
        // Predicated region
        $region79: #{transformer_forward.54} parent=65 // pred_check
          %p706 = pneg %p135
        $region80: #{transformer_forward.54} parent=65 // pred_check_branch
          %708 = sbr.rel (%p706) target = $region82
        $region81: #{transformer_forward.54} parent=65 // pred_region
          %s709 = smul.u32 2, %s19
          %s710 = smul.u32 2, %s20
          %s711 = smul.addr %s709, 4
          %s712 = sadd.s32 %s710, %s711
          %s713 = smul.addr %s712, 8
          %s714 = scalar_lea.vmem %s3, %s713
          // Predicated region
          $region83: #{transformer_forward.54} parent=81 // pred_check
            _
          $region84: #{transformer_forward.54} parent=81 // pred_check_branch
            %716 = sbr.rel (0) target = $region86
          $region85: #{transformer_forward.54} parent=81 // pred_region
            // Predicated region
            $region87: #{transformer_forward.54} parent=85 // pred_check
              _
            $region88: #{transformer_forward.54} parent=85 // pred_check_branch
              %718 = sbr.rel (0) target = $region90
            $region89: #{transformer_forward.54} parent=85 // pred_region
              loop: start=0, step=1, limit=1
              $region91: #{transformer_forward.54} parent=89 // loop_pre_header
                _
              $region92: #{transformer_forward.54} parent=89 // loop_header
                %s720 = sphi 0, %s724
                %p721 = scmp.ge.s32.totalorder %s720, 1
                %s725 = sphi %s705, %s705
                %s726 = sphi %s714, %s714
              $region93: #{transformer_forward.54} parent=89 // loop_header_branch
                %723 = sbr.rel (%p721) target = $region97
              $region94: #{transformer_forward.54} parent=89 // loop_body
                %v727 = vld [vmem:[%s725] sm:$0xff]
                %728 = vst [vmem:[%s726] sm:$0xff] %v727
                %v729 = vld [vmem:[%s725 + $0x8] sm:$0xff]
                %730 = vst [vmem:[%s726 + $0x8] sm:$0xff] %v729
                %v731 = vld [vmem:[%s725 + $0x10] sm:$0xff]
                %732 = vst [vmem:[%s726 + $0x20] sm:$0xff] %v731
                %v733 = vld [vmem:[%s725 + $0x18] sm:$0xff]
                %734 = vst [vmem:[%s726 + $0x28] sm:$0xff] %v733
              $region95: #{transformer_forward.54} parent=89 // loop_footer
                %s724 = sadd.s32 1, %s720
              $region96: #{transformer_forward.54} parent=89 // loop_footer_branch
                %719 = sbr.rel target = $region92
              $region97: #{transformer_forward.54} parent=89 // loop_exit
                _
            $region90: #{transformer_forward.54} parent=85 // pred_fallthru
              _
            // Predicated region
            $region98: #{transformer_forward.54} parent=85 // pred_check
              _
            $region99: #{transformer_forward.54} parent=85 // pred_check_branch
              %736 = sbr.rel target = $region101
            $region100: #{transformer_forward.54} parent=85 // pred_region
              _
            $region101: #{transformer_forward.54} parent=85 // pred_fallthru
              _
          $region86: #{transformer_forward.54} parent=81 // pred_fallthru
            _
          %737 = vnop
        $region82: #{transformer_forward.54} parent=65 // pred_fallthru
          _
      $region66: #{transformer_forward.54} parent=5 // pred_fallthru
        _
      %p738 = scmp.le.s32.totalorder 2, %s9
      // Predicated region
      $region102: #{transformer_forward.54} parent=5 // pred_check
        %p739 = pneg %p738
      $region103: #{transformer_forward.54} parent=5 // pred_check_branch
        %741 = sbr.rel (%p739) target = $region105
      $region104: #{transformer_forward.54} parent=5 // pred_region
        %s742 = ssub.s32 %s9, 2
        // Predicated region
        $region106: #{transformer_forward.54} parent=104 // pred_check
          %p743 = pneg %p141
        $region107: #{transformer_forward.54} parent=104 // pred_check_branch
          %745 = sbr.rel (%p743) target = $region109
        $region108: #{transformer_forward.54} parent=104 // pred_region
          %s746 = sand.u32 %s126, 1
          %s747 = sand.u32 %s126, 1
          %s748 = smul.addr %s747, 32
          %s749 = scalar_lea.vmem [#allocation4], %s748
        $region109: #{transformer_forward.54} parent=104 // pred_fallthru
          _
      $region105: #{transformer_forward.54} parent=5 // pred_fallthru
        _
    $region6: #{transformer_forward.54} parent=1 // loop_footer
      %s13 = sadd.s32 1, %s9
    $region7: #{transformer_forward.54} parent=1 // loop_footer_branch
      %8 = sbr.rel target = $region3
    $region8: #{transformer_forward.54} parent=1 // loop_exit
      _

// kernel: transformer_forward.53
$region0: #{transformer_forward.53}
  #allocation0 [shape = 'u32[]', space=smem, size = 0x4, offset = 0x4, fixed_abs, tag = 'smem constant byte address 0x4 - core index']
  #allocation1 [shape = 'u32[144,128]{1,0:T(1,128)}', space=vmem, size = 0x12000, scoped, tag = 'internal scratch']
  #allocation2 [shape = 'f32[16,256]{1,0:T(8,128)}', space=vmem, size = 0x4000, scoped, tag = 'scratch operand']
  %s0 = inlined_call_operand.vmem [shape: f32[16,256], index: 0, kind: input, shape index: {}]
  %s1 = inlined_call_operand.vmem [shape: bf16[256,256], index: 1, kind: input, shape index: {}]
  %s2 = inlined_call_operand.vmem [shape: f32[1,256], index: 2, kind: input, shape index: {}]
  %s3 = inlined_call_operand.vmem [shape: f32[16,256], index: 3, kind: output, shape index: {}]
  %s4 = sld [smem:[#allocation0]]
  $region30: #{transformer_forward.53} parent=0
    _
  %s6 = ssub.s32 1, %s4
  %s7 = scalar_select 0, %s6, %s4
  // Predicated region
  $region2: #{transformer_forward.53} parent=0 // pred_check
    _
  $region3: #{transformer_forward.53} parent=0 // pred_check_branch
    %9 = sbr.rel (0) target = $region5
  $region4: #{transformer_forward.53} parent=0 // pred_region
    _
  $region5: #{transformer_forward.53} parent=0 // pred_fallthru
    _
  // Predicated region
  $region6: #{transformer_forward.53} parent=0 // pred_check
    _
  $region7: #{transformer_forward.53} parent=0 // pred_check_branch
    %11 = sbr.rel (0) target = $region9
  $region8: #{transformer_forward.53} parent=0 // pred_region
    _
  $region9: #{transformer_forward.53} parent=0 // pred_fallthru
    _
  // Predicated region
  $region10: #{transformer_forward.53} parent=0 // pred_check
    _
  $region11: #{transformer_forward.53} parent=0 // pred_check_branch
    %13 = sbr.rel (0) target = $region13
  $region12: #{transformer_forward.53} parent=0 // pred_region
    _
  $region13: #{transformer_forward.53} parent=0 // pred_fallthru
    _
  %p14 = scmp.eq.s32.totalorder 0, 0
  // Predicated region
  $region14: #{transformer_forward.53} parent=0 // pred_check
    %p15 = pneg %p14
  $region15: #{transformer_forward.53} parent=0 // pred_check_branch
    %17 = sbr.rel (%p15) target = $region17
  $region16: #{transformer_forward.53} parent=0 // pred_region
    %18 = vst [vmem:[#allocation2] sm:$0xff] 0.0
    %19 = vst [vmem:[#allocation2 + $0x8] sm:$0xff] 0.0
    %20 = vst [vmem:[#allocation2 + $0x10] sm:$0xff] 0.0
    %21 = vst [vmem:[#allocation2 + $0x18] sm:$0xff] 0.0
  $region17: #{transformer_forward.53} parent=0 // pred_fallthru
    _
  %v22 = vld [vmem:[#allocation2] sm:$0xff]
  %v23 = vld [vmem:[#allocation2 + $0x8] sm:$0xff]
  %v24 = vld [vmem:[#allocation2 + $0x10] sm:$0xff]
  %v25 = vld [vmem:[#allocation2 + $0x18] sm:$0xff]
  %v26 = vld [vmem:[%s0] sm:$0xff]
  %v27 = vld [vmem:[%s0 + $0x8] sm:$0xff]
  %v28 = vld [vmem:[%s0 + $0x10] sm:$0xff]
  %v29 = vld [vmem:[%s0 + $0x18] sm:$0xff]
  %v30 = vpack.c.bf16 %v28, %v26
  %v31 = vpack.c.bf16 %v29, %v27
  %v32 = vld [vmem:[%s1] sm:$0xff]
  %v33 = vld [vmem:[%s1 + $0x8] sm:$0xff]
  %v34 = vld [vmem:[%s1 + $0x10] sm:$0xff]
  %v35 = vld [vmem:[%s1 + $0x18] sm:$0xff]
  %v36 = vld [vmem:[%s1 + $0x20] sm:$0xff]
  %v37 = vld [vmem:[%s1 + $0x28] sm:$0xff]
  %v38 = vld [vmem:[%s1 + $0x30] sm:$0xff]
  %v39 = vld [vmem:[%s1 + $0x38] sm:$0xff]
  %v40 = vld [vmem:[%s1 + $0x40] sm:$0xff]
  %v41 = vld [vmem:[%s1 + $0x48] sm:$0xff]
  %v42 = vld [vmem:[%s1 + $0x50] sm:$0xff]
  %v43 = vld [vmem:[%s1 + $0x58] sm:$0xff]
  %v44 = vld [vmem:[%s1 + $0x60] sm:$0xff]
  %v45 = vld [vmem:[%s1 + $0x68] sm:$0xff]
  %v46 = vld [vmem:[%s1 + $0x70] sm:$0xff]
  %v47 = vld [vmem:[%s1 + $0x78] sm:$0xff]
  %v48 = vld [vmem:[%s1 + $0x80] sm:$0xff]
  %v49 = vld [vmem:[%s1 + $0x88] sm:$0xff]
  %v50 = vld [vmem:[%s1 + $0x90] sm:$0xff]
  %v51 = vld [vmem:[%s1 + $0x98] sm:$0xff]
  %v52 = vld [vmem:[%s1 + $0xa0] sm:$0xff]
  %v53 = vld [vmem:[%s1 + $0xa8] sm:$0xff]
  %v54 = vld [vmem:[%s1 + $0xb0] sm:$0xff]
  %v55 = vld [vmem:[%s1 + $0xb8] sm:$0xff]
  %v56 = vld [vmem:[%s1 + $0xc0] sm:$0xff]
  %v57 = vld [vmem:[%s1 + $0xc8] sm:$0xff]
  %v58 = vld [vmem:[%s1 + $0xd0] sm:$0xff]
  %v59 = vld [vmem:[%s1 + $0xd8] sm:$0xff]
  %v60 = vld [vmem:[%s1 + $0xe0] sm:$0xff]
  %v61 = vld [vmem:[%s1 + $0xe8] sm:$0xff]
  %v62 = vld [vmem:[%s1 + $0xf0] sm:$0xff]
  %v63 = vld [vmem:[%s1 + $0xf8] sm:$0xff]
  %v96 = vunpack.c.l.b16 %v32
  %v97 = vunpack.c.h.b16 %v32
  %v98 = vunpack.c.l.b16 %v33
  %v99 = vunpack.c.h.b16 %v33
  %v100 = vunpack.c.l.b16 %v34
  %v101 = vunpack.c.h.b16 %v34
  %v102 = vunpack.c.l.b16 %v35
  %v103 = vunpack.c.h.b16 %v35
  %v104 = vunpack.c.l.b16 %v36
  %v105 = vunpack.c.h.b16 %v36
  %v106 = vunpack.c.l.b16 %v37
  %v107 = vunpack.c.h.b16 %v37
  %v108 = vunpack.c.l.b16 %v38
  %v109 = vunpack.c.h.b16 %v38
  %v110 = vunpack.c.l.b16 %v39
  %v111 = vunpack.c.h.b16 %v39
  %v112 = vunpack.c.l.b16 %v40
  %v113 = vunpack.c.h.b16 %v40
  %v114 = vunpack.c.l.b16 %v41
  %v115 = vunpack.c.h.b16 %v41
  %v116 = vunpack.c.l.b16 %v42
  %v117 = vunpack.c.h.b16 %v42
  %v118 = vunpack.c.l.b16 %v43
  %v119 = vunpack.c.h.b16 %v43
  %v120 = vunpack.c.l.b16 %v44
  %v121 = vunpack.c.h.b16 %v44
  %v122 = vunpack.c.l.b16 %v45
  %v123 = vunpack.c.h.b16 %v45
  %v124 = vunpack.c.l.b16 %v46
  %v125 = vunpack.c.h.b16 %v46
  %v126 = vunpack.c.l.b16 %v47
  %v127 = vunpack.c.h.b16 %v47
  %v128 = vunpack.c.l.b16 %v48
  %v129 = vunpack.c.h.b16 %v48
  %v130 = vunpack.c.l.b16 %v49
  %v131 = vunpack.c.h.b16 %v49
  %v132 = vunpack.c.l.b16 %v50
  %v133 = vunpack.c.h.b16 %v50
  %v134 = vunpack.c.l.b16 %v51
  %v135 = vunpack.c.h.b16 %v51
  %v136 = vunpack.c.l.b16 %v52
  %v137 = vunpack.c.h.b16 %v52
  %v138 = vunpack.c.l.b16 %v53
  %v139 = vunpack.c.h.b16 %v53
  %v140 = vunpack.c.l.b16 %v54
  %v141 = vunpack.c.h.b16 %v54
  %v142 = vunpack.c.l.b16 %v55
  %v143 = vunpack.c.h.b16 %v55
  %v144 = vunpack.c.l.b16 %v56
  %v145 = vunpack.c.h.b16 %v56
  %v146 = vunpack.c.l.b16 %v57
  %v147 = vunpack.c.h.b16 %v57
  %v148 = vunpack.c.l.b16 %v58
  %v149 = vunpack.c.h.b16 %v58
  %v150 = vunpack.c.l.b16 %v59
  %v151 = vunpack.c.h.b16 %v59
  %v152 = vunpack.c.l.b16 %v60
  %v153 = vunpack.c.h.b16 %v60
  %v154 = vunpack.c.l.b16 %v61
  %v155 = vunpack.c.h.b16 %v61
  %v156 = vunpack.c.l.b16 %v62
  %v157 = vunpack.c.h.b16 %v62
  %v158 = vunpack.c.l.b16 %v63
  %v159 = vunpack.c.h.b16 %v63
  %v160 = vpack.c.b16 %v98, %v96
  %v161 = vpack.c.b16 %v99, %v97
  %v162 = vpack.c.b16 %v102, %v100
  %v163 = vpack.c.b16 %v103, %v101
  %v164 = vpack.c.b16 %v106, %v104
  %v165 = vpack.c.b16 %v107, %v105
  %v166 = vpack.c.b16 %v110, %v108
  %v167 = vpack.c.b16 %v111, %v109
  %v168 = vpack.c.b16 %v114, %v112
  %v169 = vpack.c.b16 %v115, %v113
  %v170 = vpack.c.b16 %v118, %v116
  %v171 = vpack.c.b16 %v119, %v117
  %v172 = vpack.c.b16 %v122, %v120
  %v173 = vpack.c.b16 %v123, %v121
  %v174 = vpack.c.b16 %v126, %v124
  %v175 = vpack.c.b16 %v127, %v125
  %v176 = vpack.c.b16 %v130, %v128
  %v177 = vpack.c.b16 %v131, %v129
  %v178 = vpack.c.b16 %v134, %v132
  %v179 = vpack.c.b16 %v135, %v133
  %v180 = vpack.c.b16 %v138, %v136
  %v181 = vpack.c.b16 %v139, %v137
  %v182 = vpack.c.b16 %v142, %v140
  %v183 = vpack.c.b16 %v143, %v141
  %v184 = vpack.c.b16 %v146, %v144
  %v185 = vpack.c.b16 %v147, %v145
  %v186 = vpack.c.b16 %v150, %v148
  %v187 = vpack.c.b16 %v151, %v149
  %v188 = vpack.c.b16 %v154, %v152
  %v189 = vpack.c.b16 %v155, %v153
  %v190 = vpack.c.b16 %v158, %v156
  %v191 = vpack.c.b16 %v159, %v157
  %224 = vmatprep.subr.bf16.mxu0 %v161
  %225 = vmatpush1.bf16.msra.mxu0 %v160
  %226 = vmatprep.subr.bf16.mxu0 %v163
  %227 = vmatpush1.bf16.msra.mxu0 %v162
  %228 = vmatprep.subr.bf16.mxu0 %v165
  %229 = vmatpush1.bf16.msra.mxu0 %v164
  %230 = vmatprep.subr.bf16.mxu0 %v167
  %231 = vmatpush1.bf16.msra.mxu0 %v166
  %232 = vmatprep.subr.bf16.mxu0 %v169
  %233 = vmatpush1.bf16.msra.mxu0 %v168
  %234 = vmatprep.subr.bf16.mxu0 %v171
  %235 = vmatpush1.bf16.msra.mxu0 %v170
  %236 = vmatprep.subr.bf16.mxu0 %v173
  %237 = vmatpush1.bf16.msra.mxu0 %v172
  %238 = vmatprep.subr.bf16.mxu0 %v175
  %239 = vmatpush1.bf16.msra.mxu0 %v174
  %240 = vmatprep.subr.bf16.mxu0 %v177
  %241 = vmatpush1.bf16.msra.mxu0 %v176
  %242 = vmatprep.subr.bf16.mxu0 %v179
  %243 = vmatpush1.bf16.msra.mxu0 %v178
  %244 = vmatprep.subr.bf16.mxu0 %v181
  %245 = vmatpush1.bf16.msra.mxu0 %v180
  %246 = vmatprep.subr.bf16.mxu0 %v183
  %247 = vmatpush1.bf16.msra.mxu0 %v182
  %248 = vmatprep.subr.bf16.mxu0 %v185
  %249 = vmatpush1.bf16.msra.mxu0 %v184
  %250 = vmatprep.subr.bf16.mxu0 %v187
  %251 = vmatpush1.bf16.msra.mxu0 %v186
  %252 = vmatprep.subr.bf16.mxu0 %v189
  %253 = vmatpush1.bf16.msra.mxu0 %v188
  %254 = vmatprep.subr.bf16.mxu0 %v191
  %255 = vmatpush1.bf16.msra.mxu0 %v190
  %256 = vmatprep.mubr.bf16.mxu0 %v31
  %257 = vmatmul.mubr.bf16.gmra.mrb[0].mxu0 %v30
  %v258 = vpop.f32.mrb[0].mxu0
  %v259 = vadd.f32 0.0, %v258
  %v260 = vpop.f32.mrb[0].mxu0
  %v261 = vadd.f32 0.0, %v260
  %v262 = vpop.f32.mrb[0].mxu0
  %v263 = vadd.f32 0.0, %v262
  %v264 = vpop.f32.mrb[0].mxu0
  %v265 = vadd.f32 0.0, %v264
  %266 = vdwg.mxu0
  %v267 = vadd.f32 %v22, %v259
  %v268 = vadd.f32 %v23, %v261
  %v269 = vadd.f32 %v24, %v263
  %v270 = vadd.f32 %v25, %v265
  %271 = vst [vmem:[#allocation2] sm:$0xff] %v267
  %272 = vst [vmem:[#allocation2 + $0x8] sm:$0xff] %v268
  %273 = vst [vmem:[#allocation2 + $0x10] sm:$0xff] %v269
  %274 = vst [vmem:[#allocation2 + $0x18] sm:$0xff] %v270
  // Predicated region
  $region18: #{transformer_forward.53} parent=0 // pred_check
    %p275 = pneg %p14
  $region19: #{transformer_forward.53} parent=0 // pred_check_branch
    %277 = sbr.rel (%p275) target = $region21
  $region20: #{transformer_forward.53} parent=0 // pred_region
    %v278 = vld [vmem:[#allocation2] sm:$0xff]
    %v279 = vld [vmem:[#allocation2 + $0x8] sm:$0xff]
    %v280 = vld [vmem:[#allocation2 + $0x10] sm:$0xff]
    %v281 = vld [vmem:[#allocation2 + $0x18] sm:$0xff]
    %v282 = vld [vmem:[%s2] sm:$0x3]
    %v284 = vlaneseq
    %v285 = vshrl.u32 %v284, 7
    %v286 = vsub.s32 0, %v285
    %v287 = vrot.slane %v282, %v286
    %v288 = vlaneseq
    %v289 = vshrl.u32 %v288, 7
    %v290 = vsub.s32 1, %v289
    %v291 = vrot.slane %v282, %v290
    %v294 = vadd.f32 %v278, %v287
    %v295 = vadd.f32 %v279, %v291
    %v296 = vadd.f32 %v280, %v287
    %v297 = vadd.f32 %v281, %v291
    %298 = vst [vmem:[%s3] sm:$0xff] %v294
    %299 = vst [vmem:[%s3 + $0x8] sm:$0xff] %v295
    %300 = vst [vmem:[%s3 + $0x10] sm:$0xff] %v296
    %301 = vst [vmem:[%s3 + $0x18] sm:$0xff] %v297
  $region21: #{transformer_forward.53} parent=0 // pred_fallthru
    _
  // Predicated region
  $region22: #{transformer_forward.53} parent=0 // pred_check
    _
  $region23: #{transformer_forward.53} parent=0 // pred_check_branch
    %303 = sbr.rel (0) target = $region25
  $region24: #{transformer_forward.53} parent=0 // pred_region
    _
  $region25: #{transformer_forward.53} parent=0 // pred_fallthru
    _
  // Predicated region
  $region26: #{transformer_forward.53} parent=0 // pred_check
    _
  $region27: #{transformer_forward.53} parent=0 // pred_check_branch
    %305 = sbr.rel (0) target = $region29
  $region28: #{transformer_forward.53} parent=0 // pred_region
    _
  $region29: #{transformer_forward.53} parent=0 // pred_fallthru
    _

// kernel: transformer_forward.55
$region0: #{transformer_forward.55}
  #allocation0 [shape = 'u32[]', space=smem, size = 0x4, offset = 0x4, fixed_abs, tag = 'smem constant byte address 0x4 - core index']
  #allocation1 [shape = 'u32[144,128]{1,0:T(1,128)}', space=vmem, size = 0x12000, scoped, tag = 'internal scratch']
  #allocation2 [shape = 'f32[2,8,1]{2,1,0:T(8,128)}', space=vmem, size = 0x2000, scoped, tag = 'scratch operand']
  #allocation3 [shape = 'f32[2,8,1]{2,1,0:T(8,128)}', space=vmem, size = 0x2000, scoped, tag = 'scratch operand']
  #allocation4 [shape = 'f32[2,8,128]{2,1,0:T(8,128)}', space=vmem, size = 0x2000, scoped, tag = 'scratch operand']
  %s0 = inlined_call_operand.vmem [shape: f32[2,8,256], index: 0, kind: input, shape index: {}]
  %s1 = inlined_call_operand.vmem [shape: f32[2,8,512], index: 1, kind: input, shape index: {}]
  %s2 = inlined_call_operand.vmem [shape: f32[2,1,8], index: 2, kind: input, shape index: {}]
  %s3 = inlined_call_operand.vmem [shape: f32[2,8,256], index: 3, kind: output, shape index: {}]
  %s4 = sld [smem:[#allocation0]]
  $region53: #{transformer_forward.55} parent=0
    _
  %s6 = ssub.s32 1, %s4
  %s7 = scalar_select 0, %s6, %s4
  loop: start=0, step=1, limit=4
  $region2: #{transformer_forward.55} parent=0 // loop_pre_header
    _
  $region3: #{transformer_forward.55} parent=0 // loop_header
    %s9 = sphi 0, %s13
    %p10 = scmp.ge.s32.totalorder %s9, 4
    %s16 = sphi 0, %s35
    %s17 = sphi 0, %s31
    %s18 = sphi 0, %s27
    %s19 = sphi 0, %s16
    %s20 = sphi 0, %s17
    %s21 = sphi 0, %s18
    %s22 = sphi 0, %s19
    %s23 = sphi 0, %s20
    %s24 = sphi 0, %s21
    %s40 = sphi 0, %s42
    %s43 = sphi 0, %s40
    %s44 = sphi 0, %s43
    %s60 = sphi 0, %s44
    %s68 = sphi 0, %s70
    %s71 = sphi 0, %s68
    %s72 = sphi 0, %s71
    %s88 = sphi 0, %s72
    %s96 = sphi 0, %s98
    %s99 = sphi 0, %s96
    %s100 = sphi 0, %s99
    %s116 = sphi 0, %s100
    %s124 = sphi 0, %s126
    %s127 = sphi 0, %s124
    %s128 = sphi 0, %s127
    %s144 = sphi 0, %s128
  $region4: #{transformer_forward.55} parent=0 // loop_header_branch
    %12 = sbr.rel (%p10) target = $region8
  $region5: #{transformer_forward.55} parent=0 // loop_body
    %s14 = ssub.s32 %s9, 1
    %s15 = ssub.s32 %s9, 2
    %s25 = sadd.s32 1, %s18
    %p26 = scmp.ge.s32.totalorder %s25, 1
    %s27 = scalar_select %p26, 0, %s25
    %s28 = sadd.s32 1, %s17
    %s29 = scalar_select %p26, %s28, %s17
    %p30 = scmp.ge.s32.totalorder %s29, 1
    %s31 = scalar_select %p30, 0, %s29
    %s32 = sadd.s32 1, %s16
    %s33 = scalar_select %p30, %s32, %s16
    %p34 = scmp.ge.s32.totalorder %s33, 2
    %s35 = scalar_select %p34, 0, %s33
    %s36 = ssub.s32 %s16, %s35
    %s37 = ssub.s32 %s17, %s31
    %s38 = sor.u32 %s36, %s37
    %p39 = scmp.eq.s32.totalorder %s38, 0
    %s41 = sadd.s32 %s40, 1
    %s42 = scalar_select %p39, %s40, %s41
    %p45 = pneg %p39
    %p46 = scmp.eq.s32.totalorder %s9, 1
    %p47 = por %p45, %p46
    %p48 = scmp.ne.s32.totalorder %s40, %s43
    %p49 = scmp.eq.s32.totalorder %s9, 0
    %p50 = por %p48, %p49
    %p51 = scmp.ne.s32.totalorder %s40, %s43
    %p52 = scmp.eq.s32.totalorder %s14, 1
    %p53 = por %p51, %p52
    %p54 = scmp.ne.s32.totalorder %s43, %s44
    %p55 = scmp.eq.s32.totalorder %s14, 0
    %p56 = por %p54, %p55
    %p57 = scmp.ne.s32.totalorder %s43, %s44
    %p58 = scmp.eq.s32.totalorder %s15, 1
    %p59 = por %p57, %p58
    %p61 = scmp.ne.s32.totalorder %s44, %s60
    %p62 = scmp.eq.s32.totalorder %s15, 0
    %p63 = por %p61, %p62
    %s64 = ssub.s32 %s16, %s35
    %s65 = ssub.s32 %s18, %s27
    %s66 = sor.u32 %s64, %s65
    %p67 = scmp.eq.s32.totalorder %s66, 0
    %s69 = sadd.s32 %s68, 1
    %s70 = scalar_select %p67, %s68, %s69
    %p73 = pneg %p67
    %p74 = scmp.eq.s32.totalorder %s9, 1
    %p75 = por %p73, %p74
    %p76 = scmp.ne.s32.totalorder %s68, %s71
    %p77 = scmp.eq.s32.totalorder %s9, 0
    %p78 = por %p76, %p77
    %p79 = scmp.ne.s32.totalorder %s68, %s71
    %p80 = scmp.eq.s32.totalorder %s14, 1
    %p81 = por %p79, %p80
    %p82 = scmp.ne.s32.totalorder %s71, %s72
    %p83 = scmp.eq.s32.totalorder %s14, 0
    %p84 = por %p82, %p83
    %p85 = scmp.ne.s32.totalorder %s71, %s72
    %p86 = scmp.eq.s32.totalorder %s15, 1
    %p87 = por %p85, %p86
    %p89 = scmp.ne.s32.totalorder %s72, %s88
    %p90 = scmp.eq.s32.totalorder %s15, 0
    %p91 = por %p89, %p90
    %s92 = ssub.s32 %s16, %s35
    %s93 = ssub.s32 %s18, %s27
    %s94 = sor.u32 %s92, %s93
    %p95 = scmp.eq.s32.totalorder %s94, 0
    %s97 = sadd.s32 %s96, 1
    %s98 = scalar_select %p95, %s96, %s97
    %p101 = pneg %p95
    %p102 = scmp.eq.s32.totalorder %s9, 1
    %p103 = por %p101, %p102
    %p104 = scmp.ne.s32.totalorder %s96, %s99
    %p105 = scmp.eq.s32.totalorder %s9, 0
    %p106 = por %p104, %p105
    %p107 = scmp.ne.s32.totalorder %s96, %s99
    %p108 = scmp.eq.s32.totalorder %s14, 1
    %p109 = por %p107, %p108
    %p110 = scmp.ne.s32.totalorder %s99, %s100
    %p111 = scmp.eq.s32.totalorder %s14, 0
    %p112 = por %p110, %p111
    %p113 = scmp.ne.s32.totalorder %s99, %s100
    %p114 = scmp.eq.s32.totalorder %s15, 1
    %p115 = por %p113, %p114
    %p117 = scmp.ne.s32.totalorder %s100, %s116
    %p118 = scmp.eq.s32.totalorder %s15, 0
    %p119 = por %p117, %p118
    %s120 = ssub.s32 %s16, %s35
    %s121 = ssub.s32 %s17, %s31
    %s122 = sor.u32 %s120, %s121
    %p123 = scmp.eq.s32.totalorder %s122, 0
    %s125 = sadd.s32 %s124, 1
    %s126 = scalar_select %p123, %s124, %s125
    %p129 = pneg %p123
    %p130 = scmp.eq.s32.totalorder %s9, 1
    %p131 = por %p129, %p130
    %p132 = scmp.ne.s32.totalorder %s124, %s127
    %p133 = scmp.eq.s32.totalorder %s9, 0
    %p134 = por %p132, %p133
    %p135 = scmp.ne.s32.totalorder %s124, %s127
    %p136 = scmp.eq.s32.totalorder %s14, 1
    %p137 = por %p135, %p136
    %p138 = scmp.ne.s32.totalorder %s127, %s128
    %p139 = scmp.eq.s32.totalorder %s14, 0
    %p140 = por %p138, %p139
    %p141 = scmp.ne.s32.totalorder %s127, %s128
    %p142 = scmp.eq.s32.totalorder %s15, 1
    %p143 = por %p141, %p142
    %p145 = scmp.ne.s32.totalorder %s128, %s144
    %p146 = scmp.eq.s32.totalorder %s15, 0
    %p147 = por %p145, %p146
    %p148 = scmp.le.s32.totalorder 1, %s9
    %p149 = scmp.lt.s32.totalorder %s9, 3
    %p150 = pnand %p148, %p149
    %p151 = pneg %p150
    // Predicated region
    $region9: #{transformer_forward.55} parent=5 // pred_check
      _
    $region10: #{transformer_forward.55} parent=5 // pred_check_branch
      %153 = sbr.rel (%p150) target = $region12
    $region11: #{transformer_forward.55} parent=5 // pred_region
      %s154 = ssub.s32 %s9, 1
    $region12: #{transformer_forward.55} parent=5 // pred_fallthru
      _
    %p155 = scmp.lt.s32.totalorder %s9, 2
    // Predicated region
    $region13: #{transformer_forward.55} parent=5 // pred_check
      %p156 = pneg %p155
    $region14: #{transformer_forward.55} parent=5 // pred_check_branch
      %158 = sbr.rel (%p156) target = $region16
    $region15: #{transformer_forward.55} parent=5 // pred_region
      // Predicated region
      $region17: #{transformer_forward.55} parent=15 // pred_check
        %p159 = pneg %p50
      $region18: #{transformer_forward.55} parent=15 // pred_check_branch
        %161 = sbr.rel (%p159) target = $region20
      $region19: #{transformer_forward.55} parent=15 // pred_region
        %p162 = scmp.lt.s32.totalorder %s16, 1
        %s163 = scalar_select %p162, %s16, 1
        %p164 = scmp.lt.s32.totalorder %s17, 0
        %s165 = scalar_select %p164, %s17, 0
        %s166 = smul.addr %s165, 2
        %s167 = smul.addr %s163, 2
        %s168 = sadd.s32 %s166, %s167
        %s169 = smul.addr %s168, 8
        %s170 = scalar_lea.vmem %s0, %s169
      $region20: #{transformer_forward.55} parent=15 // pred_fallthru
        _
      // Predicated region
      $region21: #{transformer_forward.55} parent=15 // pred_check
        %p171 = pneg %p78
      $region22: #{transformer_forward.55} parent=15 // pred_check_branch
        %173 = sbr.rel (%p171) target = $region24
      $region23: #{transformer_forward.55} parent=15 // pred_region
        %p174 = scmp.lt.s32.totalorder %s16, 1
        %s175 = scalar_select %p174, %s16, 1
        %p176 = scmp.lt.s32.totalorder %s18, 0
        %s177 = scalar_select %p176, %s18, 0
        %s178 = smul.addr %s177, 4
        %s179 = smul.addr %s175, 4
        %s180 = sadd.s32 %s178, %s179
        %s181 = smul.addr %s180, 8
        %s182 = scalar_lea.vmem %s1, %s181
      $region24: #{transformer_forward.55} parent=15 // pred_fallthru
        _
      // Predicated region
      $region25: #{transformer_forward.55} parent=15 // pred_check
        %p183 = pneg %p106
      $region26: #{transformer_forward.55} parent=15 // pred_check_branch
        %185 = sbr.rel (%p183) target = $region28
      $region27: #{transformer_forward.55} parent=15 // pred_region
        %p186 = scmp.lt.s32.totalorder %s16, 1
        %s187 = scalar_select %p186, %s16, 1
        %p188 = scmp.lt.s32.totalorder %s18, 0
        %s189 = scalar_select %p188, %s18, 0
        %s190 = sadd.s32 %s189, %s187
        %s191 = scalar_lea.vmem %s2, %s190
      $region28: #{transformer_forward.55} parent=15 // pred_fallthru
        _
    $region16: #{transformer_forward.55} parent=5 // pred_fallthru
      _
    %p192 = scmp.le.s32.totalorder 1, %s9
    %p193 = scmp.lt.s32.totalorder %s9, 3
    %p194 = pnand %p192, %p193
    %p195 = pneg %p194
    // Predicated region
    $region29: #{transformer_forward.55} parent=5 // pred_check
      _
    $region30: #{transformer_forward.55} parent=5 // pred_check_branch
      %197 = sbr.rel (%p194) target = $region32
    $region31: #{transformer_forward.55} parent=5 // pred_region
      %s198 = ssub.s32 %s9, 1
      %p199 = scmp.lt.s32.totalorder %s19, 1
      %s200 = scalar_select %p199, %s19, 1
      %p201 = scmp.lt.s32.totalorder %s20, 0
      %s202 = scalar_select %p201, %s20, 0
      %s203 = smul.addr %s202, 2
      %s204 = smul.addr %s200, 2
      %s205 = sadd.s32 %s203, %s204
      %s206 = smul.addr %s205, 8
      %s207 = scalar_lea.vmem %s0, %s206
      %p208 = pneg %p56
      %p209 = pneg %p53
      %p210 = scmp.lt.s32.totalorder %s19, 1
      %s211 = scalar_select %p210, %s19, 1
      %p212 = scmp.lt.s32.totalorder %s21, 0
      %s213 = scalar_select %p212, %s21, 0
      %s214 = smul.addr %s213, 4
      %s215 = smul.addr %s211, 4
      %s216 = sadd.s32 %s214, %s215
      %s217 = smul.addr %s216, 8
      %s218 = scalar_lea.vmem %s1, %s217
      %p219 = pneg %p84
      %p220 = pneg %p81
      %p221 = scmp.lt.s32.totalorder %s19, 1
      %s222 = scalar_select %p221, %s19, 1
      %p223 = scmp.lt.s32.totalorder %s21, 0
      %s224 = scalar_select %p223, %s21, 0
      %s225 = sadd.s32 %s224, %s222
      %s226 = scalar_lea.vmem %s2, %s225
      %p227 = pneg %p112
      %p228 = pneg %p109
      %p229 = pneg %p140
      %p230 = pneg %p137
      %p231 = scmp.lt.s32.totalorder %s19, 1
      %s232 = scalar_select %p231, %s19, 1
      %p233 = scmp.lt.s32.totalorder %s20, 0
      %s234 = scalar_select %p233, %s20, 0
      %s235 = smul.addr %s234, 2
      %s236 = smul.addr %s232, 2
      %s237 = sadd.s32 %s235, %s236
      %s238 = smul.addr %s237, 8
      %s239 = scalar_lea.vmem %s3, %s238
      %p240 = scmp.lt.s32.totalorder %s19, 1
      %s241 = scalar_select %p240, %s19, 1
      %p242 = scmp.lt.s32.totalorder %s20, 0
      %s243 = scalar_select %p242, %s20, 0
      %s244 = smul.addr %s243, 2
      %s245 = smul.addr %s241, 2
      %s246 = sadd.s32 %s244, %s245
      %s247 = smul.addr %s246, 8
      %s248 = scalar_lea.vmem %s0, %s247
      %p249 = scmp.lt.s32.totalorder %s19, 1
      %s250 = scalar_select %p249, %s19, 1
      %p251 = scmp.lt.s32.totalorder %s21, 0
      %s252 = scalar_select %p251, %s21, 0
      %s253 = smul.addr %s252, 4
      %s254 = smul.addr %s250, 4
      %s255 = sadd.s32 %s253, %s254
      %s256 = smul.addr %s255, 8
      %s257 = scalar_lea.vmem %s1, %s256
      %p258 = scmp.lt.s32.totalorder %s19, 1
      %s259 = scalar_select %p258, %s19, 1
      %p260 = scmp.lt.s32.totalorder %s21, 0
      %s261 = scalar_select %p260, %s21, 0
      %s262 = sadd.s32 %s261, %s259
      %s263 = scalar_lea.vmem %s2, %s262
      %p264 = scmp.lt.s32.totalorder %s19, 1
      %s265 = scalar_select %p264, %s19, 1
      %p266 = scmp.lt.s32.totalorder %s20, 0
      %s267 = scalar_select %p266, %s20, 0
      %s268 = smul.addr %s267, 2
      %s269 = smul.addr %s265, 2
      %s270 = sadd.s32 %s268, %s269
      %s271 = smul.addr %s270, 8
      %s272 = scalar_lea.vmem %s3, %s271
      %p274 = scmp.eq.s32.totalorder %s21, 0
      // Predicated region
      $region33: #{transformer_forward.55} parent=31 // pred_check
        %p275 = pneg %p274
      $region34: #{transformer_forward.55} parent=31 // pred_check_branch
        %277 = sbr.rel (%p275) target = $region36
      $region35: #{transformer_forward.55} parent=31 // pred_region
        %vm278 = vcmask 7168
        %279 = vst.msk [vmem:[#allocation2] sm:$0xff] %vm278, -1e+30
        %280 = vst.msk [vmem:[#allocation2 + $0x8] sm:$0xff] %vm278, -1e+30
        %281 = vst.msk [vmem:[#allocation3] sm:$0xff] %vm278, 0.0
        %282 = vst.msk [vmem:[#allocation3 + $0x8] sm:$0xff] %vm278, 0.0
        %283 = vst [vmem:[#allocation4] sm:$0xff] 0.0
        %284 = vst [vmem:[#allocation4 + $0x8] sm:$0xff] 0.0
      $region36: #{transformer_forward.55} parent=31 // pred_fallthru
        _
      %v285 = vld [vmem:[%s263] sm:$0x1]
      %s286 = smul.u32 %s20, 8
      %v287 = vlaneseq
      %v288 = vshrl.u32 %v287, 7
      %v289 = vstv %s286
      %v290 = vadd.s32 %v289, %v288
      %s291 = smul.u32 %s21, 8
      %v292 = vlaneseq
      %v293 = vand.u32 %v292, 127
      %v294 = vstv %s291
      %v295 = vadd.s32 %v294, %v293
      %vm296 = vcmp.gt.s32.totalorder %v295, %v290
      %v297 = vsel %vm296, -1e+09, 0.0
      %v299 = vlaneseq
      %v300 = vshrl.u32 %v299, 7
      %v301 = vsub.s32 0, %v300
      %v302 = vrot.slane %v285, %v301
      %v304 = vadd.f32 %v302, %v297
      %v305 = vld [vmem:[%s248] sm:$0xff]
      %v306 = vpack.c.bf16 %v305, %v305
      %v307 = vld [vmem:[%s257] sm:$0xff]
      %v308 = vpack.c.bf16 %v307, %v307
      %v309 = vld [vmem:[%s257 + $0x10] sm:$0xff]
      %v310 = vpack.c.bf16 %v309, %v309
      %311 = vmatprep.subr.bf16.mxu0 0
      %312 = vmatpush1.bf16.xpose.msra.mxu0 %v308
      %313 = vmatprep.subr.bf16.mxu0 0
      %314 = vmatpush1.bf16.xpose.msra.mxu0 0
      %315 = vmatprep.subr.bf16.mxu0 0
      %316 = vmatpush1.bf16.xpose.msra.mxu0 0
      %317 = vmatprep.subr.bf16.mxu0 0
      %318 = vmatpush1.bf16.xpose.msra.mxu0 0
      %319 = vmatprep.subr.bf16.mxu0 0
      %320 = vmatpush1.bf16.xpose.msra.mxu0 0
      %321 = vmatprep.subr.bf16.mxu0 0
      %322 = vmatpush1.bf16.xpose.msra.mxu0 0
      %323 = vmatprep.subr.bf16.mxu0 0
      %324 = vmatpush1.bf16.xpose.msra.mxu0 0
      %325 = vmatprep.subr.bf16.mxu0 0
      %326 = vmatpush1.bf16.xpose.msra.mxu0 0
      %327 = vmatprep.subr.bf16.mxu0 0
      %328 = vmatpush1.bf16.xpose.msra.mxu0 0
      %329 = vmatprep.subr.bf16.mxu0 0
      %330 = vmatpush1.bf16.xpose.msra.mxu0 0
      %331 = vmatprep.subr.bf16.mxu0 0
      %332 = vmatpush1.bf16.xpose.msra.mxu0 0
      %333 = vmatprep.subr.bf16.mxu0 0
      %334 = vmatpush1.bf16.xpose.msra.mxu0 0
      %335 = vmatprep.subr.bf16.mxu0 0
      %336 = vmatpush1.bf16.xpose.msra.mxu0 0
      %337 = vmatprep.subr.bf16.mxu0 0
      %338 = vmatpush1.bf16.xpose.msra.mxu0 0
      %339 = vmatprep.subr.bf16.mxu0 0
      %340 = vmatpush1.bf16.xpose.msra.mxu0 0
      %341 = vmatprep.subr.bf16.mxu0 0
      %342 = vmatpush1.bf16.xpose.msra.mxu0 0
      %343 = vmatprep.mubr.bf16.mxu0 0
      %344 = vmatmul.mubr.bf16.gmra.mrb[0].mxu0 %v306
      %v345 = vpop.f32.mrb[0].mxu0
      %v346 = vadd.f32 0.0, %v345
      %v347 = vpop.f32.mrb[0].mxu0
      %v348 = vpop.f32.mrb[0].mxu0
      %v349 = vpop.f32.mrb[0].mxu0
      %350 = vdwg.mxu0
      %v351 = vmul.f32 %v346, 0.088388346
      %v352 = vadd.f32 %v351, %v304
      %v353 = vld [vmem:[#allocation2] sm:$0xff]
      %vm354 = vcmask 64512
      %v355 = vsel %vm354, %v352, -inf
      %356 = vmax.xlane.f32.xlu0 %v355
      %v357 = vpop.xlane.xlu0 %356
      %v358 = vmax.f32 %v353, %v357
      %v359 = vsub.f32 %v353, %v358
      %v360 = vmul.f32 %v359, 1.442695
      %v361 = vpow.pop %v360
      %363 = vset.pattern.permute.xlu0 0
      %364 = vperm.xlu0 %363, %v358
      %v365 = vpop.permute.xlu0 %364
      %v367 = vsub.f32 %v352, %v365
      %v368 = vmul.f32 %v367, 1.442695
      %v369 = vpow.pop %v368
      %v370 = vld [vmem:[#allocation3] sm:$0xff]
      %v371 = vmul.f32 %v361, %v370
      %v372 = vsel %vm354, %v369, 0.0
      %373 = vadd.xlane.f32.xlu0 %v372
      %v374 = vpop.xlane.xlu0 %373
      %v375 = vadd.f32 %v371, %v374
      %vm376 = vcmask 7168
      %377 = vst.msk [vmem:[#allocation3] sm:$0xff] %vm376, %v375
      %v378 = vld [vmem:[#allocation4] sm:$0xff]
      %380 = vset.pattern.permute.xlu0 0
      %381 = vperm.xlu0 %380, %v361
      %v382 = vpop.permute.xlu0 %381
      %v384 = vmul.f32 %v382, %v378
      %v385 = vpack.c.bf16 %v369, %v369
      %v387 = vsel %vm354, %v385, 0
      %vm389 = vcmask 1043456
      %v391 = vsel %vm389, %v310, 0
      %393 = vmatprep.subr.bf16.mxu0 0
      %394 = vmatpush1.bf16.msra.mxu0 %v391
      %395 = vmatprep.subr.bf16.mxu0 0
      %396 = vmatpush1.bf16.msra.mxu0 0
      %397 = vmatprep.subr.bf16.mxu0 0
      %398 = vmatpush1.bf16.msra.mxu0 0
      %399 = vmatprep.subr.bf16.mxu0 0
      %400 = vmatpush1.bf16.msra.mxu0 0
      %401 = vmatprep.subr.bf16.mxu0 0
      %402 = vmatpush1.bf16.msra.mxu0 0
      %403 = vmatprep.subr.bf16.mxu0 0
      %404 = vmatpush1.bf16.msra.mxu0 0
      %405 = vmatprep.subr.bf16.mxu0 0
      %406 = vmatpush1.bf16.msra.mxu0 0
      %407 = vmatprep.subr.bf16.mxu0 0
      %408 = vmatpush1.bf16.msra.mxu0 0
      %409 = vmatprep.subr.bf16.mxu0 0
      %410 = vmatpush1.bf16.msra.mxu0 0
      %411 = vmatprep.subr.bf16.mxu0 0
      %412 = vmatpush1.bf16.msra.mxu0 0
      %413 = vmatprep.subr.bf16.mxu0 0
      %414 = vmatpush1.bf16.msra.mxu0 0
      %415 = vmatprep.subr.bf16.mxu0 0
      %416 = vmatpush1.bf16.msra.mxu0 0
      %417 = vmatprep.subr.bf16.mxu0 0
      %418 = vmatpush1.bf16.msra.mxu0 0
      %419 = vmatprep.subr.bf16.mxu0 0
      %420 = vmatpush1.bf16.msra.mxu0 0
      %421 = vmatprep.subr.bf16.mxu0 0
      %422 = vmatpush1.bf16.msra.mxu0 0
      %423 = vmatprep.subr.bf16.mxu0 0
      %424 = vmatpush1.bf16.msra.mxu0 0
      %425 = vmatprep.mubr.bf16.mxu0 0
      %426 = vmatmul.mubr.bf16.gmra.mrb[0].mxu0 %v387
      %v427 = vpop.f32.mrb[0].mxu0
      %v428 = vadd.f32 0.0, %v427
      %v429 = vpop.f32.mrb[0].mxu0
      %v430 = vpop.f32.mrb[0].mxu0
      %v431 = vpop.f32.mrb[0].mxu0
      %432 = vdwg.mxu0
      %v433 = vadd.f32 %v384, %v428
      %434 = vst [vmem:[#allocation4] sm:$0xff] %v433
      %435 = vst.msk [vmem:[#allocation2] sm:$0xff] %vm376, %v358
      %v436 = vld [vmem:[%s248 + $0x8] sm:$0xff]
      %v437 = vpack.c.bf16 %v436, %v436
      %v438 = vld [vmem:[%s257 + $0x8] sm:$0xff]
      %v439 = vpack.c.bf16 %v438, %v438
      %v440 = vld [vmem:[%s257 + $0x18] sm:$0xff]
      %v441 = vpack.c.bf16 %v440, %v440
      %442 = vmatprep.subr.bf16.mxu0 0
      %443 = vmatpush1.bf16.xpose.msra.mxu0 %v439
      %444 = vmatprep.subr.bf16.mxu0 0
      %445 = vmatpush1.bf16.xpose.msra.mxu0 0
      %446 = vmatprep.subr.bf16.mxu0 0
      %447 = vmatpush1.bf16.xpose.msra.mxu0 0
      %448 = vmatprep.subr.bf16.mxu0 0
      %449 = vmatpush1.bf16.xpose.msra.mxu0 0
      %450 = vmatprep.subr.bf16.mxu0 0
      %451 = vmatpush1.bf16.xpose.msra.mxu0 0
      %452 = vmatprep.subr.bf16.mxu0 0
      %453 = vmatpush1.bf16.xpose.msra.mxu0 0
      %454 = vmatprep.subr.bf16.mxu0 0
      %455 = vmatpush1.bf16.xpose.msra.mxu0 0
      %456 = vmatprep.subr.bf16.mxu0 0
      %457 = vmatpush1.bf16.xpose.msra.mxu0 0
      %458 = vmatprep.subr.bf16.mxu0 0
      %459 = vmatpush1.bf16.xpose.msra.mxu0 0
      %460 = vmatprep.subr.bf16.mxu0 0
      %461 = vmatpush1.bf16.xpose.msra.mxu0 0
      %462 = vmatprep.subr.bf16.mxu0 0
      %463 = vmatpush1.bf16.xpose.msra.mxu0 0
      %464 = vmatprep.subr.bf16.mxu0 0
      %465 = vmatpush1.bf16.xpose.msra.mxu0 0
      %466 = vmatprep.subr.bf16.mxu0 0
      %467 = vmatpush1.bf16.xpose.msra.mxu0 0
      %468 = vmatprep.subr.bf16.mxu0 0
      %469 = vmatpush1.bf16.xpose.msra.mxu0 0
      %470 = vmatprep.subr.bf16.mxu0 0
      %471 = vmatpush1.bf16.xpose.msra.mxu0 0
      %472 = vmatprep.subr.bf16.mxu0 0
      %473 = vmatpush1.bf16.xpose.msra.mxu0 0
      %474 = vmatprep.mubr.bf16.mxu0 0
      %475 = vmatmul.mubr.bf16.gmra.mrb[0].mxu0 %v437
      %v476 = vpop.f32.mrb[0].mxu0
      %v477 = vadd.f32 0.0, %v476
      %v478 = vpop.f32.mrb[0].mxu0
      %v479 = vpop.f32.mrb[0].mxu0
      %v480 = vpop.f32.mrb[0].mxu0
      %481 = vdwg.mxu0
      %v482 = vmul.f32 %v477, 0.088388346
      %v483 = vadd.f32 %v482, %v304
      %s484 = scalar_lea.vmem [#allocation2], 8
      %v485 = vld [vmem:[%s484] sm:$0xff]
      %v486 = vsel %vm354, %v483, -inf
      %487 = vmax.xlane.f32.xlu0 %v486
      %v488 = vpop.xlane.xlu0 %487
      %v489 = vmax.f32 %v485, %v488
      %v490 = vsub.f32 %v485, %v489
      %v491 = vmul.f32 %v490, 1.442695
      %v492 = vpow.pop %v491
      %494 = vset.pattern.permute.xlu0 0
      %495 = vperm.xlu0 %494, %v489
      %v496 = vpop.permute.xlu0 %495
      %v498 = vsub.f32 %v483, %v496
      %v499 = vmul.f32 %v498, 1.442695
      %v500 = vpow.pop %v499
      %s501 = scalar_lea.vmem [#allocation3], 8
      %v502 = vld [vmem:[%s501] sm:$0xff]
      %v503 = vmul.f32 %v492, %v502
      %v504 = vsel %vm354, %v500, 0.0
      %505 = vadd.xlane.f32.xlu0 %v504
      %v506 = vpop.xlane.xlu0 %505
      %v507 = vadd.f32 %v503, %v506
      %508 = vst.msk [vmem:[%s501] sm:$0xff] %vm376, %v507
      %s509 = scalar_lea.vmem [#allocation4], 8
      %v510 = vld [vmem:[%s509] sm:$0xff]
      %512 = vset.pattern.permute.xlu0 0
      %513 = vperm.xlu0 %512, %v492
      %v514 = vpop.permute.xlu0 %513
      %v516 = vmul.f32 %v514, %v510
      %v517 = vpack.c.bf16 %v500, %v500
      %v519 = vsel %vm354, %v517, 0
      %v522 = vsel %vm389, %v441, 0
      %524 = vmatprep.subr.bf16.mxu0 0
      %525 = vmatpush1.bf16.msra.mxu0 %v522
      %526 = vmatprep.subr.bf16.mxu0 0
      %527 = vmatpush1.bf16.msra.mxu0 0
      %528 = vmatprep.subr.bf16.mxu0 0
      %529 = vmatpush1.bf16.msra.mxu0 0
      %530 = vmatprep.subr.bf16.mxu0 0
      %531 = vmatpush1.bf16.msra.mxu0 0
      %532 = vmatprep.subr.bf16.mxu0 0
      %533 = vmatpush1.bf16.msra.mxu0 0
      %534 = vmatprep.subr.bf16.mxu0 0
      %535 = vmatpush1.bf16.msra.mxu0 0
      %536 = vmatprep.subr.bf16.mxu0 0
      %537 = vmatpush1.bf16.msra.mxu0 0
      %538 = vmatprep.subr.bf16.mxu0 0
      %539 = vmatpush1.bf16.msra.mxu0 0
      %540 = vmatprep.subr.bf16.mxu0 0
      %541 = vmatpush1.bf16.msra.mxu0 0
      %542 = vmatprep.subr.bf16.mxu0 0
      %543 = vmatpush1.bf16.msra.mxu0 0
      %544 = vmatprep.subr.bf16.mxu0 0
      %545 = vmatpush1.bf16.msra.mxu0 0
      %546 = vmatprep.subr.bf16.mxu0 0
      %547 = vmatpush1.bf16.msra.mxu0 0
      %548 = vmatprep.subr.bf16.mxu0 0
      %549 = vmatpush1.bf16.msra.mxu0 0
      %550 = vmatprep.subr.bf16.mxu0 0
      %551 = vmatpush1.bf16.msra.mxu0 0
      %552 = vmatprep.subr.bf16.mxu0 0
      %553 = vmatpush1.bf16.msra.mxu0 0
      %554 = vmatprep.subr.bf16.mxu0 0
      %555 = vmatpush1.bf16.msra.mxu0 0
      %556 = vmatprep.mubr.bf16.mxu0 0
      %557 = vmatmul.mubr.bf16.gmra.mrb[0].mxu0 %v519
      %v558 = vpop.f32.mrb[0].mxu0
      %v559 = vadd.f32 0.0, %v558
      %v560 = vpop.f32.mrb[0].mxu0
      %v561 = vpop.f32.mrb[0].mxu0
      %v562 = vpop.f32.mrb[0].mxu0
      %563 = vdwg.mxu0
      %v564 = vadd.f32 %v516, %v559
      %565 = vst [vmem:[%s509] sm:$0xff] %v564
      %566 = vst.msk [vmem:[%s484] sm:$0xff] %vm376, %v489
      // Predicated region
      $region37: #{transformer_forward.55} parent=31 // pred_check
        %p567 = pneg %p274
      $region38: #{transformer_forward.55} parent=31 // pred_check_branch
        %569 = sbr.rel (%p567) target = $region40
      $region39: #{transformer_forward.55} parent=31 // pred_region
        %v570 = vld [vmem:[#allocation3] sm:$0xff]
        %v571 = vrcp.pop %v570
        %v572 = vld [vmem:[#allocation4] sm:$0xff]
        %574 = vset.pattern.permute.xlu0 0
        %575 = vperm.xlu0 %574, %v571
        %v576 = vpop.permute.xlu0 %575
        %v578 = vmul.f32 %v572, %v576
        %579 = vst [vmem:[%s272] sm:$0xff] %v578
        %v580 = vld [vmem:[%s501] sm:$0xff]
        %v581 = vrcp.pop %v580
        %v582 = vld [vmem:[%s509] sm:$0xff]
        %584 = vset.pattern.permute.xlu0 0
        %585 = vperm.xlu0 %584, %v581
        %v586 = vpop.permute.xlu0 %585
        %v588 = vmul.f32 %v582, %v586
        %589 = vst [vmem:[%s272 + $0x8] sm:$0xff] %v588
      $region40: #{transformer_forward.55} parent=31 // pred_fallthru
        _
      %p590 = scmp.lt.s32.totalorder %s19, 1
      %s591 = scalar_select %p590, %s19, 1
      %p592 = scmp.lt.s32.totalorder %s20, 0
      %s593 = scalar_select %p592, %s20, 0
      %s594 = smul.addr %s593, 2
      %s595 = smul.addr %s591, 2
      %s596 = sadd.s32 %s594, %s595
      %s597 = smul.addr %s596, 8
      %s598 = scalar_lea.vmem %s3, %s597
      // Predicated region
      $region41: #{transformer_forward.55} parent=31 // pred_check
        %p599 = pneg %p137
      $region42: #{transformer_forward.55} parent=31 // pred_check_branch
        %601 = sbr.rel (%p599) target = $region44
      $region43: #{transformer_forward.55} parent=31 // pred_region
        _
      $region44: #{transformer_forward.55} parent=31 // pred_fallthru
        _
    $region32: #{transformer_forward.55} parent=5 // pred_fallthru
      _
    %p602 = scmp.le.s32.totalorder 2, %s9
    // Predicated region
    $region45: #{transformer_forward.55} parent=5 // pred_check
      %p603 = pneg %p602
    $region46: #{transformer_forward.55} parent=5 // pred_check_branch
      %605 = sbr.rel (%p603) target = $region48
    $region47: #{transformer_forward.55} parent=5 // pred_region
      %s606 = ssub.s32 %s9, 2
      // Predicated region
      $region49: #{transformer_forward.55} parent=47 // pred_check
        %p607 = pneg %p143
      $region50: #{transformer_forward.55} parent=47 // pred_check_branch
        %609 = sbr.rel (%p607) target = $region52
      $region51: #{transformer_forward.55} parent=47 // pred_region
        %p610 = scmp.lt.s32.totalorder %s22, 1
        %s611 = scalar_select %p610, %s22, 1
        %p612 = scmp.lt.s32.totalorder %s23, 0
        %s613 = scalar_select %p612, %s23, 0
        %s614 = smul.addr %s613, 2
        %s615 = smul.addr %s611, 2
        %s616 = sadd.s32 %s614, %s615
        %s617 = smul.addr %s616, 8
        %s618 = scalar_lea.vmem %s3, %s617
      $region52: #{transformer_forward.55} parent=47 // pred_fallthru
        _
    $region48: #{transformer_forward.55} parent=5 // pred_fallthru
      _
  $region6: #{transformer_forward.55} parent=0 // loop_footer
    %s13 = sadd.s32 1, %s9
  $region7: #{transformer_forward.55} parent=0 // loop_footer_branch
    %8 = sbr.rel target = $region3
  $region8: #{transformer_forward.55} parent=0 // loop_exit
    _

// kernel: transformer_forward.77
$region0: #{transformer_forward.77}
  #allocation0 [shape = 'u32[]', space=smem, size = 0x4, offset = 0x4, fixed_abs, tag = 'smem constant byte address 0x4 - core index']
  #allocation1 [shape = 'u32[144,128]{1,0:T(1,128)}', space=vmem, size = 0x12000, scoped, tag = 'internal scratch']
  #allocation2 [shape = 'f32[16,16]{1,0:T(8,128)}', space=vmem, size = 0x2000, scoped, tag = 'scratch operand']
  %s0 = inlined_call_operand.vmem [shape: f32[16,256], index: 0, kind: input, shape index: {}]
  %s1 = inlined_call_operand.vmem [shape: bf16[256,16], index: 1, kind: input, shape index: {}]
  %s2 = inlined_call_operand.vmem [shape: f32[1,16], index: 2, kind: input, shape index: {}]
  %s3 = inlined_call_operand.vmem [shape: f32[16,16], index: 3, kind: output, shape index: {}]
  %s4 = sld [smem:[#allocation0]]
  $region30: #{transformer_forward.77} parent=0
    _
  %s6 = ssub.s32 1, %s4
  %s7 = scalar_select 0, %s6, %s4
  // Predicated region
  $region2: #{transformer_forward.77} parent=0 // pred_check
    _
  $region3: #{transformer_forward.77} parent=0 // pred_check_branch
    %9 = sbr.rel (0) target = $region5
  $region4: #{transformer_forward.77} parent=0 // pred_region
    _
  $region5: #{transformer_forward.77} parent=0 // pred_fallthru
    _
  // Predicated region
  $region6: #{transformer_forward.77} parent=0 // pred_check
    _
  $region7: #{transformer_forward.77} parent=0 // pred_check_branch
    %11 = sbr.rel (0) target = $region9
  $region8: #{transformer_forward.77} parent=0 // pred_region
    _
  $region9: #{transformer_forward.77} parent=0 // pred_fallthru
    _
  // Predicated region
  $region10: #{transformer_forward.77} parent=0 // pred_check
    _
  $region11: #{transformer_forward.77} parent=0 // pred_check_branch
    %13 = sbr.rel (0) target = $region13
  $region12: #{transformer_forward.77} parent=0 // pred_region
    _
  $region13: #{transformer_forward.77} parent=0 // pred_fallthru
    _
  %p15 = scmp.eq.s32.totalorder 0, 0
  // Predicated region
  $region14: #{transformer_forward.77} parent=0 // pred_check
    %p16 = pneg %p15
  $region15: #{transformer_forward.77} parent=0 // pred_check_branch
    %18 = sbr.rel (%p16) target = $region17
  $region16: #{transformer_forward.77} parent=0 // pred_region
    %vm19 = vcmask 130048
    %20 = vst.msk [vmem:[#allocation2] sm:$0xff] %vm19, 0.0
    %21 = vst.msk [vmem:[#allocation2 + $0x8] sm:$0xff] %vm19, 0.0
  $region17: #{transformer_forward.77} parent=0 // pred_fallthru
    _
  %v22 = vld [vmem:[#allocation2] sm:$0xff]
  %v23 = vld [vmem:[#allocation2 + $0x8] sm:$0xff]
  %v24 = vld [vmem:[%s0] sm:$0xff]
  %v25 = vld [vmem:[%s0 + $0x8] sm:$0xff]
  %v26 = vld [vmem:[%s0 + $0x10] sm:$0xff]
  %v27 = vld [vmem:[%s0 + $0x18] sm:$0xff]
  %v28 = vpack.c.bf16 %v26, %v24
  %v29 = vpack.c.bf16 %v27, %v25
  %v30 = vld [vmem:[%s1] sm:$0xf]
  %v31 = vld [vmem:[%s1 + $0x4] sm:$0xf]
  %v32 = vld [vmem:[%s1 + $0x8] sm:$0xf]
  %v33 = vld [vmem:[%s1 + $0xc] sm:$0xf]
  %v34 = vld [vmem:[%s1 + $0x10] sm:$0xf]
  %v35 = vld [vmem:[%s1 + $0x14] sm:$0xf]
  %v36 = vld [vmem:[%s1 + $0x18] sm:$0xf]
  %v37 = vld [vmem:[%s1 + $0x1c] sm:$0xf]
  %v38 = vld [vmem:[%s1 + $0x20] sm:$0xf]
  %v39 = vld [vmem:[%s1 + $0x24] sm:$0xf]
  %v40 = vld [vmem:[%s1 + $0x28] sm:$0xf]
  %v41 = vld [vmem:[%s1 + $0x2c] sm:$0xf]
  %v42 = vld [vmem:[%s1 + $0x30] sm:$0xf]
  %v43 = vld [vmem:[%s1 + $0x34] sm:$0xf]
  %v44 = vld [vmem:[%s1 + $0x38] sm:$0xf]
  %v45 = vld [vmem:[%s1 + $0x3c] sm:$0xf]
  %v46 = vld [vmem:[%s1 + $0x40] sm:$0xf]
  %v47 = vld [vmem:[%s1 + $0x44] sm:$0xf]
  %v48 = vld [vmem:[%s1 + $0x48] sm:$0xf]
  %v49 = vld [vmem:[%s1 + $0x4c] sm:$0xf]
  %v50 = vld [vmem:[%s1 + $0x50] sm:$0xf]
  %v51 = vld [vmem:[%s1 + $0x54] sm:$0xf]
  %v52 = vld [vmem:[%s1 + $0x58] sm:$0xf]
  %v53 = vld [vmem:[%s1 + $0x5c] sm:$0xf]
  %v54 = vld [vmem:[%s1 + $0x60] sm:$0xf]
  %v55 = vld [vmem:[%s1 + $0x64] sm:$0xf]
  %v56 = vld [vmem:[%s1 + $0x68] sm:$0xf]
  %v57 = vld [vmem:[%s1 + $0x6c] sm:$0xf]
  %v58 = vld [vmem:[%s1 + $0x70] sm:$0xf]
  %v59 = vld [vmem:[%s1 + $0x74] sm:$0xf]
  %v60 = vld [vmem:[%s1 + $0x78] sm:$0xf]
  %v61 = vld [vmem:[%s1 + $0x7c] sm:$0xf]
  %v94 = vunpack.c.l.b16 %v30
  %v95 = vunpack.c.l.b16 %v31
  %v96 = vunpack.c.l.b16 %v32
  %v97 = vunpack.c.l.b16 %v33
  %v98 = vunpack.c.l.b16 %v34
  %v99 = vunpack.c.l.b16 %v35
  %v100 = vunpack.c.l.b16 %v36
  %v101 = vunpack.c.l.b16 %v37
  %v102 = vunpack.c.l.b16 %v38
  %v103 = vunpack.c.l.b16 %v39
  %v104 = vunpack.c.l.b16 %v40
  %v105 = vunpack.c.l.b16 %v41
  %v106 = vunpack.c.l.b16 %v42
  %v107 = vunpack.c.l.b16 %v43
  %v108 = vunpack.c.l.b16 %v44
  %v109 = vunpack.c.l.b16 %v45
  %v110 = vunpack.c.l.b16 %v46
  %v111 = vunpack.c.l.b16 %v47
  %v112 = vunpack.c.l.b16 %v48
  %v113 = vunpack.c.l.b16 %v49
  %v114 = vunpack.c.l.b16 %v50
  %v115 = vunpack.c.l.b16 %v51
  %v116 = vunpack.c.l.b16 %v52
  %v117 = vunpack.c.l.b16 %v53
  %v118 = vunpack.c.l.b16 %v54
  %v119 = vunpack.c.l.b16 %v55
  %v120 = vunpack.c.l.b16 %v56
  %v121 = vunpack.c.l.b16 %v57
  %v122 = vunpack.c.l.b16 %v58
  %v123 = vunpack.c.l.b16 %v59
  %v124 = vunpack.c.l.b16 %v60
  %v125 = vunpack.c.l.b16 %v61
  %v126 = vpack.c.b16 %v95, %v94
  %v127 = vpack.c.b16 %v97, %v96
  %v128 = vpack.c.b16 %v99, %v98
  %v129 = vpack.c.b16 %v101, %v100
  %v130 = vpack.c.b16 %v103, %v102
  %v131 = vpack.c.b16 %v105, %v104
  %v132 = vpack.c.b16 %v107, %v106
  %v133 = vpack.c.b16 %v109, %v108
  %v134 = vpack.c.b16 %v111, %v110
  %v135 = vpack.c.b16 %v113, %v112
  %v136 = vpack.c.b16 %v115, %v114
  %v137 = vpack.c.b16 %v117, %v116
  %v138 = vpack.c.b16 %v119, %v118
  %v139 = vpack.c.b16 %v121, %v120
  %v140 = vpack.c.b16 %v123, %v122
  %v141 = vpack.c.b16 %v125, %v124
  %158 = vmatprep.subr.bf16.mxu0 0
  %159 = vmatpush1.bf16.msra.mxu0 %v126
  %160 = vmatprep.subr.bf16.mxu0 0
  %161 = vmatpush1.bf16.msra.mxu0 %v127
  %162 = vmatprep.subr.bf16.mxu0 0
  %163 = vmatpush1.bf16.msra.mxu0 %v128
  %164 = vmatprep.subr.bf16.mxu0 0
  %165 = vmatpush1.bf16.msra.mxu0 %v129
  %166 = vmatprep.subr.bf16.mxu0 0
  %167 = vmatpush1.bf16.msra.mxu0 %v130
  %168 = vmatprep.subr.bf16.mxu0 0
  %169 = vmatpush1.bf16.msra.mxu0 %v131
  %170 = vmatprep.subr.bf16.mxu0 0
  %171 = vmatpush1.bf16.msra.mxu0 %v132
  %172 = vmatprep.subr.bf16.mxu0 0
  %173 = vmatpush1.bf16.msra.mxu0 %v133
  %174 = vmatprep.subr.bf16.mxu0 0
  %175 = vmatpush1.bf16.msra.mxu0 %v134
  %176 = vmatprep.subr.bf16.mxu0 0
  %177 = vmatpush1.bf16.msra.mxu0 %v135
  %178 = vmatprep.subr.bf16.mxu0 0
  %179 = vmatpush1.bf16.msra.mxu0 %v136
  %180 = vmatprep.subr.bf16.mxu0 0
  %181 = vmatpush1.bf16.msra.mxu0 %v137
  %182 = vmatprep.subr.bf16.mxu0 0
  %183 = vmatpush1.bf16.msra.mxu0 %v138
  %184 = vmatprep.subr.bf16.mxu0 0
  %185 = vmatpush1.bf16.msra.mxu0 %v139
  %186 = vmatprep.subr.bf16.mxu0 0
  %187 = vmatpush1.bf16.msra.mxu0 %v140
  %188 = vmatprep.subr.bf16.mxu0 0
  %189 = vmatpush1.bf16.msra.mxu0 %v141
  %190 = vmatprep.mubr.bf16.mxu0 %v29
  %191 = vmatmul.mubr.bf16.gmra.mrb[0].mxu0 %v28
  %v192 = vpop.f32.mrb[0].mxu0
  %v193 = vadd.f32 0.0, %v192
  %v194 = vpop.f32.mrb[0].mxu0
  %v195 = vpop.f32.mrb[0].mxu0
  %v196 = vadd.f32 0.0, %v195
  %v197 = vpop.f32.mrb[0].mxu0
  %198 = vdwg.mxu0
  %v199 = vadd.f32 %v22, %v193
  %v200 = vadd.f32 %v23, %v196
  %vm201 = vcmask 130048
  %202 = vst.msk [vmem:[#allocation2] sm:$0xff] %vm201, %v199
  %203 = vst.msk [vmem:[#allocation2 + $0x8] sm:$0xff] %vm201, %v200
  // Predicated region
  $region18: #{transformer_forward.77} parent=0 // pred_check
    %p204 = pneg %p15
  $region19: #{transformer_forward.77} parent=0 // pred_check_branch
    %206 = sbr.rel (%p204) target = $region21
  $region20: #{transformer_forward.77} parent=0 // pred_region
    %v207 = vld [vmem:[#allocation2] sm:$0xff]
    %v208 = vld [vmem:[#allocation2 + $0x8] sm:$0xff]
    %v209 = vld [vmem:[%s2] sm:$0x1]
    %v211 = vlaneseq
    %v212 = vshrl.u32 %v211, 7
    %v213 = vsub.s32 0, %v212
    %v214 = vrot.slane %v209, %v213
    %v216 = vadd.f32 %v207, %v214
    %v217 = vadd.f32 %v208, %v214
    %218 = vst.msk [vmem:[%s3] sm:$0xff] %vm201, %v216
    %219 = vst.msk [vmem:[%s3 + $0x8] sm:$0xff] %vm201, %v217
  $region21: #{transformer_forward.77} parent=0 // pred_fallthru
    _
  // Predicated region
  $region22: #{transformer_forward.77} parent=0 // pred_check
    _
  $region23: #{transformer_forward.77} parent=0 // pred_check_branch
    %221 = sbr.rel (0) target = $region25
  $region24: #{transformer_forward.77} parent=0 // pred_region
    _
  $region25: #{transformer_forward.77} parent=0 // pred_fallthru
    _
  // Predicated region
  $region26: #{transformer_forward.77} parent=0 // pred_check
    _
  $region27: #{transformer_forward.77} parent=0 // pred_check_branch
    %223 = sbr.rel (0) target = $region29
  $region28: #{transformer_forward.77} parent=0 // pred_region
    _
  $region29: #{transformer_forward.77} parent=0 // pred_fallthru
    _

// kernel: transformer_forward.41
$region0: #{transformer_forward.41}
  #allocation0 [shape = 'u32[]', space=smem, size = 0x4, offset = 0x4, fixed_abs, tag = 'smem constant byte address 0x4 - core index']
  #allocation1 [shape = 'u32[144,128]{1,0:T(1,128)}', space=vmem, size = 0x12000, scoped, tag = 'internal scratch']
  #allocation2 [shape = 'f32[2,8,1]{2,1,0:T(8,128)}', space=vmem, size = 0x2000, scoped, tag = 'scratch operand']
  #allocation3 [shape = 'f32[2,8,1]{2,1,0:T(8,128)}', space=vmem, size = 0x2000, scoped, tag = 'scratch operand']
  #allocation4 [shape = 'f32[2,8,128]{2,1,0:T(8,128)}', space=vmem, size = 0x2000, scoped, tag = 'scratch operand']
  %s0 = inlined_call_operand.vmem [shape: f32[2,8,256], index: 0, kind: input, shape index: {}]
  %s1 = inlined_call_operand.vmem [shape: f32[2,8,512], index: 1, kind: input, shape index: {}]
  %s2 = inlined_call_operand.vmem [shape: f32[2,1,8], index: 2, kind: input, shape index: {}]
  %s3 = inlined_call_operand.vmem [shape: f32[2,8,256], index: 3, kind: output, shape index: {}]
  %s4 = sld [smem:[#allocation0]]
  $region53: #{transformer_forward.41} parent=0
    _
  %s6 = ssub.s32 1, %s4
  %s7 = scalar_select 0, %s6, %s4
  loop: start=0, step=1, limit=4
  $region2: #{transformer_forward.41} parent=0 // loop_pre_header
    _
  $region3: #{transformer_forward.41} parent=0 // loop_header
    %s9 = sphi 0, %s13
    %p10 = scmp.ge.s32.totalorder %s9, 4
    %s16 = sphi 0, %s35
    %s17 = sphi 0, %s31
    %s18 = sphi 0, %s27
    %s19 = sphi 0, %s16
    %s20 = sphi 0, %s17
    %s21 = sphi 0, %s18
    %s22 = sphi 0, %s19
    %s23 = sphi 0, %s20
    %s24 = sphi 0, %s21
    %s40 = sphi 0, %s42
    %s43 = sphi 0, %s40
    %s44 = sphi 0, %s43
    %s60 = sphi 0, %s44
    %s68 = sphi 0, %s70
    %s71 = sphi 0, %s68
    %s72 = sphi 0, %s71
    %s88 = sphi 0, %s72
    %s96 = sphi 0, %s98
    %s99 = sphi 0, %s96
    %s100 = sphi 0, %s99
    %s116 = sphi 0, %s100
    %s124 = sphi 0, %s126
    %s127 = sphi 0, %s124
    %s128 = sphi 0, %s127
    %s144 = sphi 0, %s128
  $region4: #{transformer_forward.41} parent=0 // loop_header_branch
    %12 = sbr.rel (%p10) target = $region8
  $region5: #{transformer_forward.41} parent=0 // loop_body
    %s14 = ssub.s32 %s9, 1
    %s15 = ssub.s32 %s9, 2
    %s25 = sadd.s32 1, %s18
    %p26 = scmp.ge.s32.totalorder %s25, 1
    %s27 = scalar_select %p26, 0, %s25
    %s28 = sadd.s32 1, %s17
    %s29 = scalar_select %p26, %s28, %s17
    %p30 = scmp.ge.s32.totalorder %s29, 1
    %s31 = scalar_select %p30, 0, %s29
    %s32 = sadd.s32 1, %s16
    %s33 = scalar_select %p30, %s32, %s16
    %p34 = scmp.ge.s32.totalorder %s33, 2
    %s35 = scalar_select %p34, 0, %s33
    %s36 = ssub.s32 %s16, %s35
    %s37 = ssub.s32 %s17, %s31
    %s38 = sor.u32 %s36, %s37
    %p39 = scmp.eq.s32.totalorder %s38, 0
    %s41 = sadd.s32 %s40, 1
    %s42 = scalar_select %p39, %s40, %s41
    %p45 = pneg %p39
    %p46 = scmp.eq.s32.totalorder %s9, 1
    %p47 = por %p45, %p46
    %p48 = scmp.ne.s32.totalorder %s40, %s43
    %p49 = scmp.eq.s32.totalorder %s9, 0
    %p50 = por %p48, %p49
    %p51 = scmp.ne.s32.totalorder %s40, %s43
    %p52 = scmp.eq.s32.totalorder %s14, 1
    %p53 = por %p51, %p52
    %p54 = scmp.ne.s32.totalorder %s43, %s44
    %p55 = scmp.eq.s32.totalorder %s14, 0
    %p56 = por %p54, %p55
    %p57 = scmp.ne.s32.totalorder %s43, %s44
    %p58 = scmp.eq.s32.totalorder %s15, 1
    %p59 = por %p57, %p58
    %p61 = scmp.ne.s32.totalorder %s44, %s60
    %p62 = scmp.eq.s32.totalorder %s15, 0
    %p63 = por %p61, %p62
    %s64 = ssub.s32 %s16, %s35
    %s65 = ssub.s32 %s18, %s27
    %s66 = sor.u32 %s64, %s65
    %p67 = scmp.eq.s32.totalorder %s66, 0
    %s69 = sadd.s32 %s68, 1
    %s70 = scalar_select %p67, %s68, %s69
    %p73 = pneg %p67
    %p74 = scmp.eq.s32.totalorder %s9, 1
    %p75 = por %p73, %p74
    %p76 = scmp.ne.s32.totalorder %s68, %s71
    %p77 = scmp.eq.s32.totalorder %s9, 0
    %p78 = por %p76, %p77
    %p79 = scmp.ne.s32.totalorder %s68, %s71
    %p80 = scmp.eq.s32.totalorder %s14, 1
    %p81 = por %p79, %p80
    %p82 = scmp.ne.s32.totalorder %s71, %s72
    %p83 = scmp.eq.s32.totalorder %s14, 0
    %p84 = por %p82, %p83
    %p85 = scmp.ne.s32.totalorder %s71, %s72
    %p86 = scmp.eq.s32.totalorder %s15, 1
    %p87 = por %p85, %p86
    %p89 = scmp.ne.s32.totalorder %s72, %s88
    %p90 = scmp.eq.s32.totalorder %s15, 0
    %p91 = por %p89, %p90
    %s92 = ssub.s32 %s16, %s35
    %s93 = ssub.s32 %s18, %s27
    %s94 = sor.u32 %s92, %s93
    %p95 = scmp.eq.s32.totalorder %s94, 0
    %s97 = sadd.s32 %s96, 1
    %s98 = scalar_select %p95, %s96, %s97
    %p101 = pneg %p95
    %p102 = scmp.eq.s32.totalorder %s9, 1
    %p103 = por %p101, %p102
    %p104 = scmp.ne.s32.totalorder %s96, %s99
    %p105 = scmp.eq.s32.totalorder %s9, 0
    %p106 = por %p104, %p105
    %p107 = scmp.ne.s32.totalorder %s96, %s99
    %p108 = scmp.eq.s32.totalorder %s14, 1
    %p109 = por %p107, %p108
    %p110 = scmp.ne.s32.totalorder %s99, %s100
    %p111 = scmp.eq.s32.totalorder %s14, 0
    %p112 = por %p110, %p111
    %p113 = scmp.ne.s32.totalorder %s99, %s100
    %p114 = scmp.eq.s32.totalorder %s15, 1
    %p115 = por %p113, %p114
    %p117 = scmp.ne.s32.totalorder %s100, %s116
    %p118 = scmp.eq.s32.totalorder %s15, 0
    %p119 = por %p117, %p118
    %s120 = ssub.s32 %s16, %s35
    %s121 = ssub.s32 %s17, %s31
    %s122 = sor.u32 %s120, %s121
    %p123 = scmp.eq.s32.totalorder %s122, 0
    %s125 = sadd.s32 %s124, 1
    %s126 = scalar_select %p123, %s124, %s125
    %p129 = pneg %p123
    %p130 = scmp.eq.s32.totalorder %s9, 1
    %p131 = por %p129, %p130
    %p132 = scmp.ne.s32.totalorder %s124, %s127
    %p133 = scmp.eq.s32.totalorder %s9, 0
    %p134 = por %p132, %p133
    %p135 = scmp.ne.s32.totalorder %s124, %s127
    %p136 = scmp.eq.s32.totalorder %s14, 1
    %p137 = por %p135, %p136
    %p138 = scmp.ne.s32.totalorder %s127, %s128
    %p139 = scmp.eq.s32.totalorder %s14, 0
    %p140 = por %p138, %p139
    %p141 = scmp.ne.s32.totalorder %s127, %s128
    %p142 = scmp.eq.s32.totalorder %s15, 1
    %p143 = por %p141, %p142
    %p145 = scmp.ne.s32.totalorder %s128, %s144
    %p146 = scmp.eq.s32.totalorder %s15, 0
    %p147 = por %p145, %p146
    %p148 = scmp.le.s32.totalorder 1, %s9
    %p149 = scmp.lt.s32.totalorder %s9, 3
    %p150 = pnand %p148, %p149
    %p151 = pneg %p150
    // Predicated region
    $region9: #{transformer_forward.41} parent=5 // pred_check
      _
    $region10: #{transformer_forward.41} parent=5 // pred_check_branch
      %153 = sbr.rel (%p150) target = $region12
    $region11: #{transformer_forward.41} parent=5 // pred_region
      %s154 = ssub.s32 %s9, 1
    $region12: #{transformer_forward.41} parent=5 // pred_fallthru
      _
    %p155 = scmp.lt.s32.totalorder %s9, 2
    // Predicated region
    $region13: #{transformer_forward.41} parent=5 // pred_check
      %p156 = pneg %p155
    $region14: #{transformer_forward.41} parent=5 // pred_check_branch
      %158 = sbr.rel (%p156) target = $region16
    $region15: #{transformer_forward.41} parent=5 // pred_region
      // Predicated region
      $region17: #{transformer_forward.41} parent=15 // pred_check
        %p159 = pneg %p50
      $region18: #{transformer_forward.41} parent=15 // pred_check_branch
        %161 = sbr.rel (%p159) target = $region20
      $region19: #{transformer_forward.41} parent=15 // pred_region
        %p162 = scmp.lt.s32.totalorder %s16, 1
        %s163 = scalar_select %p162, %s16, 1
        %p164 = scmp.lt.s32.totalorder %s17, 0
        %s165 = scalar_select %p164, %s17, 0
        %s166 = smul.addr %s165, 2
        %s167 = smul.addr %s163, 2
        %s168 = sadd.s32 %s166, %s167
        %s169 = smul.addr %s168, 8
        %s170 = scalar_lea.vmem %s0, %s169
      $region20: #{transformer_forward.41} parent=15 // pred_fallthru
        _
      // Predicated region
      $region21: #{transformer_forward.41} parent=15 // pred_check
        %p171 = pneg %p78
      $region22: #{transformer_forward.41} parent=15 // pred_check_branch
        %173 = sbr.rel (%p171) target = $region24
      $region23: #{transformer_forward.41} parent=15 // pred_region
        %p174 = scmp.lt.s32.totalorder %s16, 1
        %s175 = scalar_select %p174, %s16, 1
        %p176 = scmp.lt.s32.totalorder %s18, 0
        %s177 = scalar_select %p176, %s18, 0
        %s178 = smul.addr %s177, 4
        %s179 = smul.addr %s175, 4
        %s180 = sadd.s32 %s178, %s179
        %s181 = smul.addr %s180, 8
        %s182 = scalar_lea.vmem %s1, %s181
      $region24: #{transformer_forward.41} parent=15 // pred_fallthru
        _
      // Predicated region
      $region25: #{transformer_forward.41} parent=15 // pred_check
        %p183 = pneg %p106
      $region26: #{transformer_forward.41} parent=15 // pred_check_branch
        %185 = sbr.rel (%p183) target = $region28
      $region27: #{transformer_forward.41} parent=15 // pred_region
        %p186 = scmp.lt.s32.totalorder %s16, 1
        %s187 = scalar_select %p186, %s16, 1
        %p188 = scmp.lt.s32.totalorder %s18, 0
        %s189 = scalar_select %p188, %s18, 0
        %s190 = sadd.s32 %s189, %s187
        %s191 = scalar_lea.vmem %s2, %s190
      $region28: #{transformer_forward.41} parent=15 // pred_fallthru
        _
    $region16: #{transformer_forward.41} parent=5 // pred_fallthru
      _
    %p192 = scmp.le.s32.totalorder 1, %s9
    %p193 = scmp.lt.s32.totalorder %s9, 3
    %p194 = pnand %p192, %p193
    %p195 = pneg %p194
    // Predicated region
    $region29: #{transformer_forward.41} parent=5 // pred_check
      _
    $region30: #{transformer_forward.41} parent=5 // pred_check_branch
      %197 = sbr.rel (%p194) target = $region32
    $region31: #{transformer_forward.41} parent=5 // pred_region
      %s198 = ssub.s32 %s9, 1
      %p199 = scmp.lt.s32.totalorder %s19, 1
      %s200 = scalar_select %p199, %s19, 1
      %p201 = scmp.lt.s32.totalorder %s20, 0
      %s202 = scalar_select %p201, %s20, 0
      %s203 = smul.addr %s202, 2
      %s204 = smul.addr %s200, 2
      %s205 = sadd.s32 %s203, %s204
      %s206 = smul.addr %s205, 8
      %s207 = scalar_lea.vmem %s0, %s206
      %p208 = pneg %p56
      %p209 = pneg %p53
      %p210 = scmp.lt.s32.totalorder %s19, 1
      %s211 = scalar_select %p210, %s19, 1
      %p212 = scmp.lt.s32.totalorder %s21, 0
      %s213 = scalar_select %p212, %s21, 0
      %s214 = smul.addr %s213, 4
      %s215 = smul.addr %s211, 4
      %s216 = sadd.s32 %s214, %s215
      %s217 = smul.addr %s216, 8
      %s218 = scalar_lea.vmem %s1, %s217
      %p219 = pneg %p84
      %p220 = pneg %p81
      %p221 = scmp.lt.s32.totalorder %s19, 1
      %s222 = scalar_select %p221, %s19, 1
      %p223 = scmp.lt.s32.totalorder %s21, 0
      %s224 = scalar_select %p223, %s21, 0
      %s225 = sadd.s32 %s224, %s222
      %s226 = scalar_lea.vmem %s2, %s225
      %p227 = pneg %p112
      %p228 = pneg %p109
      %p229 = pneg %p140
      %p230 = pneg %p137
      %p231 = scmp.lt.s32.totalorder %s19, 1
      %s232 = scalar_select %p231, %s19, 1
      %p233 = scmp.lt.s32.totalorder %s20, 0
      %s234 = scalar_select %p233, %s20, 0
      %s235 = smul.addr %s234, 2
      %s236 = smul.addr %s232, 2
      %s237 = sadd.s32 %s235, %s236
      %s238 = smul.addr %s237, 8
      %s239 = scalar_lea.vmem %s3, %s238
      %p240 = scmp.lt.s32.totalorder %s19, 1
      %s241 = scalar_select %p240, %s19, 1
      %p242 = scmp.lt.s32.totalorder %s20, 0
      %s243 = scalar_select %p242, %s20, 0
      %s244 = smul.addr %s243, 2
      %s245 = smul.addr %s241, 2
      %s246 = sadd.s32 %s244, %s245
      %s247 = smul.addr %s246, 8
      %s248 = scalar_lea.vmem %s0, %s247
      %p249 = scmp.lt.s32.totalorder %s19, 1
      %s250 = scalar_select %p249, %s19, 1
      %p251 = scmp.lt.s32.totalorder %s21, 0
      %s252 = scalar_select %p251, %s21, 0
      %s253 = smul.addr %s252, 4
      %s254 = smul.addr %s250, 4
      %s255 = sadd.s32 %s253, %s254
      %s256 = smul.addr %s255, 8
      %s257 = scalar_lea.vmem %s1, %s256
      %p258 = scmp.lt.s32.totalorder %s19, 1
      %s259 = scalar_select %p258, %s19, 1
      %p260 = scmp.lt.s32.totalorder %s21, 0
      %s261 = scalar_select %p260, %s21, 0
      %s262 = sadd.s32 %s261, %s259
      %s263 = scalar_lea.vmem %s2, %s262
      %p264 = scmp.lt.s32.totalorder %s19, 1
      %s265 = scalar_select %p264, %s19, 1
      %p266 = scmp.lt.s32.totalorder %s20, 0
      %s267 = scalar_select %p266, %s20, 0
      %s268 = smul.addr %s267, 2
      %s269 = smul.addr %s265, 2
      %s270 = sadd.s32 %s268, %s269
      %s271 = smul.addr %s270, 8
      %s272 = scalar_lea.vmem %s3, %s271
      %p274 = scmp.eq.s32.totalorder %s21, 0
      // Predicated region
      $region33: #{transformer_forward.41} parent=31 // pred_check
        %p275 = pneg %p274
      $region34: #{transformer_forward.41} parent=31 // pred_check_branch
        %277 = sbr.rel (%p275) target = $region36
      $region35: #{transformer_forward.41} parent=31 // pred_region
        %vm278 = vcmask 7168
        %279 = vst.msk [vmem:[#allocation2] sm:$0xff] %vm278, -1e+30
        %280 = vst.msk [vmem:[#allocation2 + $0x8] sm:$0xff] %vm278, -1e+30
        %281 = vst.msk [vmem:[#allocation3] sm:$0xff] %vm278, 0.0
        %282 = vst.msk [vmem:[#allocation3 + $0x8] sm:$0xff] %vm278, 0.0
        %283 = vst [vmem:[#allocation4] sm:$0xff] 0.0
        %284 = vst [vmem:[#allocation4 + $0x8] sm:$0xff] 0.0
      $region36: #{transformer_forward.41} parent=31 // pred_fallthru
        _
      %v285 = vld [vmem:[%s263] sm:$0x1]
      %v286 = vld [vmem:[%s248] sm:$0xff]
      %v287 = vpack.c.bf16 %v286, %v286
      %v288 = vld [vmem:[%s257] sm:$0xff]
      %v289 = vpack.c.bf16 %v288, %v288
      %v290 = vld [vmem:[%s257 + $0x10] sm:$0xff]
      %v291 = vpack.c.bf16 %v290, %v290
      %292 = vmatprep.subr.bf16.mxu0 0
      %293 = vmatpush1.bf16.xpose.msra.mxu0 %v289
      %294 = vmatprep.subr.bf16.mxu0 0
      %295 = vmatpush1.bf16.xpose.msra.mxu0 0
      %296 = vmatprep.subr.bf16.mxu0 0
      %297 = vmatpush1.bf16.xpose.msra.mxu0 0
      %298 = vmatprep.subr.bf16.mxu0 0
      %299 = vmatpush1.bf16.xpose.msra.mxu0 0
      %300 = vmatprep.subr.bf16.mxu0 0
      %301 = vmatpush1.bf16.xpose.msra.mxu0 0
      %302 = vmatprep.subr.bf16.mxu0 0
      %303 = vmatpush1.bf16.xpose.msra.mxu0 0
      %304 = vmatprep.subr.bf16.mxu0 0
      %305 = vmatpush1.bf16.xpose.msra.mxu0 0
      %306 = vmatprep.subr.bf16.mxu0 0
      %307 = vmatpush1.bf16.xpose.msra.mxu0 0
      %308 = vmatprep.subr.bf16.mxu0 0
      %309 = vmatpush1.bf16.xpose.msra.mxu0 0
      %310 = vmatprep.subr.bf16.mxu0 0
      %311 = vmatpush1.bf16.xpose.msra.mxu0 0
      %312 = vmatprep.subr.bf16.mxu0 0
      %313 = vmatpush1.bf16.xpose.msra.mxu0 0
      %314 = vmatprep.subr.bf16.mxu0 0
      %315 = vmatpush1.bf16.xpose.msra.mxu0 0
      %316 = vmatprep.subr.bf16.mxu0 0
      %317 = vmatpush1.bf16.xpose.msra.mxu0 0
      %318 = vmatprep.subr.bf16.mxu0 0
      %319 = vmatpush1.bf16.xpose.msra.mxu0 0
      %320 = vmatprep.subr.bf16.mxu0 0
      %321 = vmatpush1.bf16.xpose.msra.mxu0 0
      %322 = vmatprep.subr.bf16.mxu0 0
      %323 = vmatpush1.bf16.xpose.msra.mxu0 0
      %324 = vmatprep.mubr.bf16.mxu0 0
      %325 = vmatmul.mubr.bf16.gmra.mrb[0].mxu0 %v287
      %v326 = vpop.f32.mrb[0].mxu0
      %v327 = vadd.f32 0.0, %v326
      %v328 = vpop.f32.mrb[0].mxu0
      %v329 = vpop.f32.mrb[0].mxu0
      %v330 = vpop.f32.mrb[0].mxu0
      %331 = vdwg.mxu0
      %v332 = vmul.f32 %v327, 0.088388346
      %v334 = vlaneseq
      %v335 = vshrl.u32 %v334, 7
      %v336 = vsub.s32 0, %v335
      %v337 = vrot.slane %v285, %v336
      %v339 = vadd.f32 %v332, %v337
      %v340 = vld [vmem:[#allocation2] sm:$0xff]
      %vm341 = vcmask 64512
      %v342 = vsel %vm341, %v339, -inf
      %343 = vmax.xlane.f32.xlu0 %v342
      %v344 = vpop.xlane.xlu0 %343
      %v345 = vmax.f32 %v340, %v344
      %v346 = vsub.f32 %v340, %v345
      %v347 = vmul.f32 %v346, 1.442695
      %v348 = vpow.pop %v347
      %350 = vset.pattern.permute.xlu0 0
      %351 = vperm.xlu0 %350, %v345
      %v352 = vpop.permute.xlu0 %351
      %v354 = vsub.f32 %v339, %v352
      %v355 = vmul.f32 %v354, 1.442695
      %v356 = vpow.pop %v355
      %v357 = vld [vmem:[#allocation3] sm:$0xff]
      %v358 = vmul.f32 %v348, %v357
      %v359 = vsel %vm341, %v356, 0.0
      %360 = vadd.xlane.f32.xlu0 %v359
      %v361 = vpop.xlane.xlu0 %360
      %v362 = vadd.f32 %v358, %v361
      %vm363 = vcmask 7168
      %364 = vst.msk [vmem:[#allocation3] sm:$0xff] %vm363, %v362
      %v365 = vld [vmem:[#allocation4] sm:$0xff]
      %367 = vset.pattern.permute.xlu0 0
      %368 = vperm.xlu0 %367, %v348
      %v369 = vpop.permute.xlu0 %368
      %v371 = vmul.f32 %v369, %v365
      %v372 = vpack.c.bf16 %v356, %v356
      %v374 = vsel %vm341, %v372, 0
      %vm376 = vcmask 1043456
      %v378 = vsel %vm376, %v291, 0
      %380 = vmatprep.subr.bf16.mxu0 0
      %381 = vmatpush1.bf16.msra.mxu0 %v378
      %382 = vmatprep.subr.bf16.mxu0 0
      %383 = vmatpush1.bf16.msra.mxu0 0
      %384 = vmatprep.subr.bf16.mxu0 0
      %385 = vmatpush1.bf16.msra.mxu0 0
      %386 = vmatprep.subr.bf16.mxu0 0
      %387 = vmatpush1.bf16.msra.mxu0 0
      %388 = vmatprep.subr.bf16.mxu0 0
      %389 = vmatpush1.bf16.msra.mxu0 0
      %390 = vmatprep.subr.bf16.mxu0 0
      %391 = vmatpush1.bf16.msra.mxu0 0
      %392 = vmatprep.subr.bf16.mxu0 0
      %393 = vmatpush1.bf16.msra.mxu0 0
      %394 = vmatprep.subr.bf16.mxu0 0
      %395 = vmatpush1.bf16.msra.mxu0 0
      %396 = vmatprep.subr.bf16.mxu0 0
      %397 = vmatpush1.bf16.msra.mxu0 0
      %398 = vmatprep.subr.bf16.mxu0 0
      %399 = vmatpush1.bf16.msra.mxu0 0
      %400 = vmatprep.subr.bf16.mxu0 0
      %401 = vmatpush1.bf16.msra.mxu0 0
      %402 = vmatprep.subr.bf16.mxu0 0
      %403 = vmatpush1.bf16.msra.mxu0 0
      %404 = vmatprep.subr.bf16.mxu0 0
      %405 = vmatpush1.bf16.msra.mxu0 0
      %406 = vmatprep.subr.bf16.mxu0 0
      %407 = vmatpush1.bf16.msra.mxu0 0
      %408 = vmatprep.subr.bf16.mxu0 0
      %409 = vmatpush1.bf16.msra.mxu0 0
      %410 = vmatprep.subr.bf16.mxu0 0
      %411 = vmatpush1.bf16.msra.mxu0 0
      %412 = vmatprep.mubr.bf16.mxu0 0
      %413 = vmatmul.mubr.bf16.gmra.mrb[0].mxu0 %v374
      %v414 = vpop.f32.mrb[0].mxu0
      %v415 = vadd.f32 0.0, %v414
      %v416 = vpop.f32.mrb[0].mxu0
      %v417 = vpop.f32.mrb[0].mxu0
      %v418 = vpop.f32.mrb[0].mxu0
      %419 = vdwg.mxu0
      %v420 = vadd.f32 %v371, %v415
      %421 = vst [vmem:[#allocation4] sm:$0xff] %v420
      %422 = vst.msk [vmem:[#allocation2] sm:$0xff] %vm363, %v345
      %v423 = vld [vmem:[%s248 + $0x8] sm:$0xff]
      %v424 = vpack.c.bf16 %v423, %v423
      %v425 = vld [vmem:[%s257 + $0x8] sm:$0xff]
      %v426 = vpack.c.bf16 %v425, %v425
      %v427 = vld [vmem:[%s257 + $0x18] sm:$0xff]
      %v428 = vpack.c.bf16 %v427, %v427
      %429 = vmatprep.subr.bf16.mxu0 0
      %430 = vmatpush1.bf16.xpose.msra.mxu0 %v426
      %431 = vmatprep.subr.bf16.mxu0 0
      %432 = vmatpush1.bf16.xpose.msra.mxu0 0
      %433 = vmatprep.subr.bf16.mxu0 0
      %434 = vmatpush1.bf16.xpose.msra.mxu0 0
      %435 = vmatprep.subr.bf16.mxu0 0
      %436 = vmatpush1.bf16.xpose.msra.mxu0 0
      %437 = vmatprep.subr.bf16.mxu0 0
      %438 = vmatpush1.bf16.xpose.msra.mxu0 0
      %439 = vmatprep.subr.bf16.mxu0 0
      %440 = vmatpush1.bf16.xpose.msra.mxu0 0
      %441 = vmatprep.subr.bf16.mxu0 0
      %442 = vmatpush1.bf16.xpose.msra.mxu0 0
      %443 = vmatprep.subr.bf16.mxu0 0
      %444 = vmatpush1.bf16.xpose.msra.mxu0 0
      %445 = vmatprep.subr.bf16.mxu0 0
      %446 = vmatpush1.bf16.xpose.msra.mxu0 0
      %447 = vmatprep.subr.bf16.mxu0 0
      %448 = vmatpush1.bf16.xpose.msra.mxu0 0
      %449 = vmatprep.subr.bf16.mxu0 0
      %450 = vmatpush1.bf16.xpose.msra.mxu0 0
      %451 = vmatprep.subr.bf16.mxu0 0
      %452 = vmatpush1.bf16.xpose.msra.mxu0 0
      %453 = vmatprep.subr.bf16.mxu0 0
      %454 = vmatpush1.bf16.xpose.msra.mxu0 0
      %455 = vmatprep.subr.bf16.mxu0 0
      %456 = vmatpush1.bf16.xpose.msra.mxu0 0
      %457 = vmatprep.subr.bf16.mxu0 0
      %458 = vmatpush1.bf16.xpose.msra.mxu0 0
      %459 = vmatprep.subr.bf16.mxu0 0
      %460 = vmatpush1.bf16.xpose.msra.mxu0 0
      %461 = vmatprep.mubr.bf16.mxu0 0
      %462 = vmatmul.mubr.bf16.gmra.mrb[0].mxu0 %v424
      %v463 = vpop.f32.mrb[0].mxu0
      %v464 = vadd.f32 0.0, %v463
      %v465 = vpop.f32.mrb[0].mxu0
      %v466 = vpop.f32.mrb[0].mxu0
      %v467 = vpop.f32.mrb[0].mxu0
      %468 = vdwg.mxu0
      %v469 = vmul.f32 %v464, 0.088388346
      %v470 = vadd.f32 %v469, %v337
      %s471 = scalar_lea.vmem [#allocation2], 8
      %v472 = vld [vmem:[%s471] sm:$0xff]
      %v473 = vsel %vm341, %v470, -inf
      %474 = vmax.xlane.f32.xlu0 %v473
      %v475 = vpop.xlane.xlu0 %474
      %v476 = vmax.f32 %v472, %v475
      %v477 = vsub.f32 %v472, %v476
      %v478 = vmul.f32 %v477, 1.442695
      %v479 = vpow.pop %v478
      %481 = vset.pattern.permute.xlu0 0
      %482 = vperm.xlu0 %481, %v476
      %v483 = vpop.permute.xlu0 %482
      %v485 = vsub.f32 %v470, %v483
      %v486 = vmul.f32 %v485, 1.442695
      %v487 = vpow.pop %v486
      %s488 = scalar_lea.vmem [#allocation3], 8
      %v489 = vld [vmem:[%s488] sm:$0xff]
      %v490 = vmul.f32 %v479, %v489
      %v491 = vsel %vm341, %v487, 0.0
      %492 = vadd.xlane.f32.xlu0 %v491
      %v493 = vpop.xlane.xlu0 %492
      %v494 = vadd.f32 %v490, %v493
      %495 = vst.msk [vmem:[%s488] sm:$0xff] %vm363, %v494
      %s496 = scalar_lea.vmem [#allocation4], 8
      %v497 = vld [vmem:[%s496] sm:$0xff]
      %499 = vset.pattern.permute.xlu0 0
      %500 = vperm.xlu0 %499, %v479
      %v501 = vpop.permute.xlu0 %500
      %v503 = vmul.f32 %v501, %v497
      %v504 = vpack.c.bf16 %v487, %v487
      %v506 = vsel %vm341, %v504, 0
      %v509 = vsel %vm376, %v428, 0
      %511 = vmatprep.subr.bf16.mxu0 0
      %512 = vmatpush1.bf16.msra.mxu0 %v509
      %513 = vmatprep.subr.bf16.mxu0 0
      %514 = vmatpush1.bf16.msra.mxu0 0
      %515 = vmatprep.subr.bf16.mxu0 0
      %516 = vmatpush1.bf16.msra.mxu0 0
      %517 = vmatprep.subr.bf16.mxu0 0
      %518 = vmatpush1.bf16.msra.mxu0 0
      %519 = vmatprep.subr.bf16.mxu0 0
      %520 = vmatpush1.bf16.msra.mxu0 0
      %521 = vmatprep.subr.bf16.mxu0 0
      %522 = vmatpush1.bf16.msra.mxu0 0
      %523 = vmatprep.subr.bf16.mxu0 0
      %524 = vmatpush1.bf16.msra.mxu0 0
      %525 = vmatprep.subr.bf16.mxu0 0
      %526 = vmatpush1.bf16.msra.mxu0 0
      %527 = vmatprep.subr.bf16.mxu0 0
      %528 = vmatpush1.bf16.msra.mxu0 0
      %529 = vmatprep.subr.bf16.mxu0 0
      %530 = vmatpush1.bf16.msra.mxu0 0
      %531 = vmatprep.subr.bf16.mxu0 0
      %532 = vmatpush1.bf16.msra.mxu0 0
      %533 = vmatprep.subr.bf16.mxu0 0
      %534 = vmatpush1.bf16.msra.mxu0 0
      %535 = vmatprep.subr.bf16.mxu0 0
      %536 = vmatpush1.bf16.msra.mxu0 0
      %537 = vmatprep.subr.bf16.mxu0 0
      %538 = vmatpush1.bf16.msra.mxu0 0
      %539 = vmatprep.subr.bf16.mxu0 0
      %540 = vmatpush1.bf16.msra.mxu0 0
      %541 = vmatprep.subr.bf16.mxu0 0
      %542 = vmatpush1.bf16.msra.mxu0 0
      %543 = vmatprep.mubr.bf16.mxu0 0
      %544 = vmatmul.mubr.bf16.gmra.mrb[0].mxu0 %v506
      %v545 = vpop.f32.mrb[0].mxu0
      %v546 = vadd.f32 0.0, %v545
      %v547 = vpop.f32.mrb[0].mxu0
      %v548 = vpop.f32.mrb[0].mxu0
      %v549 = vpop.f32.mrb[0].mxu0
      %550 = vdwg.mxu0
      %v551 = vadd.f32 %v503, %v546
      %552 = vst [vmem:[%s496] sm:$0xff] %v551
      %553 = vst.msk [vmem:[%s471] sm:$0xff] %vm363, %v476
      // Predicated region
      $region37: #{transformer_forward.41} parent=31 // pred_check
        %p554 = pneg %p274
      $region38: #{transformer_forward.41} parent=31 // pred_check_branch
        %556 = sbr.rel (%p554) target = $region40
      $region39: #{transformer_forward.41} parent=31 // pred_region
        %v557 = vld [vmem:[#allocation3] sm:$0xff]
        %v558 = vrcp.pop %v557
        %v559 = vld [vmem:[#allocation4] sm:$0xff]
        %561 = vset.pattern.permute.xlu0 0
        %562 = vperm.xlu0 %561, %v558
        %v563 = vpop.permute.xlu0 %562
        %v565 = vmul.f32 %v559, %v563
        %566 = vst [vmem:[%s272] sm:$0xff] %v565
        %v567 = vld [vmem:[%s488] sm:$0xff]
        %v568 = vrcp.pop %v567
        %v569 = vld [vmem:[%s496] sm:$0xff]
        %571 = vset.pattern.permute.xlu0 0
        %572 = vperm.xlu0 %571, %v568
        %v573 = vpop.permute.xlu0 %572
        %v575 = vmul.f32 %v569, %v573
        %576 = vst [vmem:[%s272 + $0x8] sm:$0xff] %v575
      $region40: #{transformer_forward.41} parent=31 // pred_fallthru
        _
      %p577 = scmp.lt.s32.totalorder %s19, 1
      %s578 = scalar_select %p577, %s19, 1
      %p579 = scmp.lt.s32.totalorder %s20, 0
      %s580 = scalar_select %p579, %s20, 0
      %s581 = smul.addr %s580, 2
      %s582 = smul.addr %s578, 2
      %s583 = sadd.s32 %s581, %s582
      %s584 = smul.addr %s583, 8
      %s585 = scalar_lea.vmem %s3, %s584
      // Predicated region
      $region41: #{transformer_forward.41} parent=31 // pred_check
        %p586 = pneg %p137
      $region42: #{transformer_forward.41} parent=31 // pred_check_branch
        %588 = sbr.rel (%p586) target = $region44
      $region43: #{transformer_forward.41} parent=31 // pred_region
        _
      $region44: #{transformer_forward.41} parent=31 // pred_fallthru
        _
    $region32: #{transformer_forward.41} parent=5 // pred_fallthru
      _
    %p589 = scmp.le.s32.totalorder 2, %s9
    // Predicated region
    $region45: #{transformer_forward.41} parent=5 // pred_check
      %p590 = pneg %p589
    $region46: #{transformer_forward.41} parent=5 // pred_check_branch
      %592 = sbr.rel (%p590) target = $region48
    $region47: #{transformer_forward.41} parent=5 // pred_region
      %s593 = ssub.s32 %s9, 2
      // Predicated region
      $region49: #{transformer_forward.41} parent=47 // pred_check
        %p594 = pneg %p143
      $region50: #{transformer_forward.41} parent=47 // pred_check_branch
        %596 = sbr.rel (%p594) target = $region52
      $region51: #{transformer_forward.41} parent=47 // pred_region
        %p597 = scmp.lt.s32.totalorder %s22, 1
        %s598 = scalar_select %p597, %s22, 1
        %p599 = scmp.lt.s32.totalorder %s23, 0
        %s600 = scalar_select %p599, %s23, 0
        %s601 = smul.addr %s600, 2
        %s602 = smul.addr %s598, 2
        %s603 = sadd.s32 %s601, %s602
        %s604 = smul.addr %s603, 8
        %s605 = scalar_lea.vmem %s3, %s604
      $region52: #{transformer_forward.41} parent=47 // pred_fallthru
        _
    $region48: #{transformer_forward.41} parent=5 // pred_fallthru
      _
  $region6: #{transformer_forward.41} parent=0 // loop_footer
    %s13 = sadd.s32 1, %s9
  $region7: #{transformer_forward.41} parent=0 // loop_footer_branch
    %8 = sbr.rel target = $region3
  $region8: #{transformer_forward.41} parent=0 // loop_exit
    _

// kernel: transformer_forward.44
$region0: #{transformer_forward.44}
  #allocation0 [shape = 'u32[]', space=smem, size = 0x4, offset = 0x4, fixed_abs, tag = 'smem constant byte address 0x4 - core index']
  #allocation1 [shape = 'u32[144,128]{1,0:T(1,128)}', space=vmem, size = 0x12000, scoped, tag = 'internal scratch']
  #allocation2 [shape = 'f32[16,256]{1,0:T(8,128)}', space=vmem, size = 0x4000, scoped, tag = 'scratch operand']
  %s0 = inlined_call_operand.vmem [shape: f32[16,256], index: 0, kind: input, shape index: {}]
  %s1 = inlined_call_operand.vmem [shape: bf16[256,512], index: 1, kind: input, shape index: {}]
  %s2 = inlined_call_operand.vmem [shape: f32[1,512], index: 2, kind: input, shape index: {}]
  %s3 = inlined_call_operand.vmem [shape: bf16[512,256], index: 3, kind: input, shape index: {}]
  %s4 = inlined_call_operand.vmem [shape: f32[1,256], index: 4, kind: input, shape index: {}]
  %s5 = inlined_call_operand.vmem [shape: f32[16,256], index: 5, kind: output, shape index: {}]
  %s6 = sld [smem:[#allocation0]]
  $region38: #{transformer_forward.44} parent=0
    _
  %s8 = ssub.s32 1, %s6
  %s9 = scalar_select 0, %s8, %s6
  // Predicated region
  $region2: #{transformer_forward.44} parent=0 // pred_check
    _
  $region3: #{transformer_forward.44} parent=0 // pred_check_branch
    %11 = sbr.rel (0) target = $region5
  $region4: #{transformer_forward.44} parent=0 // pred_region
    _
  $region5: #{transformer_forward.44} parent=0 // pred_fallthru
    _
  // Predicated region
  $region6: #{transformer_forward.44} parent=0 // pred_check
    _
  $region7: #{transformer_forward.44} parent=0 // pred_check_branch
    %13 = sbr.rel (0) target = $region9
  $region8: #{transformer_forward.44} parent=0 // pred_region
    _
  $region9: #{transformer_forward.44} parent=0 // pred_fallthru
    _
  // Predicated region
  $region10: #{transformer_forward.44} parent=0 // pred_check
    _
  $region11: #{transformer_forward.44} parent=0 // pred_check_branch
    %15 = sbr.rel (0) target = $region13
  $region12: #{transformer_forward.44} parent=0 // pred_region
    _
  $region13: #{transformer_forward.44} parent=0 // pred_fallthru
    _
  // Predicated region
  $region14: #{transformer_forward.44} parent=0 // pred_check
    _
  $region15: #{transformer_forward.44} parent=0 // pred_check_branch
    %17 = sbr.rel (0) target = $region17
  $region16: #{transformer_forward.44} parent=0 // pred_region
    _
  $region17: #{transformer_forward.44} parent=0 // pred_fallthru
    _
  // Predicated region
  $region18: #{transformer_forward.44} parent=0 // pred_check
    _
  $region19: #{transformer_forward.44} parent=0 // pred_check_branch
    %19 = sbr.rel (0) target = $region21
  $region20: #{transformer_forward.44} parent=0 // pred_region
    _
  $region21: #{transformer_forward.44} parent=0 // pred_fallthru
    _
  %p20 = scmp.eq.s32.totalorder 0, 0
  // Predicated region
  $region22: #{transformer_forward.44} parent=0 // pred_check
    %p21 = pneg %p20
  $region23: #{transformer_forward.44} parent=0 // pred_check_branch
    %23 = sbr.rel (%p21) target = $region25
  $region24: #{transformer_forward.44} parent=0 // pred_region
    %24 = vst [vmem:[#allocation2] sm:$0xff] 0.0
    %25 = vst [vmem:[#allocation2 + $0x8] sm:$0xff] 0.0
    %26 = vst [vmem:[#allocation2 + $0x10] sm:$0xff] 0.0
    %27 = vst [vmem:[#allocation2 + $0x18] sm:$0xff] 0.0
  $region25: #{transformer_forward.44} parent=0 // pred_fallthru
    _
  %v28 = vld [vmem:[%s0] sm:$0xff]
  %v29 = vld [vmem:[%s0 + $0x8] sm:$0xff]
  %v30 = vld [vmem:[%s0 + $0x10] sm:$0xff]
  %v31 = vld [vmem:[%s0 + $0x18] sm:$0xff]
  %v32 = vpack.c.bf16 %v30, %v28
  %v33 = vpack.c.bf16 %v31, %v29
  %v34 = vld [vmem:[%s1] sm:$0xff]
  %v35 = vld [vmem:[%s1 + $0x8] sm:$0xff]
  %v36 = vld [vmem:[%s1 + $0x10] sm:$0xff]
  %v37 = vld [vmem:[%s1 + $0x18] sm:$0xff]
  %v38 = vld [vmem:[%s1 + $0x20] sm:$0xff]
  %v39 = vld [vmem:[%s1 + $0x28] sm:$0xff]
  %v40 = vld [vmem:[%s1 + $0x30] sm:$0xff]
  %v41 = vld [vmem:[%s1 + $0x38] sm:$0xff]
  %v42 = vld [vmem:[%s1 + $0x40] sm:$0xff]
  %v43 = vld [vmem:[%s1 + $0x48] sm:$0xff]
  %v44 = vld [vmem:[%s1 + $0x50] sm:$0xff]
  %v45 = vld [vmem:[%s1 + $0x58] sm:$0xff]
  %v46 = vld [vmem:[%s1 + $0x60] sm:$0xff]
  %v47 = vld [vmem:[%s1 + $0x68] sm:$0xff]
  %v48 = vld [vmem:[%s1 + $0x70] sm:$0xff]
  %v49 = vld [vmem:[%s1 + $0x78] sm:$0xff]
  %v50 = vld [vmem:[%s1 + $0x80] sm:$0xff]
  %v51 = vld [vmem:[%s1 + $0x88] sm:$0xff]
  %v52 = vld [vmem:[%s1 + $0x90] sm:$0xff]
  %v53 = vld [vmem:[%s1 + $0x98] sm:$0xff]
  %v54 = vld [vmem:[%s1 + $0xa0] sm:$0xff]
  %v55 = vld [vmem:[%s1 + $0xa8] sm:$0xff]
  %v56 = vld [vmem:[%s1 + $0xb0] sm:$0xff]
  %v57 = vld [vmem:[%s1 + $0xb8] sm:$0xff]
  %v58 = vld [vmem:[%s1 + $0xc0] sm:$0xff]
  %v59 = vld [vmem:[%s1 + $0xc8] sm:$0xff]
  %v60 = vld [vmem:[%s1 + $0xd0] sm:$0xff]
  %v61 = vld [vmem:[%s1 + $0xd8] sm:$0xff]
  %v62 = vld [vmem:[%s1 + $0xe0] sm:$0xff]
  %v63 = vld [vmem:[%s1 + $0xe8] sm:$0xff]
  %v64 = vld [vmem:[%s1 + $0xf0] sm:$0xff]
  %v65 = vld [vmem:[%s1 + $0xf8] sm:$0xff]
  %v66 = vld [vmem:[%s1 + $0x100] sm:$0xff]
  %v67 = vld [vmem:[%s1 + $0x108] sm:$0xff]
  %v68 = vld [vmem:[%s1 + $0x110] sm:$0xff]
  %v69 = vld [vmem:[%s1 + $0x118] sm:$0xff]
  %v70 = vld [vmem:[%s1 + $0x120] sm:$0xff]
  %v71 = vld [vmem:[%s1 + $0x128] sm:$0xff]
  %v72 = vld [vmem:[%s1 + $0x130] sm:$0xff]
  %v73 = vld [vmem:[%s1 + $0x138] sm:$0xff]
  %v74 = vld [vmem:[%s1 + $0x140] sm:$0xff]
  %v75 = vld [vmem:[%s1 + $0x148] sm:$0xff]
  %v76 = vld [vmem:[%s1 + $0x150] sm:$0xff]
  %v77 = vld [vmem:[%s1 + $0x158] sm:$0xff]
  %v78 = vld [vmem:[%s1 + $0x160] sm:$0xff]
  %v79 = vld [vmem:[%s1 + $0x168] sm:$0xff]
  %v80 = vld [vmem:[%s1 + $0x170] sm:$0xff]
  %v81 = vld [vmem:[%s1 + $0x178] sm:$0xff]
  %v82 = vld [vmem:[%s1 + $0x180] sm:$0xff]
  %v83 = vld [vmem:[%s1 + $0x188] sm:$0xff]
  %v84 = vld [vmem:[%s1 + $0x190] sm:$0xff]
  %v85 = vld [vmem:[%s1 + $0x198] sm:$0xff]
  %v86 = vld [vmem:[%s1 + $0x1a0] sm:$0xff]
  %v87 = vld [vmem:[%s1 + $0x1a8] sm:$0xff]
  %v88 = vld [vmem:[%s1 + $0x1b0] sm:$0xff]
  %v89 = vld [vmem:[%s1 + $0x1b8] sm:$0xff]
  %v90 = vld [vmem:[%s1 + $0x1c0] sm:$0xff]
  %v91 = vld [vmem:[%s1 + $0x1c8] sm:$0xff]
  %v92 = vld [vmem:[%s1 + $0x1d0] sm:$0xff]
  %v93 = vld [vmem:[%s1 + $0x1d8] sm:$0xff]
  %v94 = vld [vmem:[%s1 + $0x1e0] sm:$0xff]
  %v95 = vld [vmem:[%s1 + $0x1e8] sm:$0xff]
  %v96 = vld [vmem:[%s1 + $0x1f0] sm:$0xff]
  %v97 = vld [vmem:[%s1 + $0x1f8] sm:$0xff]
  %v98 = vld [vmem:[%s2] sm:$0xf]
  %v100 = vlaneseq
  %v101 = vshrl.u32 %v100, 7
  %v102 = vsub.s32 0, %v101
  %v103 = vrot.slane %v98, %v102
  %v104 = vlaneseq
  %v105 = vshrl.u32 %v104, 7
  %v106 = vsub.s32 1, %v105
  %v107 = vrot.slane %v98, %v106
  %v108 = vlaneseq
  %v109 = vshrl.u32 %v108, 7
  %v110 = vsub.s32 2, %v109
  %v111 = vrot.slane %v98, %v110
  %v112 = vlaneseq
  %v113 = vshrl.u32 %v112, 7
  %v114 = vsub.s32 3, %v113
  %v115 = vrot.slane %v98, %v114
  %v184 = vunpack.c.l.b16 %v34
  %v185 = vunpack.c.h.b16 %v34
  %v186 = vunpack.c.l.b16 %v35
  %v187 = vunpack.c.h.b16 %v35
  %v188 = vunpack.c.l.b16 %v36
  %v189 = vunpack.c.h.b16 %v36
  %v190 = vunpack.c.l.b16 %v37
  %v191 = vunpack.c.h.b16 %v37
  %v192 = vunpack.c.l.b16 %v38
  %v193 = vunpack.c.h.b16 %v38
  %v194 = vunpack.c.l.b16 %v39
  %v195 = vunpack.c.h.b16 %v39
  %v196 = vunpack.c.l.b16 %v40
  %v197 = vunpack.c.h.b16 %v40
  %v198 = vunpack.c.l.b16 %v41
  %v199 = vunpack.c.h.b16 %v41
  %v200 = vunpack.c.l.b16 %v42
  %v201 = vunpack.c.h.b16 %v42
  %v202 = vunpack.c.l.b16 %v43
  %v203 = vunpack.c.h.b16 %v43
  %v204 = vunpack.c.l.b16 %v44
  %v205 = vunpack.c.h.b16 %v44
  %v206 = vunpack.c.l.b16 %v45
  %v207 = vunpack.c.h.b16 %v45
  %v208 = vunpack.c.l.b16 %v46
  %v209 = vunpack.c.h.b16 %v46
  %v210 = vunpack.c.l.b16 %v47
  %v211 = vunpack.c.h.b16 %v47
  %v212 = vunpack.c.l.b16 %v48
  %v213 = vunpack.c.h.b16 %v48
  %v214 = vunpack.c.l.b16 %v49
  %v215 = vunpack.c.h.b16 %v49
  %v216 = vunpack.c.l.b16 %v50
  %v217 = vunpack.c.h.b16 %v50
  %v218 = vunpack.c.l.b16 %v51
  %v219 = vunpack.c.h.b16 %v51
  %v220 = vunpack.c.l.b16 %v52
  %v221 = vunpack.c.h.b16 %v52
  %v222 = vunpack.c.l.b16 %v53
  %v223 = vunpack.c.h.b16 %v53
  %v224 = vunpack.c.l.b16 %v54
  %v225 = vunpack.c.h.b16 %v54
  %v226 = vunpack.c.l.b16 %v55
  %v227 = vunpack.c.h.b16 %v55
  %v228 = vunpack.c.l.b16 %v56
  %v229 = vunpack.c.h.b16 %v56
  %v230 = vunpack.c.l.b16 %v57
  %v231 = vunpack.c.h.b16 %v57
  %v232 = vunpack.c.l.b16 %v58
  %v233 = vunpack.c.h.b16 %v58
  %v234 = vunpack.c.l.b16 %v59
  %v235 = vunpack.c.h.b16 %v59
  %v236 = vunpack.c.l.b16 %v60
  %v237 = vunpack.c.h.b16 %v60
  %v238 = vunpack.c.l.b16 %v61
  %v239 = vunpack.c.h.b16 %v61
  %v240 = vunpack.c.l.b16 %v62
  %v241 = vunpack.c.h.b16 %v62
  %v242 = vunpack.c.l.b16 %v63
  %v243 = vunpack.c.h.b16 %v63
  %v244 = vunpack.c.l.b16 %v64
  %v245 = vunpack.c.h.b16 %v64
  %v246 = vunpack.c.l.b16 %v65
  %v247 = vunpack.c.h.b16 %v65
  %v248 = vunpack.c.l.b16 %v66
  %v249 = vunpack.c.h.b16 %v66
  %v250 = vunpack.c.l.b16 %v67
  %v251 = vunpack.c.h.b16 %v67
  %v252 = vunpack.c.l.b16 %v68
  %v253 = vunpack.c.h.b16 %v68
  %v254 = vunpack.c.l.b16 %v69
  %v255 = vunpack.c.h.b16 %v69
  %v256 = vunpack.c.l.b16 %v70
  %v257 = vunpack.c.h.b16 %v70
  %v258 = vunpack.c.l.b16 %v71
  %v259 = vunpack.c.h.b16 %v71
  %v260 = vunpack.c.l.b16 %v72
  %v261 = vunpack.c.h.b16 %v72
  %v262 = vunpack.c.l.b16 %v73
  %v263 = vunpack.c.h.b16 %v73
  %v264 = vunpack.c.l.b16 %v74
  %v265 = vunpack.c.h.b16 %v74
  %v266 = vunpack.c.l.b16 %v75
  %v267 = vunpack.c.h.b16 %v75
  %v268 = vunpack.c.l.b16 %v76
  %v269 = vunpack.c.h.b16 %v76
  %v270 = vunpack.c.l.b16 %v77
  %v271 = vunpack.c.h.b16 %v77
  %v272 = vunpack.c.l.b16 %v78
  %v273 = vunpack.c.h.b16 %v78
  %v274 = vunpack.c.l.b16 %v79
  %v275 = vunpack.c.h.b16 %v79
  %v276 = vunpack.c.l.b16 %v80
  %v277 = vunpack.c.h.b16 %v80
  %v278 = vunpack.c.l.b16 %v81
  %v279 = vunpack.c.h.b16 %v81
  %v280 = vunpack.c.l.b16 %v82
  %v281 = vunpack.c.h.b16 %v82
  %v282 = vunpack.c.l.b16 %v83
  %v283 = vunpack.c.h.b16 %v83
  %v284 = vunpack.c.l.b16 %v84
  %v285 = vunpack.c.h.b16 %v84
  %v286 = vunpack.c.l.b16 %v85
  %v287 = vunpack.c.h.b16 %v85
  %v288 = vunpack.c.l.b16 %v86
  %v289 = vunpack.c.h.b16 %v86
  %v290 = vunpack.c.l.b16 %v87
  %v291 = vunpack.c.h.b16 %v87
  %v292 = vunpack.c.l.b16 %v88
  %v293 = vunpack.c.h.b16 %v88
  %v294 = vunpack.c.l.b16 %v89
  %v295 = vunpack.c.h.b16 %v89
  %v296 = vunpack.c.l.b16 %v90
  %v297 = vunpack.c.h.b16 %v90
  %v298 = vunpack.c.l.b16 %v91
  %v299 = vunpack.c.h.b16 %v91
  %v300 = vunpack.c.l.b16 %v92
  %v301 = vunpack.c.h.b16 %v92
  %v302 = vunpack.c.l.b16 %v93
  %v303 = vunpack.c.h.b16 %v93
  %v304 = vunpack.c.l.b16 %v94
  %v305 = vunpack.c.h.b16 %v94
  %v306 = vunpack.c.l.b16 %v95
  %v307 = vunpack.c.h.b16 %v95
  %v308 = vunpack.c.l.b16 %v96
  %v309 = vunpack.c.h.b16 %v96
  %v310 = vunpack.c.l.b16 %v97
  %v311 = vunpack.c.h.b16 %v97
  %v312 = vpack.c.b16 %v188, %v184
  %v313 = vpack.c.b16 %v189, %v185
  %v314 = vpack.c.b16 %v190, %v186
  %v315 = vpack.c.b16 %v191, %v187
  %v316 = vpack.c.b16 %v196, %v192
  %v317 = vpack.c.b16 %v197, %v193
  %v318 = vpack.c.b16 %v198, %v194
  %v319 = vpack.c.b16 %v199, %v195
  %v320 = vpack.c.b16 %v204, %v200
  %v321 = vpack.c.b16 %v205, %v201
  %v322 = vpack.c.b16 %v206, %v202
  %v323 = vpack.c.b16 %v207, %v203
  %v324 = vpack.c.b16 %v212, %v208
  %v325 = vpack.c.b16 %v213, %v209
  %v326 = vpack.c.b16 %v214, %v210
  %v327 = vpack.c.b16 %v215, %v211
  %v328 = vpack.c.b16 %v220, %v216
  %v329 = vpack.c.b16 %v221, %v217
  %v330 = vpack.c.b16 %v222, %v218
  %v331 = vpack.c.b16 %v223, %v219
  %v332 = vpack.c.b16 %v228, %v224
  %v333 = vpack.c.b16 %v229, %v225
  %v334 = vpack.c.b16 %v230, %v226
  %v335 = vpack.c.b16 %v231, %v227
  %v336 = vpack.c.b16 %v236, %v232
  %v337 = vpack.c.b16 %v237, %v233
  %v338 = vpack.c.b16 %v238, %v234
  %v339 = vpack.c.b16 %v239, %v235
  %v340 = vpack.c.b16 %v244, %v240
  %v341 = vpack.c.b16 %v245, %v241
  %v342 = vpack.c.b16 %v246, %v242
  %v343 = vpack.c.b16 %v247, %v243
  %v344 = vpack.c.b16 %v252, %v248
  %v345 = vpack.c.b16 %v253, %v249
  %v346 = vpack.c.b16 %v254, %v250
  %v347 = vpack.c.b16 %v255, %v251
  %v348 = vpack.c.b16 %v260, %v256
  %v349 = vpack.c.b16 %v261, %v257
  %v350 = vpack.c.b16 %v262, %v258
  %v351 = vpack.c.b16 %v263, %v259
  %v352 = vpack.c.b16 %v268, %v264
  %v353 = vpack.c.b16 %v269, %v265
  %v354 = vpack.c.b16 %v270, %v266
  %v355 = vpack.c.b16 %v271, %v267
  %v356 = vpack.c.b16 %v276, %v272
  %v357 = vpack.c.b16 %v277, %v273
  %v358 = vpack.c.b16 %v278, %v274
  %v359 = vpack.c.b16 %v279, %v275
  %v360 = vpack.c.b16 %v284, %v280
  %v361 = vpack.c.b16 %v285, %v281
  %v362 = vpack.c.b16 %v286, %v282
  %v363 = vpack.c.b16 %v287, %v283
  %v364 = vpack.c.b16 %v292, %v288
  %v365 = vpack.c.b16 %v293, %v289
  %v366 = vpack.c.b16 %v294, %v290
  %v367 = vpack.c.b16 %v295, %v291
  %v368 = vpack.c.b16 %v300, %v296
  %v369 = vpack.c.b16 %v301, %v297
  %v370 = vpack.c.b16 %v302, %v298
  %v371 = vpack.c.b16 %v303, %v299
  %v372 = vpack.c.b16 %v308, %v304
  %v373 = vpack.c.b16 %v309, %v305
  %v374 = vpack.c.b16 %v310, %v306
  %v375 = vpack.c.b16 %v311, %v307
  %440 = vmatprep.subr.bf16.mxu0 %v313
  %441 = vmatpush1.bf16.msra.mxu0 %v312
  %442 = vmatprep.subr.bf16.mxu0 %v317
  %443 = vmatpush1.bf16.msra.mxu0 %v316
  %444 = vmatprep.subr.bf16.mxu0 %v321
  %445 = vmatpush1.bf16.msra.mxu0 %v320
  %446 = vmatprep.subr.bf16.mxu0 %v325
  %447 = vmatpush1.bf16.msra.mxu0 %v324
  %448 = vmatprep.subr.bf16.mxu0 %v329
  %449 = vmatpush1.bf16.msra.mxu0 %v328
  %450 = vmatprep.subr.bf16.mxu0 %v333
  %451 = vmatpush1.bf16.msra.mxu0 %v332
  %452 = vmatprep.subr.bf16.mxu0 %v337
  %453 = vmatpush1.bf16.msra.mxu0 %v336
  %454 = vmatprep.subr.bf16.mxu0 %v341
  %455 = vmatpush1.bf16.msra.mxu0 %v340
  %456 = vmatprep.subr.bf16.mxu0 %v345
  %457 = vmatpush1.bf16.msra.mxu0 %v344
  %458 = vmatprep.subr.bf16.mxu0 %v349
  %459 = vmatpush1.bf16.msra.mxu0 %v348
  %460 = vmatprep.subr.bf16.mxu0 %v353
  %461 = vmatpush1.bf16.msra.mxu0 %v352
  %462 = vmatprep.subr.bf16.mxu0 %v357
  %463 = vmatpush1.bf16.msra.mxu0 %v356
  %464 = vmatprep.subr.bf16.mxu0 %v361
  %465 = vmatpush1.bf16.msra.mxu0 %v360
  %466 = vmatprep.subr.bf16.mxu0 %v365
  %467 = vmatpush1.bf16.msra.mxu0 %v364
  %468 = vmatprep.subr.bf16.mxu0 %v369
  %469 = vmatpush1.bf16.msra.mxu0 %v368
  %470 = vmatprep.subr.bf16.mxu0 %v373
  %471 = vmatpush1.bf16.msra.mxu0 %v372
  %472 = vmatprep.mubr.bf16.mxu0 %v33
  %473 = vmatmul.mubr.bf16.gmra.mrb[0].mxu0 %v32
  %v474 = vpop.f32.mrb[0].mxu0
  %v475 = vadd.f32 %v103, %v474
  %v476 = vpop.f32.mrb[0].mxu0
  %v477 = vadd.f32 %v107, %v476
  %v478 = vpop.f32.mrb[0].mxu0
  %v479 = vadd.f32 %v103, %v478
  %v480 = vpop.f32.mrb[0].mxu0
  %v481 = vadd.f32 %v107, %v480
  %482 = vdwg.mxu0
  %483 = vmatprep.subr.bf16.mxu0 %v315
  %484 = vmatpush1.bf16.msra.mxu0 %v314
  %485 = vmatprep.subr.bf16.mxu0 %v319
  %486 = vmatpush1.bf16.msra.mxu0 %v318
  %487 = vmatprep.subr.bf16.mxu0 %v323
  %488 = vmatpush1.bf16.msra.mxu0 %v322
  %489 = vmatprep.subr.bf16.mxu0 %v327
  %490 = vmatpush1.bf16.msra.mxu0 %v326
  %491 = vmatprep.subr.bf16.mxu0 %v331
  %492 = vmatpush1.bf16.msra.mxu0 %v330
  %493 = vmatprep.subr.bf16.mxu0 %v335
  %494 = vmatpush1.bf16.msra.mxu0 %v334
  %495 = vmatprep.subr.bf16.mxu0 %v339
  %496 = vmatpush1.bf16.msra.mxu0 %v338
  %497 = vmatprep.subr.bf16.mxu0 %v343
  %498 = vmatpush1.bf16.msra.mxu0 %v342
  %499 = vmatprep.subr.bf16.mxu0 %v347
  %500 = vmatpush1.bf16.msra.mxu0 %v346
  %501 = vmatprep.subr.bf16.mxu0 %v351
  %502 = vmatpush1.bf16.msra.mxu0 %v350
  %503 = vmatprep.subr.bf16.mxu0 %v355
  %504 = vmatpush1.bf16.msra.mxu0 %v354
  %505 = vmatprep.subr.bf16.mxu0 %v359
  %506 = vmatpush1.bf16.msra.mxu0 %v358
  %507 = vmatprep.subr.bf16.mxu0 %v363
  %508 = vmatpush1.bf16.msra.mxu0 %v362
  %509 = vmatprep.subr.bf16.mxu0 %v367
  %510 = vmatpush1.bf16.msra.mxu0 %v366
  %511 = vmatprep.subr.bf16.mxu0 %v371
  %512 = vmatpush1.bf16.msra.mxu0 %v370
  %513 = vmatprep.subr.bf16.mxu0 %v375
  %514 = vmatpush1.bf16.msra.mxu0 %v374
  %515 = vmatprep.mubr.bf16.mxu0 %v33
  %516 = vmatmul.mubr.bf16.gmra.mrb[0].mxu0 %v32
  %v517 = vpop.f32.mrb[0].mxu0
  %v518 = vadd.f32 %v111, %v517
  %v519 = vpop.f32.mrb[0].mxu0
  %v520 = vadd.f32 %v115, %v519
  %v521 = vpop.f32.mrb[0].mxu0
  %v522 = vadd.f32 %v111, %v521
  %v523 = vpop.f32.mrb[0].mxu0
  %v524 = vadd.f32 %v115, %v523
  %525 = vdwg.mxu0
  %v526 = vmax.f32 %v475, 0.0
  %v527 = vmax.f32 %v477, 0.0
  %v528 = vmax.f32 %v518, 0.0
  %v529 = vmax.f32 %v520, 0.0
  %v530 = vmax.f32 %v479, 0.0
  %v531 = vmax.f32 %v481, 0.0
  %v532 = vmax.f32 %v522, 0.0
  %v533 = vmax.f32 %v524, 0.0
  %v534 = vld [vmem:[#allocation2] sm:$0xff]
  %v535 = vld [vmem:[#allocation2 + $0x8] sm:$0xff]
  %v536 = vld [vmem:[#allocation2 + $0x10] sm:$0xff]
  %v537 = vld [vmem:[#allocation2 + $0x18] sm:$0xff]
  %v538 = vpack.c.bf16 %v530, %v526
  %v539 = vpack.c.bf16 %v531, %v527
  %v540 = vpack.c.bf16 %v532, %v528
  %v541 = vpack.c.bf16 %v533, %v529
  %v542 = vld [vmem:[%s3] sm:$0xff]
  %v543 = vld [vmem:[%s3 + $0x8] sm:$0xff]
  %v544 = vld [vmem:[%s3 + $0x10] sm:$0xff]
  %v545 = vld [vmem:[%s3 + $0x18] sm:$0xff]
  %v546 = vld [vmem:[%s3 + $0x20] sm:$0xff]
  %v547 = vld [vmem:[%s3 + $0x28] sm:$0xff]
  %v548 = vld [vmem:[%s3 + $0x30] sm:$0xff]
  %v549 = vld [vmem:[%s3 + $0x38] sm:$0xff]
  %v550 = vld [vmem:[%s3 + $0x40] sm:$0xff]
  %v551 = vld [vmem:[%s3 + $0x48] sm:$0xff]
  %v552 = vld [vmem:[%s3 + $0x50] sm:$0xff]
  %v553 = vld [vmem:[%s3 + $0x58] sm:$0xff]
  %v554 = vld [vmem:[%s3 + $0x60] sm:$0xff]
  %v555 = vld [vmem:[%s3 + $0x68] sm:$0xff]
  %v556 = vld [vmem:[%s3 + $0x70] sm:$0xff]
  %v557 = vld [vmem:[%s3 + $0x78] sm:$0xff]
  %v558 = vld [vmem:[%s3 + $0x80] sm:$0xff]
  %v559 = vld [vmem:[%s3 + $0x88] sm:$0xff]
  %v560 = vld [vmem:[%s3 + $0x90] sm:$0xff]
  %v561 = vld [vmem:[%s3 + $0x98] sm:$0xff]
  %v562 = vld [vmem:[%s3 + $0xa0] sm:$0xff]
  %v563 = vld [vmem:[%s3 + $0xa8] sm:$0xff]
  %v564 = vld [vmem:[%s3 + $0xb0] sm:$0xff]
  %v565 = vld [vmem:[%s3 + $0xb8] sm:$0xff]
  %v566 = vld [vmem:[%s3 + $0xc0] sm:$0xff]
  %v567 = vld [vmem:[%s3 + $0xc8] sm:$0xff]
  %v568 = vld [vmem:[%s3 + $0xd0] sm:$0xff]
  %v569 = vld [vmem:[%s3 + $0xd8] sm:$0xff]
  %v570 = vld [vmem:[%s3 + $0xe0] sm:$0xff]
  %v571 = vld [vmem:[%s3 + $0xe8] sm:$0xff]
  %v572 = vld [vmem:[%s3 + $0xf0] sm:$0xff]
  %v573 = vld [vmem:[%s3 + $0xf8] sm:$0xff]
  %v574 = vld [vmem:[%s3 + $0x100] sm:$0xff]
  %v575 = vld [vmem:[%s3 + $0x108] sm:$0xff]
  %v576 = vld [vmem:[%s3 + $0x110] sm:$0xff]
  %v577 = vld [vmem:[%s3 + $0x118] sm:$0xff]
  %v578 = vld [vmem:[%s3 + $0x120] sm:$0xff]
  %v579 = vld [vmem:[%s3 + $0x128] sm:$0xff]
  %v580 = vld [vmem:[%s3 + $0x130] sm:$0xff]
  %v581 = vld [vmem:[%s3 + $0x138] sm:$0xff]
  %v582 = vld [vmem:[%s3 + $0x140] sm:$0xff]
  %v583 = vld [vmem:[%s3 + $0x148] sm:$0xff]
  %v584 = vld [vmem:[%s3 + $0x150] sm:$0xff]
  %v585 = vld [vmem:[%s3 + $0x158] sm:$0xff]
  %v586 = vld [vmem:[%s3 + $0x160] sm:$0xff]
  %v587 = vld [vmem:[%s3 + $0x168] sm:$0xff]
  %v588 = vld [vmem:[%s3 + $0x170] sm:$0xff]
  %v589 = vld [vmem:[%s3 + $0x178] sm:$0xff]
  %v590 = vld [vmem:[%s3 + $0x180] sm:$0xff]
  %v591 = vld [vmem:[%s3 + $0x188] sm:$0xff]
  %v592 = vld [vmem:[%s3 + $0x190] sm:$0xff]
  %v593 = vld [vmem:[%s3 + $0x198] sm:$0xff]
  %v594 = vld [vmem:[%s3 + $0x1a0] sm:$0xff]
  %v595 = vld [vmem:[%s3 + $0x1a8] sm:$0xff]
  %v596 = vld [vmem:[%s3 + $0x1b0] sm:$0xff]
  %v597 = vld [vmem:[%s3 + $0x1b8] sm:$0xff]
  %v598 = vld [vmem:[%s3 + $0x1c0] sm:$0xff]
  %v599 = vld [vmem:[%s3 + $0x1c8] sm:$0xff]
  %v600 = vld [vmem:[%s3 + $0x1d0] sm:$0xff]
  %v601 = vld [vmem:[%s3 + $0x1d8] sm:$0xff]
  %v602 = vld [vmem:[%s3 + $0x1e0] sm:$0xff]
  %v603 = vld [vmem:[%s3 + $0x1e8] sm:$0xff]
  %v604 = vld [vmem:[%s3 + $0x1f0] sm:$0xff]
  %v605 = vld [vmem:[%s3 + $0x1f8] sm:$0xff]
  %v670 = vunpack.c.l.b16 %v542
  %v671 = vunpack.c.h.b16 %v542
  %v672 = vunpack.c.l.b16 %v543
  %v673 = vunpack.c.h.b16 %v543
  %v674 = vunpack.c.l.b16 %v544
  %v675 = vunpack.c.h.b16 %v544
  %v676 = vunpack.c.l.b16 %v545
  %v677 = vunpack.c.h.b16 %v545
  %v678 = vunpack.c.l.b16 %v546
  %v679 = vunpack.c.h.b16 %v546
  %v680 = vunpack.c.l.b16 %v547
  %v681 = vunpack.c.h.b16 %v547
  %v682 = vunpack.c.l.b16 %v548
  %v683 = vunpack.c.h.b16 %v548
  %v684 = vunpack.c.l.b16 %v549
  %v685 = vunpack.c.h.b16 %v549
  %v686 = vunpack.c.l.b16 %v550
  %v687 = vunpack.c.h.b16 %v550
  %v688 = vunpack.c.l.b16 %v551
  %v689 = vunpack.c.h.b16 %v551
  %v690 = vunpack.c.l.b16 %v552
  %v691 = vunpack.c.h.b16 %v552
  %v692 = vunpack.c.l.b16 %v553
  %v693 = vunpack.c.h.b16 %v553
  %v694 = vunpack.c.l.b16 %v554
  %v695 = vunpack.c.h.b16 %v554
  %v696 = vunpack.c.l.b16 %v555
  %v697 = vunpack.c.h.b16 %v555
  %v698 = vunpack.c.l.b16 %v556
  %v699 = vunpack.c.h.b16 %v556
  %v700 = vunpack.c.l.b16 %v557
  %v701 = vunpack.c.h.b16 %v557
  %v702 = vunpack.c.l.b16 %v558
  %v703 = vunpack.c.h.b16 %v558
  %v704 = vunpack.c.l.b16 %v559
  %v705 = vunpack.c.h.b16 %v559
  %v706 = vunpack.c.l.b16 %v560
  %v707 = vunpack.c.h.b16 %v560
  %v708 = vunpack.c.l.b16 %v561
  %v709 = vunpack.c.h.b16 %v561
  %v710 = vunpack.c.l.b16 %v562
  %v711 = vunpack.c.h.b16 %v562
  %v712 = vunpack.c.l.b16 %v563
  %v713 = vunpack.c.h.b16 %v563
  %v714 = vunpack.c.l.b16 %v564
  %v715 = vunpack.c.h.b16 %v564
  %v716 = vunpack.c.l.b16 %v565
  %v717 = vunpack.c.h.b16 %v565
  %v718 = vunpack.c.l.b16 %v566
  %v719 = vunpack.c.h.b16 %v566
  %v720 = vunpack.c.l.b16 %v567
  %v721 = vunpack.c.h.b16 %v567
  %v722 = vunpack.c.l.b16 %v568
  %v723 = vunpack.c.h.b16 %v568
  %v724 = vunpack.c.l.b16 %v569
  %v725 = vunpack.c.h.b16 %v569
  %v726 = vunpack.c.l.b16 %v570
  %v727 = vunpack.c.h.b16 %v570
  %v728 = vunpack.c.l.b16 %v571
  %v729 = vunpack.c.h.b16 %v571
  %v730 = vunpack.c.l.b16 %v572
  %v731 = vunpack.c.h.b16 %v572
  %v732 = vunpack.c.l.b16 %v573
  %v733 = vunpack.c.h.b16 %v573
  %v734 = vunpack.c.l.b16 %v574
  %v735 = vunpack.c.h.b16 %v574
  %v736 = vunpack.c.l.b16 %v575
  %v737 = vunpack.c.h.b16 %v575
  %v738 = vunpack.c.l.b16 %v576
  %v739 = vunpack.c.h.b16 %v576
  %v740 = vunpack.c.l.b16 %v577
  %v741 = vunpack.c.h.b16 %v577
  %v742 = vunpack.c.l.b16 %v578
  %v743 = vunpack.c.h.b16 %v578
  %v744 = vunpack.c.l.b16 %v579
  %v745 = vunpack.c.h.b16 %v579
  %v746 = vunpack.c.l.b16 %v580
  %v747 = vunpack.c.h.b16 %v580
  %v748 = vunpack.c.l.b16 %v581
  %v749 = vunpack.c.h.b16 %v581
  %v750 = vunpack.c.l.b16 %v582
  %v751 = vunpack.c.h.b16 %v582
  %v752 = vunpack.c.l.b16 %v583
  %v753 = vunpack.c.h.b16 %v583
  %v754 = vunpack.c.l.b16 %v584
  %v755 = vunpack.c.h.b16 %v584
  %v756 = vunpack.c.l.b16 %v585
  %v757 = vunpack.c.h.b16 %v585
  %v758 = vunpack.c.l.b16 %v586
  %v759 = vunpack.c.h.b16 %v586
  %v760 = vunpack.c.l.b16 %v587
  %v761 = vunpack.c.h.b16 %v587
  %v762 = vunpack.c.l.b16 %v588
  %v763 = vunpack.c.h.b16 %v588
  %v764 = vunpack.c.l.b16 %v589
  %v765 = vunpack.c.h.b16 %v589
  %v766 = vunpack.c.l.b16 %v590
  %v767 = vunpack.c.h.b16 %v590
  %v768 = vunpack.c.l.b16 %v591
  %v769 = vunpack.c.h.b16 %v591
  %v770 = vunpack.c.l.b16 %v592
  %v771 = vunpack.c.h.b16 %v592
  %v772 = vunpack.c.l.b16 %v593
  %v773 = vunpack.c.h.b16 %v593
  %v774 = vunpack.c.l.b16 %v594
  %v775 = vunpack.c.h.b16 %v594
  %v776 = vunpack.c.l.b16 %v595
  %v777 = vunpack.c.h.b16 %v595
  %v778 = vunpack.c.l.b16 %v596
  %v779 = vunpack.c.h.b16 %v596
  %v780 = vunpack.c.l.b16 %v597
  %v781 = vunpack.c.h.b16 %v597
  %v782 = vunpack.c.l.b16 %v598
  %v783 = vunpack.c.h.b16 %v598
  %v784 = vunpack.c.l.b16 %v599
  %v785 = vunpack.c.h.b16 %v599
  %v786 = vunpack.c.l.b16 %v600
  %v787 = vunpack.c.h.b16 %v600
  %v788 = vunpack.c.l.b16 %v601
  %v789 = vunpack.c.h.b16 %v601
  %v790 = vunpack.c.l.b16 %v602
  %v791 = vunpack.c.h.b16 %v602
  %v792 = vunpack.c.l.b16 %v603
  %v793 = vunpack.c.h.b16 %v603
  %v794 = vunpack.c.l.b16 %v604
  %v795 = vunpack.c.h.b16 %v604
  %v796 = vunpack.c.l.b16 %v605
  %v797 = vunpack.c.h.b16 %v605
  %v798 = vpack.c.b16 %v672, %v670
  %v799 = vpack.c.b16 %v673, %v671
  %v800 = vpack.c.b16 %v676, %v674
  %v801 = vpack.c.b16 %v677, %v675
  %v802 = vpack.c.b16 %v680, %v678
  %v803 = vpack.c.b16 %v681, %v679
  %v804 = vpack.c.b16 %v684, %v682
  %v805 = vpack.c.b16 %v685, %v683
  %v806 = vpack.c.b16 %v688, %v686
  %v807 = vpack.c.b16 %v689, %v687
  %v808 = vpack.c.b16 %v692, %v690
  %v809 = vpack.c.b16 %v693, %v691
  %v810 = vpack.c.b16 %v696, %v694
  %v811 = vpack.c.b16 %v697, %v695
  %v812 = vpack.c.b16 %v700, %v698
  %v813 = vpack.c.b16 %v701, %v699
  %v814 = vpack.c.b16 %v704, %v702
  %v815 = vpack.c.b16 %v705, %v703
  %v816 = vpack.c.b16 %v708, %v706
  %v817 = vpack.c.b16 %v709, %v707
  %v818 = vpack.c.b16 %v712, %v710
  %v819 = vpack.c.b16 %v713, %v711
  %v820 = vpack.c.b16 %v716, %v714
  %v821 = vpack.c.b16 %v717, %v715
  %v822 = vpack.c.b16 %v720, %v718
  %v823 = vpack.c.b16 %v721, %v719
  %v824 = vpack.c.b16 %v724, %v722
  %v825 = vpack.c.b16 %v725, %v723
  %v826 = vpack.c.b16 %v728, %v726
  %v827 = vpack.c.b16 %v729, %v727
  %v828 = vpack.c.b16 %v732, %v730
  %v829 = vpack.c.b16 %v733, %v731
  %v830 = vpack.c.b16 %v736, %v734
  %v831 = vpack.c.b16 %v737, %v735
  %v832 = vpack.c.b16 %v740, %v738
  %v833 = vpack.c.b16 %v741, %v739
  %v834 = vpack.c.b16 %v744, %v742
  %v835 = vpack.c.b16 %v745, %v743
  %v836 = vpack.c.b16 %v748, %v746
  %v837 = vpack.c.b16 %v749, %v747
  %v838 = vpack.c.b16 %v752, %v750
  %v839 = vpack.c.b16 %v753, %v751
  %v840 = vpack.c.b16 %v756, %v754
  %v841 = vpack.c.b16 %v757, %v755
  %v842 = vpack.c.b16 %v760, %v758
  %v843 = vpack.c.b16 %v761, %v759
  %v844 = vpack.c.b16 %v764, %v762
  %v845 = vpack.c.b16 %v765, %v763
  %v846 = vpack.c.b16 %v768, %v766
  %v847 = vpack.c.b16 %v769, %v767
  %v848 = vpack.c.b16 %v772, %v770
  %v849 = vpack.c.b16 %v773, %v771
  %v850 = vpack.c.b16 %v776, %v774
  %v851 = vpack.c.b16 %v777, %v775
  %v852 = vpack.c.b16 %v780, %v778
  %v853 = vpack.c.b16 %v781, %v779
  %v854 = vpack.c.b16 %v784, %v782
  %v855 = vpack.c.b16 %v785, %v783
  %v856 = vpack.c.b16 %v788, %v786
  %v857 = vpack.c.b16 %v789, %v787
  %v858 = vpack.c.b16 %v792, %v790
  %v859 = vpack.c.b16 %v793, %v791
  %v860 = vpack.c.b16 %v796, %v794
  %v861 = vpack.c.b16 %v797, %v795
  %926 = vmatprep.subr.bf16.mxu0 %v799
  %927 = vmatpush1.bf16.msra.mxu0 %v798
  %928 = vmatprep.subr.bf16.mxu0 %v801
  %929 = vmatpush1.bf16.msra.mxu0 %v800
  %930 = vmatprep.subr.bf16.mxu0 %v803
  %931 = vmatpush1.bf16.msra.mxu0 %v802
  %932 = vmatprep.subr.bf16.mxu0 %v805
  %933 = vmatpush1.bf16.msra.mxu0 %v804
  %934 = vmatprep.subr.bf16.mxu0 %v807
  %935 = vmatpush1.bf16.msra.mxu0 %v806
  %936 = vmatprep.subr.bf16.mxu0 %v809
  %937 = vmatpush1.bf16.msra.mxu0 %v808
  %938 = vmatprep.subr.bf16.mxu0 %v811
  %939 = vmatpush1.bf16.msra.mxu0 %v810
  %940 = vmatprep.subr.bf16.mxu0 %v813
  %941 = vmatpush1.bf16.msra.mxu0 %v812
  %942 = vmatprep.subr.bf16.mxu0 %v815
  %943 = vmatpush1.bf16.msra.mxu0 %v814
  %944 = vmatprep.subr.bf16.mxu0 %v817
  %945 = vmatpush1.bf16.msra.mxu0 %v816
  %946 = vmatprep.subr.bf16.mxu0 %v819
  %947 = vmatpush1.bf16.msra.mxu0 %v818
  %948 = vmatprep.subr.bf16.mxu0 %v821
  %949 = vmatpush1.bf16.msra.mxu0 %v820
  %950 = vmatprep.subr.bf16.mxu0 %v823
  %951 = vmatpush1.bf16.msra.mxu0 %v822
  %952 = vmatprep.subr.bf16.mxu0 %v825
  %953 = vmatpush1.bf16.msra.mxu0 %v824
  %954 = vmatprep.subr.bf16.mxu0 %v827
  %955 = vmatpush1.bf16.msra.mxu0 %v826
  %956 = vmatprep.subr.bf16.mxu0 %v829
  %957 = vmatpush1.bf16.msra.mxu0 %v828
  %958 = vmatprep.mubr.bf16.mxu0 %v539
  %959 = vmatmul.mubr.bf16.gmra.mrb[0].mxu0 %v538
  %v960 = vpop.f32.mrb[0].mxu0
  %v961 = vadd.f32 0.0, %v960
  %v962 = vpop.f32.mrb[0].mxu0
  %v963 = vadd.f32 0.0, %v962
  %v964 = vpop.f32.mrb[0].mxu0
  %v965 = vadd.f32 0.0, %v964
  %v966 = vpop.f32.mrb[0].mxu0
  %v967 = vadd.f32 0.0, %v966
  %968 = vdwg.mxu0
  %969 = vmatprep.subr.bf16.mxu0 %v831
  %970 = vmatpush1.bf16.msra.mxu0 %v830
  %971 = vmatprep.subr.bf16.mxu0 %v833
  %972 = vmatpush1.bf16.msra.mxu0 %v832
  %973 = vmatprep.subr.bf16.mxu0 %v835
  %974 = vmatpush1.bf16.msra.mxu0 %v834
  %975 = vmatprep.subr.bf16.mxu0 %v837
  %976 = vmatpush1.bf16.msra.mxu0 %v836
  %977 = vmatprep.subr.bf16.mxu0 %v839
  %978 = vmatpush1.bf16.msra.mxu0 %v838
  %979 = vmatprep.subr.bf16.mxu0 %v841
  %980 = vmatpush1.bf16.msra.mxu0 %v840
  %981 = vmatprep.subr.bf16.mxu0 %v843
  %982 = vmatpush1.bf16.msra.mxu0 %v842
  %983 = vmatprep.subr.bf16.mxu0 %v845
  %984 = vmatpush1.bf16.msra.mxu0 %v844
  %985 = vmatprep.subr.bf16.mxu0 %v847
  %986 = vmatpush1.bf16.msra.mxu0 %v846
  %987 = vmatprep.subr.bf16.mxu0 %v849
  %988 = vmatpush1.bf16.msra.mxu0 %v848
  %989 = vmatprep.subr.bf16.mxu0 %v851
  %990 = vmatpush1.bf16.msra.mxu0 %v850
  %991 = vmatprep.subr.bf16.mxu0 %v853
  %992 = vmatpush1.bf16.msra.mxu0 %v852
  %993 = vmatprep.subr.bf16.mxu0 %v855
  %994 = vmatpush1.bf16.msra.mxu0 %v854
  %995 = vmatprep.subr.bf16.mxu0 %v857
  %996 = vmatpush1.bf16.msra.mxu0 %v856
  %997 = vmatprep.subr.bf16.mxu0 %v859
  %998 = vmatpush1.bf16.msra.mxu0 %v858
  %999 = vmatprep.subr.bf16.mxu0 %v861
  %1000 = vmatpush1.bf16.msra.mxu0 %v860
  %1001 = vmatprep.mubr.bf16.mxu0 %v541
  %1002 = vmatmul.mubr.bf16.gmra.mrb[0].mxu0 %v540
  %v1003 = vpop.f32.mrb[0].mxu0
  %v1004 = vadd.f32 %v961, %v1003
  %v1005 = vpop.f32.mrb[0].mxu0
  %v1006 = vadd.f32 %v963, %v1005
  %v1007 = vpop.f32.mrb[0].mxu0
  %v1008 = vadd.f32 %v965, %v1007
  %v1009 = vpop.f32.mrb[0].mxu0
  %v1010 = vadd.f32 %v967, %v1009
  %1011 = vdwg.mxu0
  %v1012 = vadd.f32 %v534, %v1004
  %v1013 = vadd.f32 %v535, %v1006
  %v1014 = vadd.f32 %v536, %v1008
  %v1015 = vadd.f32 %v537, %v1010
  %1016 = vst [vmem:[#allocation2] sm:$0xff] %v1012
  %1017 = vst [vmem:[#allocation2 + $0x8] sm:$0xff] %v1013
  %1018 = vst [vmem:[#allocation2 + $0x10] sm:$0xff] %v1014
  %1019 = vst [vmem:[#allocation2 + $0x18] sm:$0xff] %v1015
  // Predicated region
  $region26: #{transformer_forward.44} parent=0 // pred_check
    %p1020 = pneg %p20
  $region27: #{transformer_forward.44} parent=0 // pred_check_branch
    %1022 = sbr.rel (%p1020) target = $region29
  $region28: #{transformer_forward.44} parent=0 // pred_region
    %v1023 = vld [vmem:[#allocation2] sm:$0xff]
    %v1024 = vld [vmem:[#allocation2 + $0x8] sm:$0xff]
    %v1025 = vld [vmem:[#allocation2 + $0x10] sm:$0xff]
    %v1026 = vld [vmem:[#allocation2 + $0x18] sm:$0xff]
    %v1027 = vld [vmem:[%s4] sm:$0x3]
    %v1029 = vlaneseq
    %v1030 = vshrl.u32 %v1029, 7
    %v1031 = vsub.s32 0, %v1030
    %v1032 = vrot.slane %v1027, %v1031
    %v1033 = vlaneseq
    %v1034 = vshrl.u32 %v1033, 7
    %v1035 = vsub.s32 1, %v1034
    %v1036 = vrot.slane %v1027, %v1035
    %v1039 = vadd.f32 %v1023, %v1032
    %v1040 = vadd.f32 %v1024, %v1036
    %v1041 = vadd.f32 %v1025, %v1032
    %v1042 = vadd.f32 %v1026, %v1036
    %1043 = vst [vmem:[%s5] sm:$0xff] %v1039
    %1044 = vst [vmem:[%s5 + $0x8] sm:$0xff] %v1040
    %1045 = vst [vmem:[%s5 + $0x10] sm:$0xff] %v1041
    %1046 = vst [vmem:[%s5 + $0x18] sm:$0xff] %v1042
  $region29: #{transformer_forward.44} parent=0 // pred_fallthru
    _
  // Predicated region
  $region30: #{transformer_forward.44} parent=0 // pred_check
    _
  $region31: #{transformer_forward.44} parent=0 // pred_check_branch
    %1048 = sbr.rel (0) target = $region33
  $region32: #{transformer_forward.44} parent=0 // pred_region
    _
  $region33: #{transformer_forward.44} parent=0 // pred_fallthru
    _
  // Predicated region
  $region34: #{transformer_forward.44} parent=0 // pred_check
    _
  $region35: #{transformer_forward.44} parent=0 // pred_check_branch
    %1050 = sbr.rel (0) target = $region37
  $region36: #{transformer_forward.44} parent=0 // pred_region
    _
  $region37: #{transformer_forward.44} parent=0 // pred_fallthru
    _

</llo_original>
